<compile_context>
chip_gen: v7x
topology: tpu7x:2x2x1
jax: 0.10.0
libtpu: 0.0.40
codegen_flags: <defaults>
</compile_context>

<pallas_src>
import jax
import jax.numpy as jnp
import numpy as np
from jax import lax
from jax.experimental import pallas as pl
from jax.experimental.pallas import tpu as pltpu

GAMMA = 20.0          # self.gamma
GAMMA2 = 10.0         # self.gamma2
ALPHA = 0.5           # self.katz_factor
A2 = ALPHA * ALPHA
QB_CAP = 8            # queries per grid step; keeps per-step VMEM < a few MiB
                      # (safe on v7x's 64 MiB) while amortizing step overhead


def _bmm(a, b):
    """Batched matmul (b,i,j) @ (b,j,k) -> (b,i,k) with f32 accumulation."""
    return jnp.einsum('bij,bjk->bik', a, b, preferred_element_type=jnp.float32)


def _mel_kernel(q_ref, sn_ref, out_ref):
    """One batch of Qb query examples per grid step.

    q_ref  : (Qb, M_q, C)   raw query features
    sn_ref : (C, M_s)       L2-normalized support features (grid-invariant)
    out_ref: (1, Qb, M_s)   normalized partial Katz centrality over support nodes
    """
    Qb, M_q, C = q_ref.shape
    M_s = sn_ref.shape[1]

    # ---- cosine similarity: single lane-dense f32 MXU matmul for the batch ----
    qf = q_ref[...].reshape(Qb * M_q, C)                         # sublane-only reshape
    # rsqrt issues on the EUP; eps placement differs from 1/(eps+sqrt(.)) but is
    # negligible for O(1) feature norms.
    qn = qf * lax.rsqrt(jnp.sum(qf * qf, axis=-1, keepdims=True) + 1e-16)
    S = jnp.dot(qn, sn_ref[...],
                preferred_element_type=jnp.float32).reshape(Qb, M_q, M_s)

    # ---- T_sq = softmax(gamma * S) over M_s (lane axis) ----
    # |S| <= 1 (cosine), so a constant shift replaces the per-row max reduction;
    # exp arguments stay in [-2*GAMMA, 0], far inside f32 range.
    e = jnp.exp(GAMMA * S - GAMMA)
    T_sq = e * pl.reciprocal(jnp.sum(e, axis=-1, keepdims=True), approx=True)

    # ---- L := T_qs^T = column softmax of gamma2 * S (over M_q) ----
    # Constant shift removes the cross-sublane max; only the sum reduce remains.
    e2 = jnp.exp(GAMMA2 * S - GAMMA2)
    L = e2 * pl.reciprocal(jnp.sum(e2, axis=1, keepdims=True), approx=True)   # (Qb, M_q, M_s)

    # ---- block elimination of (I - alpha*T) y = 1 ----
    # (I - alpha^2 * L @ T_sq^T) y_q = 1 + alpha * L @ 1.  Row-vector form:
    #   x = rhs + x @ B,   B = alpha^2 * T_sq @ L^T   (Qb, M_q, M_q)
    B = A2 * jnp.einsum('bms,bns->bmn', T_sq, L,
                        preferred_element_type=jnp.float32)
    rhs = (1.0 + ALPHA * jnp.sum(L, axis=-1)).reshape(Qb, 1, M_q)

    # ---- x = rhs @ sum_{k=0}^{15} B^k via log-doubling with rhs folded in ----
    # 3 matrix squarings + 4 tiny matvecs (was 6 matrix products + eye build).
    # ||B||_inf = alpha^2 = 0.25 exactly (stochastic factors), so the 16-term
    # truncation error is <= 0.25^16 / 0.75 ~ 3e-10 << f32 eps.
    # TODO(synk): no dense-inverse primitive in Pallas; the truncated Neumann
    # series replaces torch.inverse exactly to f32 precision here.
    x = rhs + _bmm(rhs, B)          # terms B^0 .. B^1
    B2 = _bmm(B, B)
    x = x + _bmm(x, B2)             # terms B^0 .. B^3
    B4 = _bmm(B2, B2)
    x = x + _bmm(x, B4)             # terms B^0 .. B^7
    B8 = _bmm(B4, B4)
    x = x + _bmm(x, B8)             # terms B^0 .. B^15

    # katz over support nodes: y_s - 1 = alpha * x @ T_sq (lane-dense rows)
    katz = ALPHA * _bmm(x, T_sq)[:, 0, :]                        # (Qb, M_s)
    out_ref[0] = katz * pl.reciprocal(jnp.sum(katz, axis=-1, keepdims=True),
                                      approx=True)


def mel_partial_katz(q_feat, sn_feat):
    """q_feat: (Q, M_q, C) f32, sn_feat: (C, M_s) L2-normalized -> (Q, M_s)."""
    Q, M_q, C = q_feat.shape
    C2, M_s = sn_feat.shape
    assert C == C2
    # Grid selection: single step when Q is small (v5e/v6e are single-TC, so
    # extra grid steps are purely serial ~0.35us overhead each and shrink the
    # batched-matmul depth); for bigger episodes cap the per-step batch and keep
    # the parallel axis a multiple of 2 so it can shard across v7x's 2 TCs.
    if Q <= QB_CAP:
        G, Qb = 1, Q
    else:
        Qb = QB_CAP
        G = pl.cdiv(Q, Qb)
        if G % 2:
            G += 1
    Q_pad = G * Qb
    if Q_pad != Q:
        # Zero-pad the tail; padded rows produce finite garbage that is sliced off.
        q_feat = jnp.concatenate(
            [q_feat, jnp.zeros((Q_pad - Q, M_q, C), q_feat.dtype)], axis=0)

    flops = 2 * Q_pad * (M_q * C * M_s        # cosine similarity matmul
                         + M_q * M_q * M_s    # B einsum
                         + 3 * M_q ** 3       # Neumann squarings
                         + 4 * M_q * M_q      # folded matvecs
                         + M_q * M_s)         # final katz matvec
    cost = pl.CostEstimate(
        flops=flops,
        transcendentals=2 * Q_pad * M_q * M_s,
        bytes_accessed=4 * (Q_pad * M_q * C + C * M_s + Q_pad * M_s))

    out = pl.pallas_call(
        _mel_kernel,
        out_shape=jax.ShapeDtypeStruct((G, Qb, M_s), jnp.float32),
        grid=(G,),
        in_specs=[
            pl.BlockSpec((Qb, M_q, C), lambda i: (i, 0, 0)),
            pl.BlockSpec((C, M_s), lambda i: (0, 0)),
        ],
        out_specs=pl.BlockSpec((1, Qb, M_s), lambda i: (i, 0, 0)),
        compiler_params=pltpu.CompilerParams(dimension_semantics=("parallel",)),
        cost_estimate=cost,
    )(q_feat, sn_feat)
    return out.reshape(Q_pad, M_s)[:Q]


def _prepare_features(feat, n_way, k_shot):
    """Glue reproducing MEL.forward preprocessing + averaging_based_similarities setup."""
    ns = n_way * k_shot
    _support_unused = feat[:ns]           # sliced by the torch code, then overwritten
    query_xf = feat[ns:]                  # (Q, C, H, W)
    Q, C, H, W = query_xf.shape
    # F.adaptive_max_pool2d(query_xf, W): pools H -> W (W axis is identity).
    assert H % W == 0, "adaptive_max_pool2d glue implemented for H % W == 0"
    pooled = query_xf.reshape(Q, C, W, H // W, W).max(axis=3)        # (Q, C, W, W)
    assert Q == n_way * k_shot, "torch .view(n_way, k_shot, ...) requires Q == n_way*k_shot"
    hw = W * W
    sup = pooled.reshape(n_way, k_shot, C, W, W).mean(axis=1)        # (n_way, C, W, W)
    sup = sup.reshape(n_way, C, hw)
    s_feat = jnp.transpose(sup, (1, 0, 2)).reshape(C, n_way * hw)    # (C, M_s) way-major
    q_feat = jnp.transpose(query_xf.reshape(Q, C, H * W), (0, 2, 1)) # (Q, M_q, C)
    return q_feat.astype(jnp.float32), s_feat.astype(jnp.float32)


def mel_forward(feat, label, n_way, k_shot):
    """MEL.forward (training mode): returns ({'MEL_loss': loss}, predicts)."""
    _support_y, query_y = label
    q_feat, s_feat = _prepare_features(feat, n_way, k_shot)
    # Support L2 normalization is grid-invariant -> hoisted out of the kernel.
    sn_feat = s_feat / (1e-16 + jnp.sqrt(jnp.sum(s_feat * s_feat, axis=0, keepdims=True)))
    Q = q_feat.shape[0]
    partial = mel_partial_katz(q_feat, sn_feat)                      # (Q, M_s)
    predicts = partial.reshape(Q, n_way, -1).sum(-1)                 # (Q, n_way)
    log_p = jnp.log(predicts)
    loss = -jnp.mean(log_p[jnp.arange(Q), query_y])                  # nn.NLLLoss (mean)
    return {'MEL_loss': loss}, predicts


def _reference_predicts(q_feat, s_feat, n_way):
    """Plain-JAX mirror of the torch bipartite_katz_forward (dense inverse)."""
    qn = q_feat / (1e-16 + jnp.linalg.norm(q_feat, axis=-1, keepdims=True))
    sn = s_feat / (1e-16 + jnp.linalg.norm(s_feat, axis=0, keepdims=True))
    S = jnp.einsum('qmc,cs->qms', qn, sn)
    N, M_q, M_s = S.shape
    T_sq = jax.nn.softmax(GAMMA * S, axis=-1)
    T_qs = jax.nn.softmax(GAMMA2 * jnp.swapaxes(S, -1, -2), axis=-1)
    top = jnp.concatenate([jnp.zeros((N, M_s, M_s), S.dtype),
                           jnp.swapaxes(T_sq, -1, -2)], axis=-1)
    bot = jnp.concatenate([jnp.swapaxes(T_qs, -1, -2),
                           jnp.zeros((N, M_q, M_q), S.dtype)], axis=-1)
    T = jnp.concatenate([top, bot], axis=-2)
    I = jnp.eye(M_s + M_q, dtype=S.dtype)[None]
    katz = (jnp.linalg.inv(I - ALPHA * T) - I) @ jnp.ones((N, M_s + M_q, 1), S.dtype)
    katz = katz[:, :M_s, 0]
    partial = katz / katz.sum(-1, keepdims=True)
    return partial.reshape(N, n_way, -1).sum(-1)


if __name__ == "__main__":
    n_way, k_shot = 2, 2
    C, H, W = 64, 8, 8
    Q = n_way * k_shot                       # forward requires #queries == n_way*k_shot
    key = jax.random.PRNGKey(0)
    feat = jax.random.normal(key, (n_way * k_shot + Q, C, H, W), dtype=jnp.float32)
    support_y = jnp.repeat(jnp.arange(n_way), k_shot).astype(jnp.int32)
    query_y = jnp.array([0, 0, 1, 1], dtype=jnp.int32)

    out, predicts = mel_forward(feat, (support_y, query_y), n_way, k_shot)
    jax.block_until_ready(predicts)
    jax.block_until_ready(out['MEL_loss'])

    # correctness check against a dense (torch-mirroring) reference
    q_feat, s_feat = _prepare_features(feat, n_way, k_shot)
    ref = _reference_predicts(q_feat, s_feat, n_way)
    np.testing.assert_allclose(np.asarray(predicts), np.asarray(ref), rtol=2e-3, atol=1e-4)
    assert np.isfinite(float(out['MEL_loss']))
    print("KERNEL_OK")
</pallas_src>

<mosaic_0001>
module attributes {stable_mosaic.version = 11 : i64} {
  func.func @_mel_kernel(%arg0: i32, %arg1: memref<4x64x64xf32, #tpu.memory_space<vmem>>, %arg2: memref<64x128xf32, #tpu.memory_space<vmem>>, %arg3: memref<1x4x128xf32, #tpu.memory_space<vmem>>) attributes {dimension_semantics = [#tpu.dimension_semantics<parallel>], iteration_bounds = array<i64: 1>, scalar_prefetch = 0 : i64, scratch_operands = 0 : i64, tpu.core_type = #tpu.core_type<tc>, window_params = [{transform_indices = @transform_0, window_bounds = array<i64: 4, 64, 64>}, {pipeline_mode = #tpu.pipeline_mode<synchronous>, transform_indices = @transform_1, window_bounds = array<i64: 64, 128>}, {transform_indices = @transform_2, window_bounds = array<i64: 1, 4, 128>}]} {
    %c0 = arith.constant 0 : index
    %c0_0 = arith.constant 0 : index
    %c0_1 = arith.constant 0 : index
    %0 = vector.load %arg1[%c0, %c0_0, %c0_1] : memref<4x64x64xf32, #tpu.memory_space<vmem>>, vector<4x64x64xf32>
    %1 = vector.shape_cast %0 : vector<4x64x64xf32> to vector<256x64xf32>
    %2 = arith.mulf %1, %1 : vector<256x64xf32>
    %cst = arith.constant dense<0.000000e+00> : vector<256xf32>
    %3 = vector.multi_reduction <add>, %2, %cst [1] : vector<256x64xf32> to vector<256xf32>
    %4 = vector.shape_cast %3 : vector<256xf32> to vector<256x1xf32>
    %cst_2 = arith.constant 1.000000e-16 : f32
    %5 = vector.broadcast %cst_2 : f32 to vector<256x1xf32>
    %6 = arith.addf %4, %5 : vector<256x1xf32>
    %7 = math.rsqrt %6 : vector<256x1xf32>
    %8 = vector.broadcast %7 : vector<256x1xf32> to vector<256x64xf32>
    %9 = arith.mulf %1, %8 : vector<256x64xf32>
    %c0_3 = arith.constant 0 : index
    %c0_4 = arith.constant 0 : index
    %10 = vector.load %arg2[%c0_3, %c0_4] : memref<64x128xf32, #tpu.memory_space<vmem>>, vector<64x128xf32>
    %cst_5 = arith.constant dense<0.000000e+00> : vector<256x128xf32>
    %11 = tpu.matmul %9, %10, %cst_5 {dimension_numbers = #tpu.dot_dimension_numbers<[1], [0], [0], [1], [0, 0, 1, 1], [], []>} : vector<256x64xf32>, vector<64x128xf32>, vector<256x128xf32> -> vector<256x128xf32>
    %12 = vector.shape_cast %11 : vector<256x128xf32> to vector<4x64x128xf32>
    %cst_6 = arith.constant 2.000000e+01 : f32
    %13 = vector.broadcast %cst_6 : f32 to vector<4x64x128xf32>
    %14 = arith.mulf %13, %12 : vector<4x64x128xf32>
    %cst_7 = arith.constant 2.000000e+01 : f32
    %15 = vector.broadcast %cst_7 : f32 to vector<4x64x128xf32>
    %16 = arith.subf %14, %15 : vector<4x64x128xf32>
    %17 = math.exp %16 : vector<4x64x128xf32>
    %cst_8 = arith.constant dense<0.000000e+00> : vector<4x64xf32>
    %18 = vector.multi_reduction <add>, %17, %cst_8 [2] : vector<4x64x128xf32> to vector<4x64xf32>
    %19 = vector.shape_cast %18 : vector<4x64xf32> to vector<4x64x1xf32>
    %20 = tpu.reciprocal %19 {approx = true} : vector<4x64x1xf32> -> vector<4x64x1xf32>
    %21 = vector.broadcast %20 : vector<4x64x1xf32> to vector<4x64x128xf32>
    %22 = arith.mulf %17, %21 : vector<4x64x128xf32>
    %cst_9 = arith.constant 1.000000e+01 : f32
    %23 = vector.broadcast %cst_9 : f32 to vector<4x64x128xf32>
    %24 = arith.mulf %23, %12 : vector<4x64x128xf32>
    %cst_10 = arith.constant 1.000000e+01 : f32
    %25 = vector.broadcast %cst_10 : f32 to vector<4x64x128xf32>
    %26 = arith.subf %24, %25 : vector<4x64x128xf32>
    %27 = math.exp %26 : vector<4x64x128xf32>
    %cst_11 = arith.constant dense<0.000000e+00> : vector<4x128xf32>
    %28 = vector.multi_reduction <add>, %27, %cst_11 [1] : vector<4x64x128xf32> to vector<4x128xf32>
    %29 = vector.shape_cast %28 : vector<4x128xf32> to vector<4x1x128xf32>
    %30 = tpu.reciprocal %29 {approx = true} : vector<4x1x128xf32> -> vector<4x1x128xf32>
    %31 = vector.broadcast %30 : vector<4x1x128xf32> to vector<4x64x128xf32>
    %32 = arith.mulf %27, %31 : vector<4x64x128xf32>
    "tpu.trace_start"() <{level = 10 : i32, message = "bms,bns->bmn"}> : () -> ()
    %cst_12 = arith.constant dense<0.000000e+00> : vector<4x64x64xf32>
    %33 = tpu.matmul %22, %32, %cst_12 {dimension_numbers = #tpu.dot_dimension_numbers<[2], [2], [1], [1], [0, 0, 0, 1, 1, 1], [0], [0]>} : vector<4x64x128xf32>, vector<4x64x128xf32>, vector<4x64x64xf32> -> vector<4x64x64xf32>
    "tpu.trace_stop"() : () -> ()
    %cst_13 = arith.constant 2.500000e-01 : f32
    %34 = vector.broadcast %cst_13 : f32 to vector<4x64x64xf32>
    %35 = arith.mulf %34, %33 : vector<4x64x64xf32>
    %cst_14 = arith.constant dense<0.000000e+00> : vector<4x64xf32>
    %36 = vector.multi_reduction <add>, %32, %cst_14 [2] : vector<4x64x128xf32> to vector<4x64xf32>
    %cst_15 = arith.constant 5.000000e-01 : f32
    %37 = vector.broadcast %cst_15 : f32 to vector<4x64xf32>
    %38 = arith.mulf %37, %36 : vector<4x64xf32>
    %cst_16 = arith.constant 1.000000e+00 : f32
    %39 = vector.broadcast %cst_16 : f32 to vector<4x64xf32>
    %40 = arith.addf %39, %38 : vector<4x64xf32>
    %41 = vector.shape_cast %40 : vector<4x64xf32> to vector<4x1x64xf32>
    "tpu.trace_start"() <{level = 10 : i32, message = "bij,bjk->bik"}> : () -> ()
    %cst_17 = arith.constant dense<0.000000e+00> : vector<4x1x64xf32>
    %42 = tpu.matmul %41, %35, %cst_17 {dimension_numbers = #tpu.dot_dimension_numbers<[2], [1], [1], [2], [0, 0, 0, 1, 1, 2], [0], [0]>} : vector<4x1x64xf32>, vector<4x64x64xf32>, vector<4x1x64xf32> -> vector<4x1x64xf32>
    "tpu.trace_stop"() : () -> ()
    %43 = arith.addf %41, %42 : vector<4x1x64xf32>
    "tpu.trace_start"() <{level = 10 : i32, message = "bij,bjk->bik"}> : () -> ()
    %cst_18 = arith.constant dense<0.000000e+00> : vector<4x64x64xf32>
    %44 = tpu.matmul %35, %35, %cst_18 {dimension_numbers = #tpu.dot_dimension_numbers<[2], [1], [1], [2], [0, 0, 0, 1, 1, 2], [0], [0]>} : vector<4x64x64xf32>, vector<4x64x64xf32>, vector<4x64x64xf32> -> vector<4x64x64xf32>
    %cst_19 = arith.constant dense<0.000000e+00> : vector<4x1x64xf32>
    %45 = tpu.matmul %43, %44, %cst_19 {dimension_numbers = #tpu.dot_dimension_numbers<[2], [1], [1], [2], [0, 0, 0, 1, 1, 2], [0], [0]>} : vector<4x1x64xf32>, vector<4x64x64xf32>, vector<4x1x64xf32> -> vector<4x1x64xf32>
    "tpu.trace_stop"() : () -> ()
    %46 = arith.addf %43, %45 : vector<4x1x64xf32>
    "tpu.trace_start"() <{level = 10 : i32, message = "bij,bjk->bik"}> : () -> ()
    %cst_20 = arith.constant dense<0.000000e+00> : vector<4x64x64xf32>
    %47 = tpu.matmul %44, %44, %cst_20 {dimension_numbers = #tpu.dot_dimension_numbers<[2], [1], [1], [2], [0, 0, 0, 1, 1, 2], [0], [0]>} : vector<4x64x64xf32>, vector<4x64x64xf32>, vector<4x64x64xf32> -> vector<4x64x64xf32>
    %cst_21 = arith.constant dense<0.000000e+00> : vector<4x1x64xf32>
    %48 = tpu.matmul %46, %47, %cst_21 {dimension_numbers = #tpu.dot_dimension_numbers<[2], [1], [1], [2], [0, 0, 0, 1, 1, 2], [0], [0]>} : vector<4x1x64xf32>, vector<4x64x64xf32>, vector<4x1x64xf32> -> vector<4x1x64xf32>
    "tpu.trace_stop"() : () -> ()
    %49 = arith.addf %46, %48 : vector<4x1x64xf32>
    "tpu.trace_start"() <{level = 10 : i32, message = "bij,bjk->bik"}> : () -> ()
    %cst_22 = arith.constant dense<0.000000e+00> : vector<4x64x64xf32>
    %50 = tpu.matmul %47, %47, %cst_22 {dimension_numbers = #tpu.dot_dimension_numbers<[2], [1], [1], [2], [0, 0, 0, 1, 1, 2], [0], [0]>} : vector<4x64x64xf32>, vector<4x64x64xf32>, vector<4x64x64xf32> -> vector<4x64x64xf32>
    %cst_23 = arith.constant dense<0.000000e+00> : vector<4x1x64xf32>
    %51 = tpu.matmul %49, %50, %cst_23 {dimension_numbers = #tpu.dot_dimension_numbers<[2], [1], [1], [2], [0, 0, 0, 1, 1, 2], [0], [0]>} : vector<4x1x64xf32>, vector<4x64x64xf32>, vector<4x1x64xf32> -> vector<4x1x64xf32>
    "tpu.trace_stop"() : () -> ()
    %52 = arith.addf %49, %51 : vector<4x1x64xf32>
    "tpu.trace_start"() <{level = 10 : i32, message = "bij,bjk->bik"}> : () -> ()
    %cst_24 = arith.constant dense<0.000000e+00> : vector<4x1x128xf32>
    %53 = tpu.matmul %52, %22, %cst_24 {dimension_numbers = #tpu.dot_dimension_numbers<[2], [1], [1], [2], [0, 0, 0, 1, 1, 2], [0], [0]>} : vector<4x1x64xf32>, vector<4x64x128xf32>, vector<4x1x128xf32> -> vector<4x1x128xf32>
    "tpu.trace_stop"() : () -> ()
    %54 = vector.shape_cast %53 : vector<4x1x128xf32> to vector<4x128xf32>
    %cst_25 = arith.constant 5.000000e-01 : f32
    %55 = vector.broadcast %cst_25 : f32 to vector<4x128xf32>
    %56 = arith.mulf %55, %54 : vector<4x128xf32>
    %cst_26 = arith.constant dense<0.000000e+00> : vector<4xf32>
    %57 = vector.multi_reduction <add>, %56, %cst_26 [1] : vector<4x128xf32> to vector<4xf32>
    %58 = vector.shape_cast %57 : vector<4xf32> to vector<4x1xf32>
    %59 = tpu.reciprocal %58 {approx = true} : vector<4x1xf32> -> vector<4x1xf32>
    %60 = vector.broadcast %59 : vector<4x1xf32> to vector<4x128xf32>
    %61 = arith.mulf %56, %60 : vector<4x128xf32>
    %c0_27 = arith.constant 0 : index
    %c0_28 = arith.constant 0 : index
    %c0_29 = arith.constant 0 : index
    %62 = vector.load %arg3[%c0_27, %c0_28, %c0_29] : memref<1x4x128xf32, #tpu.memory_space<vmem>>, vector<1x4x128xf32>
    %63 = vector.shape_cast %62 : vector<1x4x128xf32> to vector<4x128xf32>
    %64 = vector.shape_cast %61 : vector<4x128xf32> to vector<1x4x128xf32>
    tpu.vector_store %arg3[%c0_27, %c0_28, %c0_29], %64 {strides = array<i32>} : memref<1x4x128xf32, #tpu.memory_space<vmem>>, vector<1x4x128xf32>,
    return
  }
  func.func @transform_0(%arg0: i32) -> (i32, i32, i32) {
    %c0_i32 = arith.constant 0 : i32
    %c0_i32_0 = arith.constant 0 : i32
    %c0_i32_1 = arith.constant 0 : i32
    return %arg0, %c0_i32, %c0_i32_0 : i32, i32, i32
  }
  func.func @transform_1(%arg0: i32) -> (i32, i32) {
    %c0_i32 = arith.constant 0 : i32
    %c0_i32_0 = arith.constant 0 : i32
    %c0_i32_1 = arith.constant 0 : i32
    return %c0_i32, %c0_i32_0 : i32, i32
  }
  func.func @transform_2(%arg0: i32) -> (i32, i32, i32) {
    %c0_i32 = arith.constant 0 : i32
    %c0_i32_0 = arith.constant 0 : i32
    %c0_i32_1 = arith.constant 0 : i32
    return %arg0, %c0_i32, %c0_i32_0 : i32, i32, i32
  }
}

</mosaic_0001>

<llo_original>
// kernel: tpu_custom_call.1
$region0: #{tpu_custom_call.1}
  #allocation0 [shape = 'u32[]', space=smem, size = 0x4, offset = 0x4, fixed_abs, tag = 'smem constant byte address 0x4 - core index']
  #allocation1 [shape = 'u32[144,128]{1,0:T(1,128)}', space=vmem, size = 0x12000, scoped, tag = 'internal scratch']
  %s0 = inlined_call_operand.hbm [shape: f32[4,64,64], index: 0, kind: input, shape index: {}]
  %s1 = inlined_call_operand.hbm [shape: f32[64,128], index: 1, kind: input, shape index: {}]
  %s2 = inlined_call_operand.hbm [shape: f32[1,4,128], index: 2, kind: output, shape index: {}]
  %s3 = sld [smem:[#allocation0]]
  $region26: #{tpu_custom_call.1} parent=0
    _
  %s5 = ssub.s32 1, %s3
  %s6 = scalar_select 0, %s5, %s3
  $region1: #{tpu_custom_call.1} parent=0
    #allocation2 [shape = 'u8[131072]{0}', space=vmem, size = 0x20000, scoped, tag = 'input window, operand 0, single buffered']
    #allocation3 [shape = 's32[1]{0}', space=sflag, size = 0x4, scoped, tag = 'scoped memory for tpu_custom_call.1']
    #allocation4 [shape = 's32[1]{0}', space=sflag, size = 0x4, scoped, tag = 'scoped memory for tpu_custom_call.1']
    #allocation5 [shape = 'u8[32768]{0}', space=vmem, size = 0x8000, scoped, tag = 'input window, operand 1, single buffered']
    #allocation6 [shape = 's32[1]{0}', space=sflag, size = 0x4, scoped, tag = 'scoped memory for tpu_custom_call.1']
    #allocation7 [shape = 'u8[2048]{0}', space=vmem, size = 0x800, scoped, tag = 'output window, operand 0, single buffered']
    %7 = vsyncpa [#allocation3], 0
    %8 = vsyncpa [#allocation6], 0
    %9 = vsyncpa [#allocation4], 0
    // Predicated region
    $region2: #{tpu_custom_call.1} parent=1 // pred_check
      _
    $region3: #{tpu_custom_call.1} parent=1 // pred_check_branch
      %11 = sbr.rel (0) target = $region5
    $region4: #{tpu_custom_call.1} parent=1 // pred_region
      %s13 = ssub.s32 4096, 4096
      %14 = vsyncadd [#allocation3], %s13
      %s15 = sshll.u32 [#allocation2], 4
      %s16 = int_to_ptr.vmem [resolvable:$true] %s15
      %21 = dma.hbm_to_vmem [thread:$0]  %s0, 4096, %s16, [#allocation3], 128, 128, 8
    $region5: #{tpu_custom_call.1} parent=1 // pred_fallthru
      _
    // Predicated region
    $region6: #{tpu_custom_call.1} parent=1 // pred_check
      _
    $region7: #{tpu_custom_call.1} parent=1 // pred_check_branch
      %23 = sbr.rel (0) target = $region9
    $region8: #{tpu_custom_call.1} parent=1 // pred_region
      %s25 = ssub.s32 1024, 1024
      %26 = vsyncadd [#allocation6], %s25
      %s27 = sshll.u32 [#allocation5], 4
      %s28 = int_to_ptr.vmem [resolvable:$true] %s27
      %33 = dma.hbm_to_vmem [thread:$0]  %s1, 1024, %s28, [#allocation6], 128, 128, 8
    $region9: #{tpu_custom_call.1} parent=1 // pred_fallthru
      _
    // Predicated region
    $region10: #{tpu_custom_call.1} parent=1 // pred_check
      _
    $region11: #{tpu_custom_call.1} parent=1 // pred_check_branch
      %35 = sbr.rel (0) target = $region13
    $region12: #{tpu_custom_call.1} parent=1 // pred_region
      %36 = dma.done [#allocation3], 4096
    $region13: #{tpu_custom_call.1} parent=1 // pred_fallthru
      _
    // Predicated region
    $region14: #{tpu_custom_call.1} parent=1 // pred_check
      _
    $region15: #{tpu_custom_call.1} parent=1 // pred_check_branch
      %38 = sbr.rel (0) target = $region17
    $region16: #{tpu_custom_call.1} parent=1 // pred_region
      %39 = dma.done [#allocation6], 1024
    $region17: #{tpu_custom_call.1} parent=1 // pred_fallthru
      _
    %v40 = vld [vmem:[#allocation2] sm:$0xff]
    %v41 = vld [vmem:[#allocation2 + $0x8] sm:$0xff]
    %v42 = vld [vmem:[#allocation2 + $0x10] sm:$0xff]
    %v43 = vld [vmem:[#allocation2 + $0x18] sm:$0xff]
    %v44 = vld [vmem:[#allocation2 + $0x20] sm:$0xff]
    %v45 = vld [vmem:[#allocation2 + $0x28] sm:$0xff]
    %v46 = vld [vmem:[#allocation2 + $0x30] sm:$0xff]
    %v47 = vld [vmem:[#allocation2 + $0x38] sm:$0xff]
    %v48 = vld [vmem:[#allocation2 + $0x40] sm:$0xff]
    %v49 = vld [vmem:[#allocation2 + $0x48] sm:$0xff]
    %v50 = vld [vmem:[#allocation2 + $0x50] sm:$0xff]
    %v51 = vld [vmem:[#allocation2 + $0x58] sm:$0xff]
    %v52 = vld [vmem:[#allocation2 + $0x60] sm:$0xff]
    %v53 = vld [vmem:[#allocation2 + $0x68] sm:$0xff]
    %v54 = vld [vmem:[#allocation2 + $0x70] sm:$0xff]
    %v55 = vld [vmem:[#allocation2 + $0x78] sm:$0xff]
    %v56 = vld [vmem:[#allocation2 + $0x80] sm:$0xff]
    %v57 = vld [vmem:[#allocation2 + $0x88] sm:$0xff]
    %v58 = vld [vmem:[#allocation2 + $0x90] sm:$0xff]
    %v59 = vld [vmem:[#allocation2 + $0x98] sm:$0xff]
    %v60 = vld [vmem:[#allocation2 + $0xa0] sm:$0xff]
    %v61 = vld [vmem:[#allocation2 + $0xa8] sm:$0xff]
    %v62 = vld [vmem:[#allocation2 + $0xb0] sm:$0xff]
    %v63 = vld [vmem:[#allocation2 + $0xb8] sm:$0xff]
    %v64 = vld [vmem:[#allocation2 + $0xc0] sm:$0xff]
    %v65 = vld [vmem:[#allocation2 + $0xc8] sm:$0xff]
    %v66 = vld [vmem:[#allocation2 + $0xd0] sm:$0xff]
    %v67 = vld [vmem:[#allocation2 + $0xd8] sm:$0xff]
    %v68 = vld [vmem:[#allocation2 + $0xe0] sm:$0xff]
    %v69 = vld [vmem:[#allocation2 + $0xe8] sm:$0xff]
    %v70 = vld [vmem:[#allocation2 + $0xf0] sm:$0xff]
    %v71 = vld [vmem:[#allocation2 + $0xf8] sm:$0xff]
    %v72 = vmul.f32 %v40, %v40
    %v73 = vmul.f32 %v41, %v41
    %v74 = vmul.f32 %v42, %v42
    %v75 = vmul.f32 %v43, %v43
    %v76 = vmul.f32 %v44, %v44
    %v77 = vmul.f32 %v45, %v45
    %v78 = vmul.f32 %v46, %v46
    %v79 = vmul.f32 %v47, %v47
    %v80 = vmul.f32 %v48, %v48
    %v81 = vmul.f32 %v49, %v49
    %v82 = vmul.f32 %v50, %v50
    %v83 = vmul.f32 %v51, %v51
    %v84 = vmul.f32 %v52, %v52
    %v85 = vmul.f32 %v53, %v53
    %v86 = vmul.f32 %v54, %v54
    %v87 = vmul.f32 %v55, %v55
    %v88 = vmul.f32 %v56, %v56
    %v89 = vmul.f32 %v57, %v57
    %v90 = vmul.f32 %v58, %v58
    %v91 = vmul.f32 %v59, %v59
    %v92 = vmul.f32 %v60, %v60
    %v93 = vmul.f32 %v61, %v61
    %v94 = vmul.f32 %v62, %v62
    %v95 = vmul.f32 %v63, %v63
    %v96 = vmul.f32 %v64, %v64
    %v97 = vmul.f32 %v65, %v65
    %v98 = vmul.f32 %v66, %v66
    %v99 = vmul.f32 %v67, %v67
    %v100 = vmul.f32 %v68, %v68
    %v101 = vmul.f32 %v69, %v69
    %v102 = vmul.f32 %v70, %v70
    %v103 = vmul.f32 %v71, %v71
    %vm104 = vcmask 523264
    %v105 = vsel %vm104, %v72, 0.0
    %106 = vadd.xlane.f32.xlu0 %v105
    %v107 = vpop.xlane.xlu0 %106
    %v108 = vsel %vm104, %v73, 0.0
    %109 = vadd.xlane.f32.xlu0 %v108
    %v110 = vpop.xlane.xlu0 %109
    %v111 = vsel %vm104, %v74, 0.0
    %112 = vadd.xlane.f32.xlu0 %v111
    %v113 = vpop.xlane.xlu0 %112
    %v114 = vsel %vm104, %v75, 0.0
    %115 = vadd.xlane.f32.xlu0 %v114
    %v116 = vpop.xlane.xlu0 %115
    %v117 = vsel %vm104, %v76, 0.0
    %118 = vadd.xlane.f32.xlu0 %v117
    %v119 = vpop.xlane.xlu0 %118
    %v120 = vsel %vm104, %v77, 0.0
    %121 = vadd.xlane.f32.xlu0 %v120
    %v122 = vpop.xlane.xlu0 %121
    %v123 = vsel %vm104, %v78, 0.0
    %124 = vadd.xlane.f32.xlu0 %v123
    %v125 = vpop.xlane.xlu0 %124
    %v126 = vsel %vm104, %v79, 0.0
    %127 = vadd.xlane.f32.xlu0 %v126
    %v128 = vpop.xlane.xlu0 %127
    %v129 = vsel %vm104, %v80, 0.0
    %130 = vadd.xlane.f32.xlu0 %v129
    %v131 = vpop.xlane.xlu0 %130
    %v132 = vsel %vm104, %v81, 0.0
    %133 = vadd.xlane.f32.xlu0 %v132
    %v134 = vpop.xlane.xlu0 %133
    %v135 = vsel %vm104, %v82, 0.0
    %136 = vadd.xlane.f32.xlu0 %v135
    %v137 = vpop.xlane.xlu0 %136
    %v138 = vsel %vm104, %v83, 0.0
    %139 = vadd.xlane.f32.xlu0 %v138
    %v140 = vpop.xlane.xlu0 %139
    %v141 = vsel %vm104, %v84, 0.0
    %142 = vadd.xlane.f32.xlu0 %v141
    %v143 = vpop.xlane.xlu0 %142
    %v144 = vsel %vm104, %v85, 0.0
    %145 = vadd.xlane.f32.xlu0 %v144
    %v146 = vpop.xlane.xlu0 %145
    %v147 = vsel %vm104, %v86, 0.0
    %148 = vadd.xlane.f32.xlu0 %v147
    %v149 = vpop.xlane.xlu0 %148
    %v150 = vsel %vm104, %v87, 0.0
    %151 = vadd.xlane.f32.xlu0 %v150
    %v152 = vpop.xlane.xlu0 %151
    %v153 = vsel %vm104, %v88, 0.0
    %154 = vadd.xlane.f32.xlu0 %v153
    %v155 = vpop.xlane.xlu0 %154
    %v156 = vsel %vm104, %v89, 0.0
    %157 = vadd.xlane.f32.xlu0 %v156
    %v158 = vpop.xlane.xlu0 %157
    %v159 = vsel %vm104, %v90, 0.0
    %160 = vadd.xlane.f32.xlu0 %v159
    %v161 = vpop.xlane.xlu0 %160
    %v162 = vsel %vm104, %v91, 0.0
    %163 = vadd.xlane.f32.xlu0 %v162
    %v164 = vpop.xlane.xlu0 %163
    %v165 = vsel %vm104, %v92, 0.0
    %166 = vadd.xlane.f32.xlu0 %v165
    %v167 = vpop.xlane.xlu0 %166
    %v168 = vsel %vm104, %v93, 0.0
    %169 = vadd.xlane.f32.xlu0 %v168
    %v170 = vpop.xlane.xlu0 %169
    %v171 = vsel %vm104, %v94, 0.0
    %172 = vadd.xlane.f32.xlu0 %v171
    %v173 = vpop.xlane.xlu0 %172
    %v174 = vsel %vm104, %v95, 0.0
    %175 = vadd.xlane.f32.xlu0 %v174
    %v176 = vpop.xlane.xlu0 %175
    %v177 = vsel %vm104, %v96, 0.0
    %178 = vadd.xlane.f32.xlu0 %v177
    %v179 = vpop.xlane.xlu0 %178
    %v180 = vsel %vm104, %v97, 0.0
    %181 = vadd.xlane.f32.xlu0 %v180
    %v182 = vpop.xlane.xlu0 %181
    %v183 = vsel %vm104, %v98, 0.0
    %184 = vadd.xlane.f32.xlu0 %v183
    %v185 = vpop.xlane.xlu0 %184
    %v186 = vsel %vm104, %v99, 0.0
    %187 = vadd.xlane.f32.xlu0 %v186
    %v188 = vpop.xlane.xlu0 %187
    %v189 = vsel %vm104, %v100, 0.0
    %190 = vadd.xlane.f32.xlu0 %v189
    %v191 = vpop.xlane.xlu0 %190
    %v192 = vsel %vm104, %v101, 0.0
    %193 = vadd.xlane.f32.xlu0 %v192
    %v194 = vpop.xlane.xlu0 %193
    %v195 = vsel %vm104, %v102, 0.0
    %196 = vadd.xlane.f32.xlu0 %v195
    %v197 = vpop.xlane.xlu0 %196
    %v198 = vsel %vm104, %v103, 0.0
    %199 = vadd.xlane.f32.xlu0 %v198
    %v200 = vpop.xlane.xlu0 %199
    %v201 = vadd.f32 %v107, 1e-16
    %v202 = vadd.f32 %v110, 1e-16
    %v203 = vadd.f32 %v113, 1e-16
    %v204 = vadd.f32 %v116, 1e-16
    %v205 = vadd.f32 %v119, 1e-16
    %v206 = vadd.f32 %v122, 1e-16
    %v207 = vadd.f32 %v125, 1e-16
    %v208 = vadd.f32 %v128, 1e-16
    %v209 = vadd.f32 %v131, 1e-16
    %v210 = vadd.f32 %v134, 1e-16
    %v211 = vadd.f32 %v137, 1e-16
    %v212 = vadd.f32 %v140, 1e-16
    %v213 = vadd.f32 %v143, 1e-16
    %v214 = vadd.f32 %v146, 1e-16
    %v215 = vadd.f32 %v149, 1e-16
    %v216 = vadd.f32 %v152, 1e-16
    %v217 = vadd.f32 %v155, 1e-16
    %v218 = vadd.f32 %v158, 1e-16
    %v219 = vadd.f32 %v161, 1e-16
    %v220 = vadd.f32 %v164, 1e-16
    %v221 = vadd.f32 %v167, 1e-16
    %v222 = vadd.f32 %v170, 1e-16
    %v223 = vadd.f32 %v173, 1e-16
    %v224 = vadd.f32 %v176, 1e-16
    %v225 = vadd.f32 %v179, 1e-16
    %v226 = vadd.f32 %v182, 1e-16
    %v227 = vadd.f32 %v185, 1e-16
    %v228 = vadd.f32 %v188, 1e-16
    %v229 = vadd.f32 %v191, 1e-16
    %v230 = vadd.f32 %v194, 1e-16
    %v231 = vadd.f32 %v197, 1e-16
    %v232 = vadd.f32 %v200, 1e-16
    %v233 = vrsqrt.pop %v201
    %v234 = vrsqrt.pop %v202
    %v235 = vrsqrt.pop %v203
    %v236 = vrsqrt.pop %v204
    %v237 = vrsqrt.pop %v205
    %v238 = vrsqrt.pop %v206
    %v239 = vrsqrt.pop %v207
    %v240 = vrsqrt.pop %v208
    %v241 = vrsqrt.pop %v209
    %v242 = vrsqrt.pop %v210
    %v243 = vrsqrt.pop %v211
    %v244 = vrsqrt.pop %v212
    %v245 = vrsqrt.pop %v213
    %v246 = vrsqrt.pop %v214
    %v247 = vrsqrt.pop %v215
    %v248 = vrsqrt.pop %v216
    %v249 = vrsqrt.pop %v217
    %v250 = vrsqrt.pop %v218
    %v251 = vrsqrt.pop %v219
    %v252 = vrsqrt.pop %v220
    %v253 = vrsqrt.pop %v221
    %v254 = vrsqrt.pop %v222
    %v255 = vrsqrt.pop %v223
    %v256 = vrsqrt.pop %v224
    %v257 = vrsqrt.pop %v225
    %v258 = vrsqrt.pop %v226
    %v259 = vrsqrt.pop %v227
    %v260 = vrsqrt.pop %v228
    %v261 = vrsqrt.pop %v229
    %v262 = vrsqrt.pop %v230
    %v263 = vrsqrt.pop %v231
    %v264 = vrsqrt.pop %v232
    %v265 = vmul.f32 %v40, %v233
    %v266 = vmul.f32 %v41, %v234
    %v267 = vmul.f32 %v42, %v235
    %v268 = vmul.f32 %v43, %v236
    %v269 = vmul.f32 %v44, %v237
    %v270 = vmul.f32 %v45, %v238
    %v271 = vmul.f32 %v46, %v239
    %v272 = vmul.f32 %v47, %v240
    %v273 = vmul.f32 %v48, %v241
    %v274 = vmul.f32 %v49, %v242
    %v275 = vmul.f32 %v50, %v243
    %v276 = vmul.f32 %v51, %v244
    %v277 = vmul.f32 %v52, %v245
    %v278 = vmul.f32 %v53, %v246
    %v279 = vmul.f32 %v54, %v247
    %v280 = vmul.f32 %v55, %v248
    %v281 = vmul.f32 %v56, %v249
    %v282 = vmul.f32 %v57, %v250
    %v283 = vmul.f32 %v58, %v251
    %v284 = vmul.f32 %v59, %v252
    %v285 = vmul.f32 %v60, %v253
    %v286 = vmul.f32 %v61, %v254
    %v287 = vmul.f32 %v62, %v255
    %v288 = vmul.f32 %v63, %v256
    %v289 = vmul.f32 %v64, %v257
    %v290 = vmul.f32 %v65, %v258
    %v291 = vmul.f32 %v66, %v259
    %v292 = vmul.f32 %v67, %v260
    %v293 = vmul.f32 %v68, %v261
    %v294 = vmul.f32 %v69, %v262
    %v295 = vmul.f32 %v70, %v263
    %v296 = vmul.f32 %v71, %v264
    %v297 = vld [vmem:[#allocation5] sm:$0xff]
    %v298 = vld [vmem:[#allocation5 + $0x8] sm:$0xff]
    %v299 = vld [vmem:[#allocation5 + $0x10] sm:$0xff]
    %v300 = vld [vmem:[#allocation5 + $0x18] sm:$0xff]
    %v301 = vld [vmem:[#allocation5 + $0x20] sm:$0xff]
    %v302 = vld [vmem:[#allocation5 + $0x28] sm:$0xff]
    %v303 = vld [vmem:[#allocation5 + $0x30] sm:$0xff]
    %v304 = vld [vmem:[#allocation5 + $0x38] sm:$0xff]
    %v306 = vsel %vm104, %v265, 0
    %v309 = vsel %vm104, %v266, 0
    %v312 = vsel %vm104, %v267, 0
    %v315 = vsel %vm104, %v268, 0
    %v318 = vsel %vm104, %v269, 0
    %v321 = vsel %vm104, %v270, 0
    %v324 = vsel %vm104, %v271, 0
    %v327 = vsel %vm104, %v272, 0
    %v330 = vsel %vm104, %v273, 0
    %v333 = vsel %vm104, %v274, 0
    %v336 = vsel %vm104, %v275, 0
    %v339 = vsel %vm104, %v276, 0
    %v342 = vsel %vm104, %v277, 0
    %v345 = vsel %vm104, %v278, 0
    %v348 = vsel %vm104, %v279, 0
    %v351 = vsel %vm104, %v280, 0
    %v354 = vsel %vm104, %v281, 0
    %v357 = vsel %vm104, %v282, 0
    %v360 = vsel %vm104, %v283, 0
    %v363 = vsel %vm104, %v284, 0
    %v366 = vsel %vm104, %v285, 0
    %v369 = vsel %vm104, %v286, 0
    %v372 = vsel %vm104, %v287, 0
    %v375 = vsel %vm104, %v288, 0
    %v378 = vsel %vm104, %v289, 0
    %v381 = vsel %vm104, %v290, 0
    %v384 = vsel %vm104, %v291, 0
    %v387 = vsel %vm104, %v292, 0
    %v390 = vsel %vm104, %v293, 0
    %v393 = vsel %vm104, %v294, 0
    %v396 = vsel %vm104, %v295, 0
    %v399 = vsel %vm104, %v296, 0
    %401 = vmatprep.subr.mxu0 0.0
    %402 = vmatpush1.msra.mxu0 %v297
    %403 = vmatprep.subr.mxu0 0.0
    %404 = vmatpush1.msra.mxu0 %v298
    %405 = vmatprep.subr.mxu0 0.0
    %406 = vmatpush1.msra.mxu0 %v299
    %407 = vmatprep.subr.mxu0 0.0
    %408 = vmatpush1.msra.mxu0 %v300
    %409 = vmatprep.subr.mxu0 0.0
    %410 = vmatpush1.msra.mxu0 %v301
    %411 = vmatprep.subr.mxu0 0.0
    %412 = vmatpush1.msra.mxu0 %v302
    %413 = vmatprep.subr.mxu0 0.0
    %414 = vmatpush1.msra.mxu0 %v303
    %415 = vmatprep.subr.mxu0 0.0
    %416 = vmatpush1.msra.mxu0 %v304
    %417 = vmatprep.subr.mxu0 0.0
    %418 = vmatpush1.msra.mxu0 0.0
    %419 = vmatprep.subr.mxu0 0.0
    %420 = vmatpush1.msra.mxu0 0.0
    %421 = vmatprep.subr.mxu0 0.0
    %422 = vmatpush1.msra.mxu0 0.0
    %423 = vmatprep.subr.mxu0 0.0
    %424 = vmatpush1.msra.mxu0 0.0
    %425 = vmatprep.subr.mxu0 0.0
    %426 = vmatpush1.msra.mxu0 0.0
    %427 = vmatprep.subr.mxu0 0.0
    %428 = vmatpush1.msra.mxu0 0.0
    %429 = vmatprep.subr.mxu0 0.0
    %430 = vmatpush1.msra.mxu0 0.0
    %431 = vmatprep.subr.mxu0 0.0
    %432 = vmatpush1.msra.mxu0 0.0
    %433 = vmatprep.subr.mxu0 0.0
    %434 = vmatpush1.msra.mxu0 0.0
    %435 = vmatprep.subr.mxu0 0.0
    %436 = vmatpush1.msra.mxu0 0.0
    %437 = vmatprep.subr.mxu0 0.0
    %438 = vmatpush1.msra.mxu0 0.0
    %439 = vmatprep.subr.mxu0 0.0
    %440 = vmatpush1.msra.mxu0 0.0
    %441 = vmatprep.subr.mxu0 0.0
    %442 = vmatpush1.msra.mxu0 0.0
    %443 = vmatprep.subr.mxu0 0.0
    %444 = vmatpush1.msra.mxu0 0.0
    %445 = vmatprep.subr.mxu0 0.0
    %446 = vmatpush1.msra.mxu0 0.0
    %447 = vmatprep.subr.mxu0 0.0
    %448 = vmatpush1.msra.mxu0 0.0
    %449 = vmatprep.subr.mxu0 0.0
    %450 = vmatpush1.msra.mxu0 0.0
    %451 = vmatprep.subr.mxu0 0.0
    %452 = vmatpush1.msra.mxu0 0.0
    %453 = vmatprep.subr.mxu0 0.0
    %454 = vmatpush1.msra.mxu0 0.0
    %455 = vmatprep.subr.mxu0 0.0
    %456 = vmatpush1.msra.mxu0 0.0
    %457 = vmatprep.subr.mxu0 0.0
    %458 = vmatpush1.msra.mxu0 0.0
    %459 = vmatprep.subr.mxu0 0.0
    %460 = vmatpush1.msra.mxu0 0.0
    %461 = vmatprep.subr.mxu0 0.0
    %462 = vmatpush1.msra.mxu0 0.0
    %463 = vmatprep.subr.mxu0 0.0
    %464 = vmatpush1.msra.mxu0 0.0
    %465 = vmatprep.mubr.f32.mxu0 0.0
    %466 = vmatmul.mubr.f32.gmra.mrb[0].mxu0 %v306
    %v467 = vpop.f32.mrb[0].mxu0
    %v468 = vadd.f32 0.0, %v467
    %v469 = vpop.f32.mrb[0].mxu0
    %470 = vmatprep.mubr.f32.mxu0 0.0
    %471 = vmatmul.mubr.f32.gmra.mrb[0].mxu0 %v309
    %v472 = vpop.f32.mrb[0].mxu0
    %v473 = vadd.f32 0.0, %v472
    %v474 = vpop.f32.mrb[0].mxu0
    %475 = vmatprep.mubr.f32.mxu0 0.0
    %476 = vmatmul.mubr.f32.gmra.mrb[0].mxu0 %v312
    %v477 = vpop.f32.mrb[0].mxu0
    %v478 = vadd.f32 0.0, %v477
    %v479 = vpop.f32.mrb[0].mxu0
    %480 = vmatprep.mubr.f32.mxu0 0.0
    %481 = vmatmul.mubr.f32.gmra.mrb[0].mxu0 %v315
    %v482 = vpop.f32.mrb[0].mxu0
    %v483 = vadd.f32 0.0, %v482
    %v484 = vpop.f32.mrb[0].mxu0
    %485 = vmatprep.mubr.f32.mxu0 0.0
    %486 = vmatmul.mubr.f32.gmra.mrb[0].mxu0 %v318
    %v487 = vpop.f32.mrb[0].mxu0
    %v488 = vadd.f32 0.0, %v487
    %v489 = vpop.f32.mrb[0].mxu0
    %490 = vmatprep.mubr.f32.mxu0 0.0
    %491 = vmatmul.mubr.f32.gmra.mrb[0].mxu0 %v321
    %v492 = vpop.f32.mrb[0].mxu0
    %v493 = vadd.f32 0.0, %v492
    %v494 = vpop.f32.mrb[0].mxu0
    %495 = vmatprep.mubr.f32.mxu0 0.0
    %496 = vmatmul.mubr.f32.gmra.mrb[0].mxu0 %v324
    %v497 = vpop.f32.mrb[0].mxu0
    %v498 = vadd.f32 0.0, %v497
    %v499 = vpop.f32.mrb[0].mxu0
    %500 = vmatprep.mubr.f32.mxu0 0.0
    %501 = vmatmul.mubr.f32.gmra.mrb[0].mxu0 %v327
    %v502 = vpop.f32.mrb[0].mxu0
    %v503 = vadd.f32 0.0, %v502
    %v504 = vpop.f32.mrb[0].mxu0
    %505 = vmatprep.mubr.f32.mxu0 0.0
    %506 = vmatmul.mubr.f32.gmra.mrb[0].mxu0 %v330
    %v507 = vpop.f32.mrb[0].mxu0
    %v508 = vadd.f32 0.0, %v507
    %v509 = vpop.f32.mrb[0].mxu0
    %510 = vmatprep.mubr.f32.mxu0 0.0
    %511 = vmatmul.mubr.f32.gmra.mrb[0].mxu0 %v333
    %v512 = vpop.f32.mrb[0].mxu0
    %v513 = vadd.f32 0.0, %v512
    %v514 = vpop.f32.mrb[0].mxu0
    %515 = vmatprep.mubr.f32.mxu0 0.0
    %516 = vmatmul.mubr.f32.gmra.mrb[0].mxu0 %v336
    %v517 = vpop.f32.mrb[0].mxu0
    %v518 = vadd.f32 0.0, %v517
    %v519 = vpop.f32.mrb[0].mxu0
    %520 = vmatprep.mubr.f32.mxu0 0.0
    %521 = vmatmul.mubr.f32.gmra.mrb[0].mxu0 %v339
    %v522 = vpop.f32.mrb[0].mxu0
    %v523 = vadd.f32 0.0, %v522
    %v524 = vpop.f32.mrb[0].mxu0
    %525 = vmatprep.mubr.f32.mxu0 0.0
    %526 = vmatmul.mubr.f32.gmra.mrb[0].mxu0 %v342
    %v527 = vpop.f32.mrb[0].mxu0
    %v528 = vadd.f32 0.0, %v527
    %v529 = vpop.f32.mrb[0].mxu0
    %530 = vmatprep.mubr.f32.mxu0 0.0
    %531 = vmatmul.mubr.f32.gmra.mrb[0].mxu0 %v345
    %v532 = vpop.f32.mrb[0].mxu0
    %v533 = vadd.f32 0.0, %v532
    %v534 = vpop.f32.mrb[0].mxu0
    %535 = vmatprep.mubr.f32.mxu0 0.0
    %536 = vmatmul.mubr.f32.gmra.mrb[0].mxu0 %v348
    %v537 = vpop.f32.mrb[0].mxu0
    %v538 = vadd.f32 0.0, %v537
    %v539 = vpop.f32.mrb[0].mxu0
    %540 = vmatprep.mubr.f32.mxu0 0.0
    %541 = vmatmul.mubr.f32.gmra.mrb[0].mxu0 %v351
    %v542 = vpop.f32.mrb[0].mxu0
    %v543 = vadd.f32 0.0, %v542
    %v544 = vpop.f32.mrb[0].mxu0
    %545 = vmatprep.mubr.f32.mxu0 0.0
    %546 = vmatmul.mubr.f32.gmra.mrb[0].mxu0 %v354
    %v547 = vpop.f32.mrb[0].mxu0
    %v548 = vadd.f32 0.0, %v547
    %v549 = vpop.f32.mrb[0].mxu0
    %550 = vmatprep.mubr.f32.mxu0 0.0
    %551 = vmatmul.mubr.f32.gmra.mrb[0].mxu0 %v357
    %v552 = vpop.f32.mrb[0].mxu0
    %v553 = vadd.f32 0.0, %v552
    %v554 = vpop.f32.mrb[0].mxu0
    %555 = vmatprep.mubr.f32.mxu0 0.0
    %556 = vmatmul.mubr.f32.gmra.mrb[0].mxu0 %v360
    %v557 = vpop.f32.mrb[0].mxu0
    %v558 = vadd.f32 0.0, %v557
    %v559 = vpop.f32.mrb[0].mxu0
    %560 = vmatprep.mubr.f32.mxu0 0.0
    %561 = vmatmul.mubr.f32.gmra.mrb[0].mxu0 %v363
    %v562 = vpop.f32.mrb[0].mxu0
    %v563 = vadd.f32 0.0, %v562
    %v564 = vpop.f32.mrb[0].mxu0
    %565 = vmatprep.mubr.f32.mxu0 0.0
    %566 = vmatmul.mubr.f32.gmra.mrb[0].mxu0 %v366
    %v567 = vpop.f32.mrb[0].mxu0
    %v568 = vadd.f32 0.0, %v567
    %v569 = vpop.f32.mrb[0].mxu0
    %570 = vmatprep.mubr.f32.mxu0 0.0
    %571 = vmatmul.mubr.f32.gmra.mrb[0].mxu0 %v369
    %v572 = vpop.f32.mrb[0].mxu0
    %v573 = vadd.f32 0.0, %v572
    %v574 = vpop.f32.mrb[0].mxu0
    %575 = vmatprep.mubr.f32.mxu0 0.0
    %576 = vmatmul.mubr.f32.gmra.mrb[0].mxu0 %v372
    %v577 = vpop.f32.mrb[0].mxu0
    %v578 = vadd.f32 0.0, %v577
    %v579 = vpop.f32.mrb[0].mxu0
    %580 = vmatprep.mubr.f32.mxu0 0.0
    %581 = vmatmul.mubr.f32.gmra.mrb[0].mxu0 %v375
    %v582 = vpop.f32.mrb[0].mxu0
    %v583 = vadd.f32 0.0, %v582
    %v584 = vpop.f32.mrb[0].mxu0
    %585 = vmatprep.mubr.f32.mxu0 0.0
    %586 = vmatmul.mubr.f32.gmra.mrb[0].mxu0 %v378
    %v587 = vpop.f32.mrb[0].mxu0
    %v588 = vadd.f32 0.0, %v587
    %v589 = vpop.f32.mrb[0].mxu0
    %590 = vmatprep.mubr.f32.mxu0 0.0
    %591 = vmatmul.mubr.f32.gmra.mrb[0].mxu0 %v381
    %v592 = vpop.f32.mrb[0].mxu0
    %v593 = vadd.f32 0.0, %v592
    %v594 = vpop.f32.mrb[0].mxu0
    %595 = vmatprep.mubr.f32.mxu0 0.0
    %596 = vmatmul.mubr.f32.gmra.mrb[0].mxu0 %v384
    %v597 = vpop.f32.mrb[0].mxu0
    %v598 = vadd.f32 0.0, %v597
    %v599 = vpop.f32.mrb[0].mxu0
    %600 = vmatprep.mubr.f32.mxu0 0.0
    %601 = vmatmul.mubr.f32.gmra.mrb[0].mxu0 %v387
    %v602 = vpop.f32.mrb[0].mxu0
    %v603 = vadd.f32 0.0, %v602
    %v604 = vpop.f32.mrb[0].mxu0
    %605 = vmatprep.mubr.f32.mxu0 0.0
    %606 = vmatmul.mubr.f32.gmra.mrb[0].mxu0 %v390
    %v607 = vpop.f32.mrb[0].mxu0
    %v608 = vadd.f32 0.0, %v607
    %v609 = vpop.f32.mrb[0].mxu0
    %610 = vmatprep.mubr.f32.mxu0 0.0
    %611 = vmatmul.mubr.f32.gmra.mrb[0].mxu0 %v393
    %v612 = vpop.f32.mrb[0].mxu0
    %v613 = vadd.f32 0.0, %v612
    %v614 = vpop.f32.mrb[0].mxu0
    %615 = vmatprep.mubr.f32.mxu0 0.0
    %616 = vmatmul.mubr.f32.gmra.mrb[0].mxu0 %v396
    %v617 = vpop.f32.mrb[0].mxu0
    %v618 = vadd.f32 0.0, %v617
    %v619 = vpop.f32.mrb[0].mxu0
    %620 = vmatprep.mubr.f32.mxu0 0.0
    %621 = vmatmul.mubr.f32.gmra.mrb[0].mxu0 %v399
    %v622 = vpop.f32.mrb[0].mxu0
    %v623 = vadd.f32 0.0, %v622
    %v624 = vpop.f32.mrb[0].mxu0
    %625 = vdwg.mxu0
    %v626 = vmul.f32 %v468, 20.0
    %v627 = vmul.f32 %v473, 20.0
    %v628 = vmul.f32 %v478, 20.0
    %v629 = vmul.f32 %v483, 20.0
    %v630 = vmul.f32 %v488, 20.0
    %v631 = vmul.f32 %v493, 20.0
    %v632 = vmul.f32 %v498, 20.0
    %v633 = vmul.f32 %v503, 20.0
    %v634 = vmul.f32 %v508, 20.0
    %v635 = vmul.f32 %v513, 20.0
    %v636 = vmul.f32 %v518, 20.0
    %v637 = vmul.f32 %v523, 20.0
    %v638 = vmul.f32 %v528, 20.0
    %v639 = vmul.f32 %v533, 20.0
    %v640 = vmul.f32 %v538, 20.0
    %v641 = vmul.f32 %v543, 20.0
    %v642 = vmul.f32 %v548, 20.0
    %v643 = vmul.f32 %v553, 20.0
    %v644 = vmul.f32 %v558, 20.0
    %v645 = vmul.f32 %v563, 20.0
    %v646 = vmul.f32 %v568, 20.0
    %v647 = vmul.f32 %v573, 20.0
    %v648 = vmul.f32 %v578, 20.0
    %v649 = vmul.f32 %v583, 20.0
    %v650 = vmul.f32 %v588, 20.0
    %v651 = vmul.f32 %v593, 20.0
    %v652 = vmul.f32 %v598, 20.0
    %v653 = vmul.f32 %v603, 20.0
    %v654 = vmul.f32 %v608, 20.0
    %v655 = vmul.f32 %v613, 20.0
    %v656 = vmul.f32 %v618, 20.0
    %v657 = vmul.f32 %v623, 20.0
    %v658 = vsub.f32 %v626, 20.0
    %v659 = vsub.f32 %v627, 20.0
    %v660 = vsub.f32 %v628, 20.0
    %v661 = vsub.f32 %v629, 20.0
    %v662 = vsub.f32 %v630, 20.0
    %v663 = vsub.f32 %v631, 20.0
    %v664 = vsub.f32 %v632, 20.0
    %v665 = vsub.f32 %v633, 20.0
    %v666 = vsub.f32 %v634, 20.0
    %v667 = vsub.f32 %v635, 20.0
    %v668 = vsub.f32 %v636, 20.0
    %v669 = vsub.f32 %v637, 20.0
    %v670 = vsub.f32 %v638, 20.0
    %v671 = vsub.f32 %v639, 20.0
    %v672 = vsub.f32 %v640, 20.0
    %v673 = vsub.f32 %v641, 20.0
    %v674 = vsub.f32 %v642, 20.0
    %v675 = vsub.f32 %v643, 20.0
    %v676 = vsub.f32 %v644, 20.0
    %v677 = vsub.f32 %v645, 20.0
    %v678 = vsub.f32 %v646, 20.0
    %v679 = vsub.f32 %v647, 20.0
    %v680 = vsub.f32 %v648, 20.0
    %v681 = vsub.f32 %v649, 20.0
    %v682 = vsub.f32 %v650, 20.0
    %v683 = vsub.f32 %v651, 20.0
    %v684 = vsub.f32 %v652, 20.0
    %v685 = vsub.f32 %v653, 20.0
    %v686 = vsub.f32 %v654, 20.0
    %v687 = vsub.f32 %v655, 20.0
    %v688 = vsub.f32 %v656, 20.0
    %v689 = vsub.f32 %v657, 20.0
    %v690 = vmul.f32 %v658, 1.442695
    %v691 = vpow.pop %v690
    %v692 = vmul.f32 %v659, 1.442695
    %v693 = vpow.pop %v692
    %v694 = vmul.f32 %v660, 1.442695
    %v695 = vpow.pop %v694
    %v696 = vmul.f32 %v661, 1.442695
    %v697 = vpow.pop %v696
    %v698 = vmul.f32 %v662, 1.442695
    %v699 = vpow.pop %v698
    %v700 = vmul.f32 %v663, 1.442695
    %v701 = vpow.pop %v700
    %v702 = vmul.f32 %v664, 1.442695
    %v703 = vpow.pop %v702
    %v704 = vmul.f32 %v665, 1.442695
    %v705 = vpow.pop %v704
    %v706 = vmul.f32 %v666, 1.442695
    %v707 = vpow.pop %v706
    %v708 = vmul.f32 %v667, 1.442695
    %v709 = vpow.pop %v708
    %v710 = vmul.f32 %v668, 1.442695
    %v711 = vpow.pop %v710
    %v712 = vmul.f32 %v669, 1.442695
    %v713 = vpow.pop %v712
    %v714 = vmul.f32 %v670, 1.442695
    %v715 = vpow.pop %v714
    %v716 = vmul.f32 %v671, 1.442695
    %v717 = vpow.pop %v716
    %v718 = vmul.f32 %v672, 1.442695
    %v719 = vpow.pop %v718
    %v720 = vmul.f32 %v673, 1.442695
    %v721 = vpow.pop %v720
    %v722 = vmul.f32 %v674, 1.442695
    %v723 = vpow.pop %v722
    %v724 = vmul.f32 %v675, 1.442695
    %v725 = vpow.pop %v724
    %v726 = vmul.f32 %v676, 1.442695
    %v727 = vpow.pop %v726
    %v728 = vmul.f32 %v677, 1.442695
    %v729 = vpow.pop %v728
    %v730 = vmul.f32 %v678, 1.442695
    %v731 = vpow.pop %v730
    %v732 = vmul.f32 %v679, 1.442695
    %v733 = vpow.pop %v732
    %v734 = vmul.f32 %v680, 1.442695
    %v735 = vpow.pop %v734
    %v736 = vmul.f32 %v681, 1.442695
    %v737 = vpow.pop %v736
    %v738 = vmul.f32 %v682, 1.442695
    %v739 = vpow.pop %v738
    %v740 = vmul.f32 %v683, 1.442695
    %v741 = vpow.pop %v740
    %v742 = vmul.f32 %v684, 1.442695
    %v743 = vpow.pop %v742
    %v744 = vmul.f32 %v685, 1.442695
    %v745 = vpow.pop %v744
    %v746 = vmul.f32 %v686, 1.442695
    %v747 = vpow.pop %v746
    %v748 = vmul.f32 %v687, 1.442695
    %v749 = vpow.pop %v748
    %v750 = vmul.f32 %v688, 1.442695
    %v751 = vpow.pop %v750
    %v752 = vmul.f32 %v689, 1.442695
    %v753 = vpow.pop %v752
    %754 = vadd.xlane.f32.xlu0 %v691
    %v755 = vpop.xlane.xlu0 %754
    %756 = vadd.xlane.f32.xlu0 %v693
    %v757 = vpop.xlane.xlu0 %756
    %758 = vadd.xlane.f32.xlu0 %v695
    %v759 = vpop.xlane.xlu0 %758
    %760 = vadd.xlane.f32.xlu0 %v697
    %v761 = vpop.xlane.xlu0 %760
    %762 = vadd.xlane.f32.xlu0 %v699
    %v763 = vpop.xlane.xlu0 %762
    %764 = vadd.xlane.f32.xlu0 %v701
    %v765 = vpop.xlane.xlu0 %764
    %766 = vadd.xlane.f32.xlu0 %v703
    %v767 = vpop.xlane.xlu0 %766
    %768 = vadd.xlane.f32.xlu0 %v705
    %v769 = vpop.xlane.xlu0 %768
    %770 = vadd.xlane.f32.xlu0 %v707
    %v771 = vpop.xlane.xlu0 %770
    %772 = vadd.xlane.f32.xlu0 %v709
    %v773 = vpop.xlane.xlu0 %772
    %774 = vadd.xlane.f32.xlu0 %v711
    %v775 = vpop.xlane.xlu0 %774
    %776 = vadd.xlane.f32.xlu0 %v713
    %v777 = vpop.xlane.xlu0 %776
    %778 = vadd.xlane.f32.xlu0 %v715
    %v779 = vpop.xlane.xlu0 %778
    %780 = vadd.xlane.f32.xlu0 %v717
    %v781 = vpop.xlane.xlu0 %780
    %782 = vadd.xlane.f32.xlu0 %v719
    %v783 = vpop.xlane.xlu0 %782
    %784 = vadd.xlane.f32.xlu0 %v721
    %v785 = vpop.xlane.xlu0 %784
    %786 = vadd.xlane.f32.xlu0 %v723
    %v787 = vpop.xlane.xlu0 %786
    %788 = vadd.xlane.f32.xlu0 %v725
    %v789 = vpop.xlane.xlu0 %788
    %790 = vadd.xlane.f32.xlu0 %v727
    %v791 = vpop.xlane.xlu0 %790
    %792 = vadd.xlane.f32.xlu0 %v729
    %v793 = vpop.xlane.xlu0 %792
    %794 = vadd.xlane.f32.xlu0 %v731
    %v795 = vpop.xlane.xlu0 %794
    %796 = vadd.xlane.f32.xlu0 %v733
    %v797 = vpop.xlane.xlu0 %796
    %798 = vadd.xlane.f32.xlu0 %v735
    %v799 = vpop.xlane.xlu0 %798
    %800 = vadd.xlane.f32.xlu0 %v737
    %v801 = vpop.xlane.xlu0 %800
    %802 = vadd.xlane.f32.xlu0 %v739
    %v803 = vpop.xlane.xlu0 %802
    %804 = vadd.xlane.f32.xlu0 %v741
    %v805 = vpop.xlane.xlu0 %804
    %806 = vadd.xlane.f32.xlu0 %v743
    %v807 = vpop.xlane.xlu0 %806
    %808 = vadd.xlane.f32.xlu0 %v745
    %v809 = vpop.xlane.xlu0 %808
    %810 = vadd.xlane.f32.xlu0 %v747
    %v811 = vpop.xlane.xlu0 %810
    %812 = vadd.xlane.f32.xlu0 %v749
    %v813 = vpop.xlane.xlu0 %812
    %814 = vadd.xlane.f32.xlu0 %v751
    %v815 = vpop.xlane.xlu0 %814
    %816 = vadd.xlane.f32.xlu0 %v753
    %v817 = vpop.xlane.xlu0 %816
    %v818 = vrcp.pop %v755
    %v819 = vrcp.pop %v757
    %v820 = vrcp.pop %v759
    %v821 = vrcp.pop %v761
    %v822 = vrcp.pop %v763
    %v823 = vrcp.pop %v765
    %v824 = vrcp.pop %v767
    %v825 = vrcp.pop %v769
    %v826 = vrcp.pop %v771
    %v827 = vrcp.pop %v773
    %v828 = vrcp.pop %v775
    %v829 = vrcp.pop %v777
    %v830 = vrcp.pop %v779
    %v831 = vrcp.pop %v781
    %v832 = vrcp.pop %v783
    %v833 = vrcp.pop %v785
    %v834 = vrcp.pop %v787
    %v835 = vrcp.pop %v789
    %v836 = vrcp.pop %v791
    %v837 = vrcp.pop %v793
    %v838 = vrcp.pop %v795
    %v839 = vrcp.pop %v797
    %v840 = vrcp.pop %v799
    %v841 = vrcp.pop %v801
    %v842 = vrcp.pop %v803
    %v843 = vrcp.pop %v805
    %v844 = vrcp.pop %v807
    %v845 = vrcp.pop %v809
    %v846 = vrcp.pop %v811
    %v847 = vrcp.pop %v813
    %v848 = vrcp.pop %v815
    %v849 = vrcp.pop %v817
    %v850 = vmul.f32 %v691, %v818
    %v851 = vmul.f32 %v693, %v819
    %v852 = vmul.f32 %v695, %v820
    %v853 = vmul.f32 %v697, %v821
    %v854 = vmul.f32 %v699, %v822
    %v855 = vmul.f32 %v701, %v823
    %v856 = vmul.f32 %v703, %v824
    %v857 = vmul.f32 %v705, %v825
    %v858 = vmul.f32 %v707, %v826
    %v859 = vmul.f32 %v709, %v827
    %v860 = vmul.f32 %v711, %v828
    %v861 = vmul.f32 %v713, %v829
    %v862 = vmul.f32 %v715, %v830
    %v863 = vmul.f32 %v717, %v831
    %v864 = vmul.f32 %v719, %v832
    %v865 = vmul.f32 %v721, %v833
    %v866 = vmul.f32 %v723, %v834
    %v867 = vmul.f32 %v725, %v835
    %v868 = vmul.f32 %v727, %v836
    %v869 = vmul.f32 %v729, %v837
    %v870 = vmul.f32 %v731, %v838
    %v871 = vmul.f32 %v733, %v839
    %v872 = vmul.f32 %v735, %v840
    %v873 = vmul.f32 %v737, %v841
    %v874 = vmul.f32 %v739, %v842
    %v875 = vmul.f32 %v741, %v843
    %v876 = vmul.f32 %v743, %v844
    %v877 = vmul.f32 %v745, %v845
    %v878 = vmul.f32 %v747, %v846
    %v879 = vmul.f32 %v749, %v847
    %v880 = vmul.f32 %v751, %v848
    %v881 = vmul.f32 %v753, %v849
    %v882 = vmul.f32 %v468, 10.0
    %v883 = vmul.f32 %v473, 10.0
    %v884 = vmul.f32 %v478, 10.0
    %v885 = vmul.f32 %v483, 10.0
    %v886 = vmul.f32 %v488, 10.0
    %v887 = vmul.f32 %v493, 10.0
    %v888 = vmul.f32 %v498, 10.0
    %v889 = vmul.f32 %v503, 10.0
    %v890 = vmul.f32 %v508, 10.0
    %v891 = vmul.f32 %v513, 10.0
    %v892 = vmul.f32 %v518, 10.0
    %v893 = vmul.f32 %v523, 10.0
    %v894 = vmul.f32 %v528, 10.0
    %v895 = vmul.f32 %v533, 10.0
    %v896 = vmul.f32 %v538, 10.0
    %v897 = vmul.f32 %v543, 10.0
    %v898 = vmul.f32 %v548, 10.0
    %v899 = vmul.f32 %v553, 10.0
    %v900 = vmul.f32 %v558, 10.0
    %v901 = vmul.f32 %v563, 10.0
    %v902 = vmul.f32 %v568, 10.0
    %v903 = vmul.f32 %v573, 10.0
    %v904 = vmul.f32 %v578, 10.0
    %v905 = vmul.f32 %v583, 10.0
    %v906 = vmul.f32 %v588, 10.0
    %v907 = vmul.f32 %v593, 10.0
    %v908 = vmul.f32 %v598, 10.0
    %v909 = vmul.f32 %v603, 10.0
    %v910 = vmul.f32 %v608, 10.0
    %v911 = vmul.f32 %v613, 10.0
    %v912 = vmul.f32 %v618, 10.0
    %v913 = vmul.f32 %v623, 10.0
    %v914 = vsub.f32 %v882, 10.0
    %v915 = vsub.f32 %v883, 10.0
    %v916 = vsub.f32 %v884, 10.0
    %v917 = vsub.f32 %v885, 10.0
    %v918 = vsub.f32 %v886, 10.0
    %v919 = vsub.f32 %v887, 10.0
    %v920 = vsub.f32 %v888, 10.0
    %v921 = vsub.f32 %v889, 10.0
    %v922 = vsub.f32 %v890, 10.0
    %v923 = vsub.f32 %v891, 10.0
    %v924 = vsub.f32 %v892, 10.0
    %v925 = vsub.f32 %v893, 10.0
    %v926 = vsub.f32 %v894, 10.0
    %v927 = vsub.f32 %v895, 10.0
    %v928 = vsub.f32 %v896, 10.0
    %v929 = vsub.f32 %v897, 10.0
    %v930 = vsub.f32 %v898, 10.0
    %v931 = vsub.f32 %v899, 10.0
    %v932 = vsub.f32 %v900, 10.0
    %v933 = vsub.f32 %v901, 10.0
    %v934 = vsub.f32 %v902, 10.0
    %v935 = vsub.f32 %v903, 10.0
    %v936 = vsub.f32 %v904, 10.0
    %v937 = vsub.f32 %v905, 10.0
    %v938 = vsub.f32 %v906, 10.0
    %v939 = vsub.f32 %v907, 10.0
    %v940 = vsub.f32 %v908, 10.0
    %v941 = vsub.f32 %v909, 10.0
    %v942 = vsub.f32 %v910, 10.0
    %v943 = vsub.f32 %v911, 10.0
    %v944 = vsub.f32 %v912, 10.0
    %v945 = vsub.f32 %v913, 10.0
    %v946 = vmul.f32 %v914, 1.442695
    %v947 = vpow.pop %v946
    %v948 = vmul.f32 %v915, 1.442695
    %v949 = vpow.pop %v948
    %v950 = vmul.f32 %v916, 1.442695
    %v951 = vpow.pop %v950
    %v952 = vmul.f32 %v917, 1.442695
    %v953 = vpow.pop %v952
    %v954 = vmul.f32 %v918, 1.442695
    %v955 = vpow.pop %v954
    %v956 = vmul.f32 %v919, 1.442695
    %v957 = vpow.pop %v956
    %v958 = vmul.f32 %v920, 1.442695
    %v959 = vpow.pop %v958
    %v960 = vmul.f32 %v921, 1.442695
    %v961 = vpow.pop %v960
    %v962 = vmul.f32 %v922, 1.442695
    %v963 = vpow.pop %v962
    %v964 = vmul.f32 %v923, 1.442695
    %v965 = vpow.pop %v964
    %v966 = vmul.f32 %v924, 1.442695
    %v967 = vpow.pop %v966
    %v968 = vmul.f32 %v925, 1.442695
    %v969 = vpow.pop %v968
    %v970 = vmul.f32 %v926, 1.442695
    %v971 = vpow.pop %v970
    %v972 = vmul.f32 %v927, 1.442695
    %v973 = vpow.pop %v972
    %v974 = vmul.f32 %v928, 1.442695
    %v975 = vpow.pop %v974
    %v976 = vmul.f32 %v929, 1.442695
    %v977 = vpow.pop %v976
    %v978 = vmul.f32 %v930, 1.442695
    %v979 = vpow.pop %v978
    %v980 = vmul.f32 %v931, 1.442695
    %v981 = vpow.pop %v980
    %v982 = vmul.f32 %v932, 1.442695
    %v983 = vpow.pop %v982
    %v984 = vmul.f32 %v933, 1.442695
    %v985 = vpow.pop %v984
    %v986 = vmul.f32 %v934, 1.442695
    %v987 = vpow.pop %v986
    %v988 = vmul.f32 %v935, 1.442695
    %v989 = vpow.pop %v988
    %v990 = vmul.f32 %v936, 1.442695
    %v991 = vpow.pop %v990
    %v992 = vmul.f32 %v937, 1.442695
    %v993 = vpow.pop %v992
    %v994 = vmul.f32 %v938, 1.442695
    %v995 = vpow.pop %v994
    %v996 = vmul.f32 %v939, 1.442695
    %v997 = vpow.pop %v996
    %v998 = vmul.f32 %v940, 1.442695
    %v999 = vpow.pop %v998
    %v1000 = vmul.f32 %v941, 1.442695
    %v1001 = vpow.pop %v1000
    %v1002 = vmul.f32 %v942, 1.442695
    %v1003 = vpow.pop %v1002
    %v1004 = vmul.f32 %v943, 1.442695
    %v1005 = vpow.pop %v1004
    %v1006 = vmul.f32 %v944, 1.442695
    %v1007 = vpow.pop %v1006
    %v1008 = vmul.f32 %v945, 1.442695
    %v1009 = vpow.pop %v1008
    %v1010 = vadd.f32 %v947, %v949
    %v1011 = vadd.f32 %v1010, %v951
    %v1012 = vadd.f32 %v1011, %v953
    %v1013 = vadd.f32 %v1012, %v955
    %v1014 = vadd.f32 %v1013, %v957
    %v1015 = vadd.f32 %v1014, %v959
    %v1016 = vadd.f32 %v1015, %v961
    %v1017 = vrot.slane %v1016, 4
    %v1018 = vadd.f32 %v1016, %v1017
    %v1019 = vrot.slane %v1018, 2
    %v1020 = vadd.f32 %v1018, %v1019
    %v1021 = vrot.slane %v1020, 1
    %v1022 = vadd.f32 %v1020, %v1021
    %v1023 = vadd.f32 %v963, %v965
    %v1024 = vadd.f32 %v1023, %v967
    %v1025 = vadd.f32 %v1024, %v969
    %v1026 = vadd.f32 %v1025, %v971
    %v1027 = vadd.f32 %v1026, %v973
    %v1028 = vadd.f32 %v1027, %v975
    %v1029 = vadd.f32 %v1028, %v977
    %v1030 = vrot.slane %v1029, 4
    %v1031 = vadd.f32 %v1029, %v1030
    %v1032 = vrot.slane %v1031, 2
    %v1033 = vadd.f32 %v1031, %v1032
    %v1034 = vrot.slane %v1033, 1
    %v1035 = vadd.f32 %v1033, %v1034
    %v1036 = vadd.f32 %v979, %v981
    %v1037 = vadd.f32 %v1036, %v983
    %v1038 = vadd.f32 %v1037, %v985
    %v1039 = vadd.f32 %v1038, %v987
    %v1040 = vadd.f32 %v1039, %v989
    %v1041 = vadd.f32 %v1040, %v991
    %v1042 = vadd.f32 %v1041, %v993
    %v1043 = vrot.slane %v1042, 4
    %v1044 = vadd.f32 %v1042, %v1043
    %v1045 = vrot.slane %v1044, 2
    %v1046 = vadd.f32 %v1044, %v1045
    %v1047 = vrot.slane %v1046, 1
    %v1048 = vadd.f32 %v1046, %v1047
    %v1049 = vadd.f32 %v995, %v997
    %v1050 = vadd.f32 %v1049, %v999
    %v1051 = vadd.f32 %v1050, %v1001
    %v1052 = vadd.f32 %v1051, %v1003
    %v1053 = vadd.f32 %v1052, %v1005
    %v1054 = vadd.f32 %v1053, %v1007
    %v1055 = vadd.f32 %v1054, %v1009
    %v1056 = vrot.slane %v1055, 4
    %v1057 = vadd.f32 %v1055, %v1056
    %v1058 = vrot.slane %v1057, 2
    %v1059 = vadd.f32 %v1057, %v1058
    %v1060 = vrot.slane %v1059, 1
    %v1061 = vadd.f32 %v1059, %v1060
    %v1062 = vrcp.pop %v1022
    %v1063 = vrcp.pop %v1035
    %v1064 = vrcp.pop %v1048
    %v1065 = vrcp.pop %v1061
    %v1066 = vmul.f32 %v947, %v1062
    %v1067 = vmul.f32 %v949, %v1062
    %v1068 = vmul.f32 %v951, %v1062
    %v1069 = vmul.f32 %v953, %v1062
    %v1070 = vmul.f32 %v955, %v1062
    %v1071 = vmul.f32 %v957, %v1062
    %v1072 = vmul.f32 %v959, %v1062
    %v1073 = vmul.f32 %v961, %v1062
    %v1074 = vmul.f32 %v963, %v1063
    %v1075 = vmul.f32 %v965, %v1063
    %v1076 = vmul.f32 %v967, %v1063
    %v1077 = vmul.f32 %v969, %v1063
    %v1078 = vmul.f32 %v971, %v1063
    %v1079 = vmul.f32 %v973, %v1063
    %v1080 = vmul.f32 %v975, %v1063
    %v1081 = vmul.f32 %v977, %v1063
    %v1082 = vmul.f32 %v979, %v1064
    %v1083 = vmul.f32 %v981, %v1064
    %v1084 = vmul.f32 %v983, %v1064
    %v1085 = vmul.f32 %v985, %v1064
    %v1086 = vmul.f32 %v987, %v1064
    %v1087 = vmul.f32 %v989, %v1064
    %v1088 = vmul.f32 %v991, %v1064
    %v1089 = vmul.f32 %v993, %v1064
    %v1090 = vmul.f32 %v995, %v1065
    %v1091 = vmul.f32 %v997, %v1065
    %v1092 = vmul.f32 %v999, %v1065
    %v1093 = vmul.f32 %v1001, %v1065
    %v1094 = vmul.f32 %v1003, %v1065
    %v1095 = vmul.f32 %v1005, %v1065
    %v1096 = vmul.f32 %v1007, %v1065
    %v1097 = vmul.f32 %v1009, %v1065
    %1098 = vmatprep.subr.mxu0 0.0
    %1099 = vmatpush1.xpose.msra.mxu0 %v1066
    %1100 = vmatprep.subr.mxu0 0.0
    %1101 = vmatpush1.xpose.msra.mxu0 %v1067
    %1102 = vmatprep.subr.mxu0 0.0
    %1103 = vmatpush1.xpose.msra.mxu0 %v1068
    %1104 = vmatprep.subr.mxu0 0.0
    %1105 = vmatpush1.xpose.msra.mxu0 %v1069
    %1106 = vmatprep.subr.mxu0 0.0
    %1107 = vmatpush1.xpose.msra.mxu0 %v1070
    %1108 = vmatprep.subr.mxu0 0.0
    %1109 = vmatpush1.xpose.msra.mxu0 %v1071
    %1110 = vmatprep.subr.mxu0 0.0
    %1111 = vmatpush1.xpose.msra.mxu0 %v1072
    %1112 = vmatprep.subr.mxu0 0.0
    %1113 = vmatpush1.xpose.msra.mxu0 %v1073
    %1114 = vmatprep.subr.mxu0 0.0
    %1115 = vmatpush1.xpose.msra.mxu0 0.0
    %1116 = vmatprep.subr.mxu0 0.0
    %1117 = vmatpush1.xpose.msra.mxu0 0.0
    %1118 = vmatprep.subr.mxu0 0.0
    %1119 = vmatpush1.xpose.msra.mxu0 0.0
    %1120 = vmatprep.subr.mxu0 0.0
    %1121 = vmatpush1.xpose.msra.mxu0 0.0
    %1122 = vmatprep.subr.mxu0 0.0
    %1123 = vmatpush1.xpose.msra.mxu0 0.0
    %1124 = vmatprep.subr.mxu0 0.0
    %1125 = vmatpush1.xpose.msra.mxu0 0.0
    %1126 = vmatprep.subr.mxu0 0.0
    %1127 = vmatpush1.xpose.msra.mxu0 0.0
    %1128 = vmatprep.subr.mxu0 0.0
    %1129 = vmatpush1.xpose.msra.mxu0 0.0
    %1130 = vmatprep.subr.mxu0 0.0
    %1131 = vmatpush1.xpose.msra.mxu0 0.0
    %1132 = vmatprep.subr.mxu0 0.0
    %1133 = vmatpush1.xpose.msra.mxu0 0.0
    %1134 = vmatprep.subr.mxu0 0.0
    %1135 = vmatpush1.xpose.msra.mxu0 0.0
    %1136 = vmatprep.subr.mxu0 0.0
    %1137 = vmatpush1.xpose.msra.mxu0 0.0
    %1138 = vmatprep.subr.mxu0 0.0
    %1139 = vmatpush1.xpose.msra.mxu0 0.0
    %1140 = vmatprep.subr.mxu0 0.0
    %1141 = vmatpush1.xpose.msra.mxu0 0.0
    %1142 = vmatprep.subr.mxu0 0.0
    %1143 = vmatpush1.xpose.msra.mxu0 0.0
    %1144 = vmatprep.subr.mxu0 0.0
    %1145 = vmatpush1.xpose.msra.mxu0 0.0
    %1146 = vmatprep.subr.mxu0 0.0
    %1147 = vmatpush1.xpose.msra.mxu0 0.0
    %1148 = vmatprep.subr.mxu0 0.0
    %1149 = vmatpush1.xpose.msra.mxu0 0.0
    %1150 = vmatprep.subr.mxu0 0.0
    %1151 = vmatpush1.xpose.msra.mxu0 0.0
    %1152 = vmatprep.subr.mxu0 0.0
    %1153 = vmatpush1.xpose.msra.mxu0 0.0
    %1154 = vmatprep.subr.mxu0 0.0
    %1155 = vmatpush1.xpose.msra.mxu0 0.0
    %1156 = vmatprep.subr.mxu0 0.0
    %1157 = vmatpush1.xpose.msra.mxu0 0.0
    %1158 = vmatprep.subr.mxu0 0.0
    %1159 = vmatpush1.xpose.msra.mxu0 0.0
    %1160 = vmatprep.subr.mxu0 0.0
    %1161 = vmatpush1.xpose.msra.mxu0 0.0
    %1162 = vmatprep.mubr.f32.mxu0 0.0
    %1163 = vmatmul.mubr.f32.gmra.mrb[0].mxu0 %v850
    %v1164 = vpop.f32.mrb[0].mxu0
    %v1165 = vadd.f32 0.0, %v1164
    %v1166 = vpop.f32.mrb[0].mxu0
    %1167 = vmatprep.mubr.f32.mxu0 0.0
    %1168 = vmatmul.mubr.f32.gmra.mrb[0].mxu0 %v851
    %v1169 = vpop.f32.mrb[0].mxu0
    %v1170 = vadd.f32 0.0, %v1169
    %v1171 = vpop.f32.mrb[0].mxu0
    %1172 = vmatprep.mubr.f32.mxu0 0.0
    %1173 = vmatmul.mubr.f32.gmra.mrb[0].mxu0 %v852
    %v1174 = vpop.f32.mrb[0].mxu0
    %v1175 = vadd.f32 0.0, %v1174
    %v1176 = vpop.f32.mrb[0].mxu0
    %1177 = vmatprep.mubr.f32.mxu0 0.0
    %1178 = vmatmul.mubr.f32.gmra.mrb[0].mxu0 %v853
    %v1179 = vpop.f32.mrb[0].mxu0
    %v1180 = vadd.f32 0.0, %v1179
    %v1181 = vpop.f32.mrb[0].mxu0
    %1182 = vmatprep.mubr.f32.mxu0 0.0
    %1183 = vmatmul.mubr.f32.gmra.mrb[0].mxu0 %v854
    %v1184 = vpop.f32.mrb[0].mxu0
    %v1185 = vadd.f32 0.0, %v1184
    %v1186 = vpop.f32.mrb[0].mxu0
    %1187 = vmatprep.mubr.f32.mxu0 0.0
    %1188 = vmatmul.mubr.f32.gmra.mrb[0].mxu0 %v855
    %v1189 = vpop.f32.mrb[0].mxu0
    %v1190 = vadd.f32 0.0, %v1189
    %v1191 = vpop.f32.mrb[0].mxu0
    %1192 = vmatprep.mubr.f32.mxu0 0.0
    %1193 = vmatmul.mubr.f32.gmra.mrb[0].mxu0 %v856
    %v1194 = vpop.f32.mrb[0].mxu0
    %v1195 = vadd.f32 0.0, %v1194
    %v1196 = vpop.f32.mrb[0].mxu0
    %1197 = vmatprep.mubr.f32.mxu0 0.0
    %1198 = vmatmul.mubr.f32.gmra.mrb[0].mxu0 %v857
    %v1199 = vpop.f32.mrb[0].mxu0
    %v1200 = vadd.f32 0.0, %v1199
    %v1201 = vpop.f32.mrb[0].mxu0
    %1202 = vdwg.mxu0
    %1203 = vmatprep.subr.mxu0 0.0
    %1204 = vmatpush1.xpose.msra.mxu0 %v1074
    %1205 = vmatprep.subr.mxu0 0.0
    %1206 = vmatpush1.xpose.msra.mxu0 %v1075
    %1207 = vmatprep.subr.mxu0 0.0
    %1208 = vmatpush1.xpose.msra.mxu0 %v1076
    %1209 = vmatprep.subr.mxu0 0.0
    %1210 = vmatpush1.xpose.msra.mxu0 %v1077
    %1211 = vmatprep.subr.mxu0 0.0
    %1212 = vmatpush1.xpose.msra.mxu0 %v1078
    %1213 = vmatprep.subr.mxu0 0.0
    %1214 = vmatpush1.xpose.msra.mxu0 %v1079
    %1215 = vmatprep.subr.mxu0 0.0
    %1216 = vmatpush1.xpose.msra.mxu0 %v1080
    %1217 = vmatprep.subr.mxu0 0.0
    %1218 = vmatpush1.xpose.msra.mxu0 %v1081
    %1219 = vmatprep.subr.mxu0 0.0
    %1220 = vmatpush1.xpose.msra.mxu0 0.0
    %1221 = vmatprep.subr.mxu0 0.0
    %1222 = vmatpush1.xpose.msra.mxu0 0.0
    %1223 = vmatprep.subr.mxu0 0.0
    %1224 = vmatpush1.xpose.msra.mxu0 0.0
    %1225 = vmatprep.subr.mxu0 0.0
    %1226 = vmatpush1.xpose.msra.mxu0 0.0
    %1227 = vmatprep.subr.mxu0 0.0
    %1228 = vmatpush1.xpose.msra.mxu0 0.0
    %1229 = vmatprep.subr.mxu0 0.0
    %1230 = vmatpush1.xpose.msra.mxu0 0.0
    %1231 = vmatprep.subr.mxu0 0.0
    %1232 = vmatpush1.xpose.msra.mxu0 0.0
    %1233 = vmatprep.subr.mxu0 0.0
    %1234 = vmatpush1.xpose.msra.mxu0 0.0
    %1235 = vmatprep.subr.mxu0 0.0
    %1236 = vmatpush1.xpose.msra.mxu0 0.0
    %1237 = vmatprep.subr.mxu0 0.0
    %1238 = vmatpush1.xpose.msra.mxu0 0.0
    %1239 = vmatprep.subr.mxu0 0.0
    %1240 = vmatpush1.xpose.msra.mxu0 0.0
    %1241 = vmatprep.subr.mxu0 0.0
    %1242 = vmatpush1.xpose.msra.mxu0 0.0
    %1243 = vmatprep.subr.mxu0 0.0
    %1244 = vmatpush1.xpose.msra.mxu0 0.0
    %1245 = vmatprep.subr.mxu0 0.0
    %1246 = vmatpush1.xpose.msra.mxu0 0.0
    %1247 = vmatprep.subr.mxu0 0.0
    %1248 = vmatpush1.xpose.msra.mxu0 0.0
    %1249 = vmatprep.subr.mxu0 0.0
    %1250 = vmatpush1.xpose.msra.mxu0 0.0
    %1251 = vmatprep.subr.mxu0 0.0
    %1252 = vmatpush1.xpose.msra.mxu0 0.0
    %1253 = vmatprep.subr.mxu0 0.0
    %1254 = vmatpush1.xpose.msra.mxu0 0.0
    %1255 = vmatprep.subr.mxu0 0.0
    %1256 = vmatpush1.xpose.msra.mxu0 0.0
    %1257 = vmatprep.subr.mxu0 0.0
    %1258 = vmatpush1.xpose.msra.mxu0 0.0
    %1259 = vmatprep.subr.mxu0 0.0
    %1260 = vmatpush1.xpose.msra.mxu0 0.0
    %1261 = vmatprep.subr.mxu0 0.0
    %1262 = vmatpush1.xpose.msra.mxu0 0.0
    %1263 = vmatprep.subr.mxu0 0.0
    %1264 = vmatpush1.xpose.msra.mxu0 0.0
    %1265 = vmatprep.subr.mxu0 0.0
    %1266 = vmatpush1.xpose.msra.mxu0 0.0
    %1267 = vmatprep.mubr.f32.mxu0 0.0
    %1268 = vmatmul.mubr.f32.gmra.mrb[0].mxu0 %v858
    %v1269 = vpop.f32.mrb[0].mxu0
    %v1270 = vadd.f32 0.0, %v1269
    %v1271 = vpop.f32.mrb[0].mxu0
    %1272 = vmatprep.mubr.f32.mxu0 0.0
    %1273 = vmatmul.mubr.f32.gmra.mrb[0].mxu0 %v859
    %v1274 = vpop.f32.mrb[0].mxu0
    %v1275 = vadd.f32 0.0, %v1274
    %v1276 = vpop.f32.mrb[0].mxu0
    %1277 = vmatprep.mubr.f32.mxu0 0.0
    %1278 = vmatmul.mubr.f32.gmra.mrb[0].mxu0 %v860
    %v1279 = vpop.f32.mrb[0].mxu0
    %v1280 = vadd.f32 0.0, %v1279
    %v1281 = vpop.f32.mrb[0].mxu0
    %1282 = vmatprep.mubr.f32.mxu0 0.0
    %1283 = vmatmul.mubr.f32.gmra.mrb[0].mxu0 %v861
    %v1284 = vpop.f32.mrb[0].mxu0
    %v1285 = vadd.f32 0.0, %v1284
    %v1286 = vpop.f32.mrb[0].mxu0
    %1287 = vmatprep.mubr.f32.mxu0 0.0
    %1288 = vmatmul.mubr.f32.gmra.mrb[0].mxu0 %v862
    %v1289 = vpop.f32.mrb[0].mxu0
    %v1290 = vadd.f32 0.0, %v1289
    %v1291 = vpop.f32.mrb[0].mxu0
    %1292 = vmatprep.mubr.f32.mxu0 0.0
    %1293 = vmatmul.mubr.f32.gmra.mrb[0].mxu0 %v863
    %v1294 = vpop.f32.mrb[0].mxu0
    %v1295 = vadd.f32 0.0, %v1294
    %v1296 = vpop.f32.mrb[0].mxu0
    %1297 = vmatprep.mubr.f32.mxu0 0.0
    %1298 = vmatmul.mubr.f32.gmra.mrb[0].mxu0 %v864
    %v1299 = vpop.f32.mrb[0].mxu0
    %v1300 = vadd.f32 0.0, %v1299
    %v1301 = vpop.f32.mrb[0].mxu0
    %1302 = vmatprep.mubr.f32.mxu0 0.0
    %1303 = vmatmul.mubr.f32.gmra.mrb[0].mxu0 %v865
    %v1304 = vpop.f32.mrb[0].mxu0
    %v1305 = vadd.f32 0.0, %v1304
    %v1306 = vpop.f32.mrb[0].mxu0
    %1307 = vdwg.mxu0
    %1308 = vmatprep.subr.mxu0 0.0
    %1309 = vmatpush1.xpose.msra.mxu0 %v1082
    %1310 = vmatprep.subr.mxu0 0.0
    %1311 = vmatpush1.xpose.msra.mxu0 %v1083
    %1312 = vmatprep.subr.mxu0 0.0
    %1313 = vmatpush1.xpose.msra.mxu0 %v1084
    %1314 = vmatprep.subr.mxu0 0.0
    %1315 = vmatpush1.xpose.msra.mxu0 %v1085
    %1316 = vmatprep.subr.mxu0 0.0
    %1317 = vmatpush1.xpose.msra.mxu0 %v1086
    %1318 = vmatprep.subr.mxu0 0.0
    %1319 = vmatpush1.xpose.msra.mxu0 %v1087
    %1320 = vmatprep.subr.mxu0 0.0
    %1321 = vmatpush1.xpose.msra.mxu0 %v1088
    %1322 = vmatprep.subr.mxu0 0.0
    %1323 = vmatpush1.xpose.msra.mxu0 %v1089
    %1324 = vmatprep.subr.mxu0 0.0
    %1325 = vmatpush1.xpose.msra.mxu0 0.0
    %1326 = vmatprep.subr.mxu0 0.0
    %1327 = vmatpush1.xpose.msra.mxu0 0.0
    %1328 = vmatprep.subr.mxu0 0.0
    %1329 = vmatpush1.xpose.msra.mxu0 0.0
    %1330 = vmatprep.subr.mxu0 0.0
    %1331 = vmatpush1.xpose.msra.mxu0 0.0
    %1332 = vmatprep.subr.mxu0 0.0
    %1333 = vmatpush1.xpose.msra.mxu0 0.0
    %1334 = vmatprep.subr.mxu0 0.0
    %1335 = vmatpush1.xpose.msra.mxu0 0.0
    %1336 = vmatprep.subr.mxu0 0.0
    %1337 = vmatpush1.xpose.msra.mxu0 0.0
    %1338 = vmatprep.subr.mxu0 0.0
    %1339 = vmatpush1.xpose.msra.mxu0 0.0
    %1340 = vmatprep.subr.mxu0 0.0
    %1341 = vmatpush1.xpose.msra.mxu0 0.0
    %1342 = vmatprep.subr.mxu0 0.0
    %1343 = vmatpush1.xpose.msra.mxu0 0.0
    %1344 = vmatprep.subr.mxu0 0.0
    %1345 = vmatpush1.xpose.msra.mxu0 0.0
    %1346 = vmatprep.subr.mxu0 0.0
    %1347 = vmatpush1.xpose.msra.mxu0 0.0
    %1348 = vmatprep.subr.mxu0 0.0
    %1349 = vmatpush1.xpose.msra.mxu0 0.0
    %1350 = vmatprep.subr.mxu0 0.0
    %1351 = vmatpush1.xpose.msra.mxu0 0.0
    %1352 = vmatprep.subr.mxu0 0.0
    %1353 = vmatpush1.xpose.msra.mxu0 0.0
    %1354 = vmatprep.subr.mxu0 0.0
    %1355 = vmatpush1.xpose.msra.mxu0 0.0
    %1356 = vmatprep.subr.mxu0 0.0
    %1357 = vmatpush1.xpose.msra.mxu0 0.0
    %1358 = vmatprep.subr.mxu0 0.0
    %1359 = vmatpush1.xpose.msra.mxu0 0.0
    %1360 = vmatprep.subr.mxu0 0.0
    %1361 = vmatpush1.xpose.msra.mxu0 0.0
    %1362 = vmatprep.subr.mxu0 0.0
    %1363 = vmatpush1.xpose.msra.mxu0 0.0
    %1364 = vmatprep.subr.mxu0 0.0
    %1365 = vmatpush1.xpose.msra.mxu0 0.0
    %1366 = vmatprep.subr.mxu0 0.0
    %1367 = vmatpush1.xpose.msra.mxu0 0.0
    %1368 = vmatprep.subr.mxu0 0.0
    %1369 = vmatpush1.xpose.msra.mxu0 0.0
    %1370 = vmatprep.subr.mxu0 0.0
    %1371 = vmatpush1.xpose.msra.mxu0 0.0
    %1372 = vmatprep.mubr.f32.mxu0 0.0
    %1373 = vmatmul.mubr.f32.gmra.mrb[0].mxu0 %v866
    %v1374 = vpop.f32.mrb[0].mxu0
    %v1375 = vadd.f32 0.0, %v1374
    %v1376 = vpop.f32.mrb[0].mxu0
    %1377 = vmatprep.mubr.f32.mxu0 0.0
    %1378 = vmatmul.mubr.f32.gmra.mrb[0].mxu0 %v867
    %v1379 = vpop.f32.mrb[0].mxu0
    %v1380 = vadd.f32 0.0, %v1379
    %v1381 = vpop.f32.mrb[0].mxu0
    %1382 = vmatprep.mubr.f32.mxu0 0.0
    %1383 = vmatmul.mubr.f32.gmra.mrb[0].mxu0 %v868
    %v1384 = vpop.f32.mrb[0].mxu0
    %v1385 = vadd.f32 0.0, %v1384
    %v1386 = vpop.f32.mrb[0].mxu0
    %1387 = vmatprep.mubr.f32.mxu0 0.0
    %1388 = vmatmul.mubr.f32.gmra.mrb[0].mxu0 %v869
    %v1389 = vpop.f32.mrb[0].mxu0
    %v1390 = vadd.f32 0.0, %v1389
    %v1391 = vpop.f32.mrb[0].mxu0
    %1392 = vmatprep.mubr.f32.mxu0 0.0
    %1393 = vmatmul.mubr.f32.gmra.mrb[0].mxu0 %v870
    %v1394 = vpop.f32.mrb[0].mxu0
    %v1395 = vadd.f32 0.0, %v1394
    %v1396 = vpop.f32.mrb[0].mxu0
    %1397 = vmatprep.mubr.f32.mxu0 0.0
    %1398 = vmatmul.mubr.f32.gmra.mrb[0].mxu0 %v871
    %v1399 = vpop.f32.mrb[0].mxu0
    %v1400 = vadd.f32 0.0, %v1399
    %v1401 = vpop.f32.mrb[0].mxu0
    %1402 = vmatprep.mubr.f32.mxu0 0.0
    %1403 = vmatmul.mubr.f32.gmra.mrb[0].mxu0 %v872
    %v1404 = vpop.f32.mrb[0].mxu0
    %v1405 = vadd.f32 0.0, %v1404
    %v1406 = vpop.f32.mrb[0].mxu0
    %1407 = vmatprep.mubr.f32.mxu0 0.0
    %1408 = vmatmul.mubr.f32.gmra.mrb[0].mxu0 %v873
    %v1409 = vpop.f32.mrb[0].mxu0
    %v1410 = vadd.f32 0.0, %v1409
    %v1411 = vpop.f32.mrb[0].mxu0
    %1412 = vdwg.mxu0
    %1413 = vmatprep.subr.mxu0 0.0
    %1414 = vmatpush1.xpose.msra.mxu0 %v1090
    %1415 = vmatprep.subr.mxu0 0.0
    %1416 = vmatpush1.xpose.msra.mxu0 %v1091
    %1417 = vmatprep.subr.mxu0 0.0
    %1418 = vmatpush1.xpose.msra.mxu0 %v1092
    %1419 = vmatprep.subr.mxu0 0.0
    %1420 = vmatpush1.xpose.msra.mxu0 %v1093
    %1421 = vmatprep.subr.mxu0 0.0
    %1422 = vmatpush1.xpose.msra.mxu0 %v1094
    %1423 = vmatprep.subr.mxu0 0.0
    %1424 = vmatpush1.xpose.msra.mxu0 %v1095
    %1425 = vmatprep.subr.mxu0 0.0
    %1426 = vmatpush1.xpose.msra.mxu0 %v1096
    %1427 = vmatprep.subr.mxu0 0.0
    %1428 = vmatpush1.xpose.msra.mxu0 %v1097
    %1429 = vmatprep.subr.mxu0 0.0
    %1430 = vmatpush1.xpose.msra.mxu0 0.0
    %1431 = vmatprep.subr.mxu0 0.0
    %1432 = vmatpush1.xpose.msra.mxu0 0.0
    %1433 = vmatprep.subr.mxu0 0.0
    %1434 = vmatpush1.xpose.msra.mxu0 0.0
    %1435 = vmatprep.subr.mxu0 0.0
    %1436 = vmatpush1.xpose.msra.mxu0 0.0
    %1437 = vmatprep.subr.mxu0 0.0
    %1438 = vmatpush1.xpose.msra.mxu0 0.0
    %1439 = vmatprep.subr.mxu0 0.0
    %1440 = vmatpush1.xpose.msra.mxu0 0.0
    %1441 = vmatprep.subr.mxu0 0.0
    %1442 = vmatpush1.xpose.msra.mxu0 0.0
    %1443 = vmatprep.subr.mxu0 0.0
    %1444 = vmatpush1.xpose.msra.mxu0 0.0
    %1445 = vmatprep.subr.mxu0 0.0
    %1446 = vmatpush1.xpose.msra.mxu0 0.0
    %1447 = vmatprep.subr.mxu0 0.0
    %1448 = vmatpush1.xpose.msra.mxu0 0.0
    %1449 = vmatprep.subr.mxu0 0.0
    %1450 = vmatpush1.xpose.msra.mxu0 0.0
    %1451 = vmatprep.subr.mxu0 0.0
    %1452 = vmatpush1.xpose.msra.mxu0 0.0
    %1453 = vmatprep.subr.mxu0 0.0
    %1454 = vmatpush1.xpose.msra.mxu0 0.0
    %1455 = vmatprep.subr.mxu0 0.0
    %1456 = vmatpush1.xpose.msra.mxu0 0.0
    %1457 = vmatprep.subr.mxu0 0.0
    %1458 = vmatpush1.xpose.msra.mxu0 0.0
    %1459 = vmatprep.subr.mxu0 0.0
    %1460 = vmatpush1.xpose.msra.mxu0 0.0
    %1461 = vmatprep.subr.mxu0 0.0
    %1462 = vmatpush1.xpose.msra.mxu0 0.0
    %1463 = vmatprep.subr.mxu0 0.0
    %1464 = vmatpush1.xpose.msra.mxu0 0.0
    %1465 = vmatprep.subr.mxu0 0.0
    %1466 = vmatpush1.xpose.msra.mxu0 0.0
    %1467 = vmatprep.subr.mxu0 0.0
    %1468 = vmatpush1.xpose.msra.mxu0 0.0
    %1469 = vmatprep.subr.mxu0 0.0
    %1470 = vmatpush1.xpose.msra.mxu0 0.0
    %1471 = vmatprep.subr.mxu0 0.0
    %1472 = vmatpush1.xpose.msra.mxu0 0.0
    %1473 = vmatprep.subr.mxu0 0.0
    %1474 = vmatpush1.xpose.msra.mxu0 0.0
    %1475 = vmatprep.subr.mxu0 0.0
    %1476 = vmatpush1.xpose.msra.mxu0 0.0
    %1477 = vmatprep.mubr.f32.mxu0 0.0
    %1478 = vmatmul.mubr.f32.gmra.mrb[0].mxu0 %v874
    %v1479 = vpop.f32.mrb[0].mxu0
    %v1480 = vadd.f32 0.0, %v1479
    %v1481 = vpop.f32.mrb[0].mxu0
    %1482 = vmatprep.mubr.f32.mxu0 0.0
    %1483 = vmatmul.mubr.f32.gmra.mrb[0].mxu0 %v875
    %v1484 = vpop.f32.mrb[0].mxu0
    %v1485 = vadd.f32 0.0, %v1484
    %v1486 = vpop.f32.mrb[0].mxu0
    %1487 = vmatprep.mubr.f32.mxu0 0.0
    %1488 = vmatmul.mubr.f32.gmra.mrb[0].mxu0 %v876
    %v1489 = vpop.f32.mrb[0].mxu0
    %v1490 = vadd.f32 0.0, %v1489
    %v1491 = vpop.f32.mrb[0].mxu0
    %1492 = vmatprep.mubr.f32.mxu0 0.0
    %1493 = vmatmul.mubr.f32.gmra.mrb[0].mxu0 %v877
    %v1494 = vpop.f32.mrb[0].mxu0
    %v1495 = vadd.f32 0.0, %v1494
    %v1496 = vpop.f32.mrb[0].mxu0
    %1497 = vmatprep.mubr.f32.mxu0 0.0
    %1498 = vmatmul.mubr.f32.gmra.mrb[0].mxu0 %v878
    %v1499 = vpop.f32.mrb[0].mxu0
    %v1500 = vadd.f32 0.0, %v1499
    %v1501 = vpop.f32.mrb[0].mxu0
    %1502 = vmatprep.mubr.f32.mxu0 0.0
    %1503 = vmatmul.mubr.f32.gmra.mrb[0].mxu0 %v879
    %v1504 = vpop.f32.mrb[0].mxu0
    %v1505 = vadd.f32 0.0, %v1504
    %v1506 = vpop.f32.mrb[0].mxu0
    %1507 = vmatprep.mubr.f32.mxu0 0.0
    %1508 = vmatmul.mubr.f32.gmra.mrb[0].mxu0 %v880
    %v1509 = vpop.f32.mrb[0].mxu0
    %v1510 = vadd.f32 0.0, %v1509
    %v1511 = vpop.f32.mrb[0].mxu0
    %1512 = vmatprep.mubr.f32.mxu0 0.0
    %1513 = vmatmul.mubr.f32.gmra.mrb[0].mxu0 %v881
    %v1514 = vpop.f32.mrb[0].mxu0
    %v1515 = vadd.f32 0.0, %v1514
    %v1516 = vpop.f32.mrb[0].mxu0
    %1517 = vdwg.mxu0
    %v1518 = vmul.f32 %v1165, 0.25
    %v1519 = vmul.f32 %v1170, 0.25
    %v1520 = vmul.f32 %v1175, 0.25
    %v1521 = vmul.f32 %v1180, 0.25
    %v1522 = vmul.f32 %v1185, 0.25
    %v1523 = vmul.f32 %v1190, 0.25
    %v1524 = vmul.f32 %v1195, 0.25
    %v1525 = vmul.f32 %v1200, 0.25
    %v1526 = vmul.f32 %v1270, 0.25
    %v1527 = vmul.f32 %v1275, 0.25
    %v1528 = vmul.f32 %v1280, 0.25
    %v1529 = vmul.f32 %v1285, 0.25
    %v1530 = vmul.f32 %v1290, 0.25
    %v1531 = vmul.f32 %v1295, 0.25
    %v1532 = vmul.f32 %v1300, 0.25
    %v1533 = vmul.f32 %v1305, 0.25
    %v1534 = vmul.f32 %v1375, 0.25
    %v1535 = vmul.f32 %v1380, 0.25
    %v1536 = vmul.f32 %v1385, 0.25
    %v1537 = vmul.f32 %v1390, 0.25
    %v1538 = vmul.f32 %v1395, 0.25
    %v1539 = vmul.f32 %v1400, 0.25
    %v1540 = vmul.f32 %v1405, 0.25
    %v1541 = vmul.f32 %v1410, 0.25
    %v1542 = vmul.f32 %v1480, 0.25
    %v1543 = vmul.f32 %v1485, 0.25
    %v1544 = vmul.f32 %v1490, 0.25
    %v1545 = vmul.f32 %v1495, 0.25
    %v1546 = vmul.f32 %v1500, 0.25
    %v1547 = vmul.f32 %v1505, 0.25
    %v1548 = vmul.f32 %v1510, 0.25
    %v1549 = vmul.f32 %v1515, 0.25
    %1550 = vadd.xlane.f32.xlu0 %v1066
    %v1551 = vpop.xlane.xlu0 %1550
    %1552 = vadd.xlane.f32.xlu0 %v1067
    %v1553 = vpop.xlane.xlu0 %1552
    %1554 = vadd.xlane.f32.xlu0 %v1068
    %v1555 = vpop.xlane.xlu0 %1554
    %1556 = vadd.xlane.f32.xlu0 %v1069
    %v1557 = vpop.xlane.xlu0 %1556
    %1558 = vadd.xlane.f32.xlu0 %v1070
    %v1559 = vpop.xlane.xlu0 %1558
    %1560 = vadd.xlane.f32.xlu0 %v1071
    %v1561 = vpop.xlane.xlu0 %1560
    %1562 = vadd.xlane.f32.xlu0 %v1072
    %v1563 = vpop.xlane.xlu0 %1562
    %1564 = vadd.xlane.f32.xlu0 %v1073
    %v1565 = vpop.xlane.xlu0 %1564
    %1566 = vadd.xlane.f32.xlu0 %v1074
    %v1567 = vpop.xlane.xlu0 %1566
    %1568 = vadd.xlane.f32.xlu0 %v1075
    %v1569 = vpop.xlane.xlu0 %1568
    %1570 = vadd.xlane.f32.xlu0 %v1076
    %v1571 = vpop.xlane.xlu0 %1570
    %1572 = vadd.xlane.f32.xlu0 %v1077
    %v1573 = vpop.xlane.xlu0 %1572
    %1574 = vadd.xlane.f32.xlu0 %v1078
    %v1575 = vpop.xlane.xlu0 %1574
    %1576 = vadd.xlane.f32.xlu0 %v1079
    %v1577 = vpop.xlane.xlu0 %1576
    %1578 = vadd.xlane.f32.xlu0 %v1080
    %v1579 = vpop.xlane.xlu0 %1578
    %1580 = vadd.xlane.f32.xlu0 %v1081
    %v1581 = vpop.xlane.xlu0 %1580
    %1582 = vadd.xlane.f32.xlu0 %v1082
    %v1583 = vpop.xlane.xlu0 %1582
    %1584 = vadd.xlane.f32.xlu0 %v1083
    %v1585 = vpop.xlane.xlu0 %1584
    %1586 = vadd.xlane.f32.xlu0 %v1084
    %v1587 = vpop.xlane.xlu0 %1586
    %1588 = vadd.xlane.f32.xlu0 %v1085
    %v1589 = vpop.xlane.xlu0 %1588
    %1590 = vadd.xlane.f32.xlu0 %v1086
    %v1591 = vpop.xlane.xlu0 %1590
    %1592 = vadd.xlane.f32.xlu0 %v1087
    %v1593 = vpop.xlane.xlu0 %1592
    %1594 = vadd.xlane.f32.xlu0 %v1088
    %v1595 = vpop.xlane.xlu0 %1594
    %1596 = vadd.xlane.f32.xlu0 %v1089
    %v1597 = vpop.xlane.xlu0 %1596
    %1598 = vadd.xlane.f32.xlu0 %v1090
    %v1599 = vpop.xlane.xlu0 %1598
    %1600 = vadd.xlane.f32.xlu0 %v1091
    %v1601 = vpop.xlane.xlu0 %1600
    %1602 = vadd.xlane.f32.xlu0 %v1092
    %v1603 = vpop.xlane.xlu0 %1602
    %1604 = vadd.xlane.f32.xlu0 %v1093
    %v1605 = vpop.xlane.xlu0 %1604
    %1606 = vadd.xlane.f32.xlu0 %v1094
    %v1607 = vpop.xlane.xlu0 %1606
    %1608 = vadd.xlane.f32.xlu0 %v1095
    %v1609 = vpop.xlane.xlu0 %1608
    %1610 = vadd.xlane.f32.xlu0 %v1096
    %v1611 = vpop.xlane.xlu0 %1610
    %1612 = vadd.xlane.f32.xlu0 %v1097
    %v1613 = vpop.xlane.xlu0 %1612
    %v1614 = vmul.f32 %v1551, 0.5
    %v1615 = vmul.f32 %v1553, 0.5
    %v1616 = vmul.f32 %v1555, 0.5
    %v1617 = vmul.f32 %v1557, 0.5
    %v1618 = vmul.f32 %v1559, 0.5
    %v1619 = vmul.f32 %v1561, 0.5
    %v1620 = vmul.f32 %v1563, 0.5
    %v1621 = vmul.f32 %v1565, 0.5
    %v1622 = vmul.f32 %v1567, 0.5
    %v1623 = vmul.f32 %v1569, 0.5
    %v1624 = vmul.f32 %v1571, 0.5
    %v1625 = vmul.f32 %v1573, 0.5
    %v1626 = vmul.f32 %v1575, 0.5
    %v1627 = vmul.f32 %v1577, 0.5
    %v1628 = vmul.f32 %v1579, 0.5
    %v1629 = vmul.f32 %v1581, 0.5
    %v1630 = vmul.f32 %v1583, 0.5
    %v1631 = vmul.f32 %v1585, 0.5
    %v1632 = vmul.f32 %v1587, 0.5
    %v1633 = vmul.f32 %v1589, 0.5
    %v1634 = vmul.f32 %v1591, 0.5
    %v1635 = vmul.f32 %v1593, 0.5
    %v1636 = vmul.f32 %v1595, 0.5
    %v1637 = vmul.f32 %v1597, 0.5
    %v1638 = vmul.f32 %v1599, 0.5
    %v1639 = vmul.f32 %v1601, 0.5
    %v1640 = vmul.f32 %v1603, 0.5
    %v1641 = vmul.f32 %v1605, 0.5
    %v1642 = vmul.f32 %v1607, 0.5
    %v1643 = vmul.f32 %v1609, 0.5
    %v1644 = vmul.f32 %v1611, 0.5
    %v1645 = vmul.f32 %v1613, 0.5
    %v1646 = vadd.f32 %v1614, 1.0
    %v1647 = vadd.f32 %v1615, 1.0
    %v1648 = vadd.f32 %v1616, 1.0
    %v1649 = vadd.f32 %v1617, 1.0
    %v1650 = vadd.f32 %v1618, 1.0
    %v1651 = vadd.f32 %v1619, 1.0
    %v1652 = vadd.f32 %v1620, 1.0
    %v1653 = vadd.f32 %v1621, 1.0
    %v1654 = vadd.f32 %v1622, 1.0
    %v1655 = vadd.f32 %v1623, 1.0
    %v1656 = vadd.f32 %v1624, 1.0
    %v1657 = vadd.f32 %v1625, 1.0
    %v1658 = vadd.f32 %v1626, 1.0
    %v1659 = vadd.f32 %v1627, 1.0
    %v1660 = vadd.f32 %v1628, 1.0
    %v1661 = vadd.f32 %v1629, 1.0
    %v1662 = vadd.f32 %v1630, 1.0
    %v1663 = vadd.f32 %v1631, 1.0
    %v1664 = vadd.f32 %v1632, 1.0
    %v1665 = vadd.f32 %v1633, 1.0
    %v1666 = vadd.f32 %v1634, 1.0
    %v1667 = vadd.f32 %v1635, 1.0
    %v1668 = vadd.f32 %v1636, 1.0
    %v1669 = vadd.f32 %v1637, 1.0
    %v1670 = vadd.f32 %v1638, 1.0
    %v1671 = vadd.f32 %v1639, 1.0
    %v1672 = vadd.f32 %v1640, 1.0
    %v1673 = vadd.f32 %v1641, 1.0
    %v1674 = vadd.f32 %v1642, 1.0
    %v1675 = vadd.f32 %v1643, 1.0
    %v1676 = vadd.f32 %v1644, 1.0
    %v1677 = vadd.f32 %v1645, 1.0
    %v1686 = vlaneseq
    %v1687 = vand.u32 %v1686, 127
    %v1688 = vlaneseq
    %v1689 = vshrl.u32 %v1688, 7
    %v1690 = vsub.s32 %v1687, %v1689
    %v1691 = vrot.slane %v1646, %v1690
    %v1692 = vadd.s32 %v1687, 4294967288
    %v1693 = vlaneseq
    %v1694 = vshrl.u32 %v1693, 7
    %v1695 = vsub.s32 %v1692, %v1694
    %v1696 = vrot.slane %v1647, %v1695
    %vm1697 = vcmask 130112
    %v1698 = vsel %vm1697, %v1696, %v1691
    %v1699 = vadd.s32 %v1687, 4294967280
    %v1700 = vlaneseq
    %v1701 = vshrl.u32 %v1700, 7
    %v1702 = vsub.s32 %v1699, %v1701
    %v1703 = vrot.slane %v1648, %v1702
    %vm1704 = vcmask 195712
    %v1705 = vsel %vm1704, %v1703, %v1698
    %v1706 = vadd.s32 %v1687, 4294967272
    %v1707 = vlaneseq
    %v1708 = vshrl.u32 %v1707, 7
    %v1709 = vsub.s32 %v1706, %v1708
    %v1710 = vrot.slane %v1649, %v1709
    %vm1711 = vcmask 261312
    %v1712 = vsel %vm1711, %v1710, %v1705
    %v1713 = vadd.s32 %v1687, 4294967264
    %v1714 = vlaneseq
    %v1715 = vshrl.u32 %v1714, 7
    %v1716 = vsub.s32 %v1713, %v1715
    %v1717 = vrot.slane %v1650, %v1716
    %vm1718 = vcmask 326912
    %v1719 = vsel %vm1718, %v1717, %v1712
    %v1720 = vadd.s32 %v1687, 4294967256
    %v1721 = vlaneseq
    %v1722 = vshrl.u32 %v1721, 7
    %v1723 = vsub.s32 %v1720, %v1722
    %v1724 = vrot.slane %v1651, %v1723
    %vm1725 = vcmask 392512
    %v1726 = vsel %vm1725, %v1724, %v1719
    %v1727 = vadd.s32 %v1687, 4294967248
    %v1728 = vlaneseq
    %v1729 = vshrl.u32 %v1728, 7
    %v1730 = vsub.s32 %v1727, %v1729
    %v1731 = vrot.slane %v1652, %v1730
    %vm1732 = vcmask 458112
    %v1733 = vsel %vm1732, %v1731, %v1726
    %v1734 = vadd.s32 %v1687, 4294967240
    %v1735 = vlaneseq
    %v1736 = vshrl.u32 %v1735, 7
    %v1737 = vsub.s32 %v1734, %v1736
    %v1738 = vrot.slane %v1653, %v1737
    %vm1739 = vcmask 523712
    %v1740 = vsel %vm1739, %v1738, %v1733
    %v1741 = vsel %vm104, %v1740, 0
    %1743 = vmatprep.subr.mxu0 0.0
    %1744 = vmatpush1.msra.mxu0 %v1518
    %1745 = vmatprep.subr.mxu0 0.0
    %1746 = vmatpush1.msra.mxu0 %v1519
    %1747 = vmatprep.subr.mxu0 0.0
    %1748 = vmatpush1.msra.mxu0 %v1520
    %1749 = vmatprep.subr.mxu0 0.0
    %1750 = vmatpush1.msra.mxu0 %v1521
    %1751 = vmatprep.subr.mxu0 0.0
    %1752 = vmatpush1.msra.mxu0 %v1522
    %1753 = vmatprep.subr.mxu0 0.0
    %1754 = vmatpush1.msra.mxu0 %v1523
    %1755 = vmatprep.subr.mxu0 0.0
    %1756 = vmatpush1.msra.mxu0 %v1524
    %1757 = vmatprep.subr.mxu0 0.0
    %1758 = vmatpush1.msra.mxu0 %v1525
    %1759 = vmatprep.subr.mxu0 0.0
    %1760 = vmatpush1.msra.mxu0 0.0
    %1761 = vmatprep.subr.mxu0 0.0
    %1762 = vmatpush1.msra.mxu0 0.0
    %1763 = vmatprep.subr.mxu0 0.0
    %1764 = vmatpush1.msra.mxu0 0.0
    %1765 = vmatprep.subr.mxu0 0.0
    %1766 = vmatpush1.msra.mxu0 0.0
    %1767 = vmatprep.subr.mxu0 0.0
    %1768 = vmatpush1.msra.mxu0 0.0
    %1769 = vmatprep.subr.mxu0 0.0
    %1770 = vmatpush1.msra.mxu0 0.0
    %1771 = vmatprep.subr.mxu0 0.0
    %1772 = vmatpush1.msra.mxu0 0.0
    %1773 = vmatprep.subr.mxu0 0.0
    %1774 = vmatpush1.msra.mxu0 0.0
    %1775 = vmatprep.subr.mxu0 0.0
    %1776 = vmatpush1.msra.mxu0 0.0
    %1777 = vmatprep.subr.mxu0 0.0
    %1778 = vmatpush1.msra.mxu0 0.0
    %1779 = vmatprep.subr.mxu0 0.0
    %1780 = vmatpush1.msra.mxu0 0.0
    %1781 = vmatprep.subr.mxu0 0.0
    %1782 = vmatpush1.msra.mxu0 0.0
    %1783 = vmatprep.subr.mxu0 0.0
    %1784 = vmatpush1.msra.mxu0 0.0
    %1785 = vmatprep.subr.mxu0 0.0
    %1786 = vmatpush1.msra.mxu0 0.0
    %1787 = vmatprep.subr.mxu0 0.0
    %1788 = vmatpush1.msra.mxu0 0.0
    %1789 = vmatprep.subr.mxu0 0.0
    %1790 = vmatpush1.msra.mxu0 0.0
    %1791 = vmatprep.subr.mxu0 0.0
    %1792 = vmatpush1.msra.mxu0 0.0
    %1793 = vmatprep.subr.mxu0 0.0
    %1794 = vmatpush1.msra.mxu0 0.0
    %1795 = vmatprep.subr.mxu0 0.0
    %1796 = vmatpush1.msra.mxu0 0.0
    %1797 = vmatprep.subr.mxu0 0.0
    %1798 = vmatpush1.msra.mxu0 0.0
    %1799 = vmatprep.subr.mxu0 0.0
    %1800 = vmatpush1.msra.mxu0 0.0
    %1801 = vmatprep.subr.mxu0 0.0
    %1802 = vmatpush1.msra.mxu0 0.0
    %1803 = vmatprep.subr.mxu0 0.0
    %1804 = vmatpush1.msra.mxu0 0.0
    %1805 = vmatprep.subr.mxu0 0.0
    %1806 = vmatpush1.msra.mxu0 0.0
    %1807 = vmatprep.mubr.f32.mxu0 0.0
    %1808 = vmatmul.mubr.f32.gmra.mrb[0].mxu0 %v1741
    %v1809 = vpop.f32.mrb[0].mxu0
    %v1810 = vadd.f32 0.0, %v1809
    %v1811 = vpop.f32.mrb[0].mxu0
    %1812 = vdwg.mxu0
    %v1821 = vlaneseq
    %v1822 = vshrl.u32 %v1821, 7
    %v1823 = vsub.s32 %v1687, %v1822
    %v1824 = vrot.slane %v1654, %v1823
    %v1825 = vlaneseq
    %v1826 = vshrl.u32 %v1825, 7
    %v1827 = vsub.s32 %v1692, %v1826
    %v1828 = vrot.slane %v1655, %v1827
    %v1829 = vsel %vm1697, %v1828, %v1824
    %v1830 = vlaneseq
    %v1831 = vshrl.u32 %v1830, 7
    %v1832 = vsub.s32 %v1699, %v1831
    %v1833 = vrot.slane %v1656, %v1832
    %v1834 = vsel %vm1704, %v1833, %v1829
    %v1835 = vlaneseq
    %v1836 = vshrl.u32 %v1835, 7
    %v1837 = vsub.s32 %v1706, %v1836
    %v1838 = vrot.slane %v1657, %v1837
    %v1839 = vsel %vm1711, %v1838, %v1834
    %v1840 = vlaneseq
    %v1841 = vshrl.u32 %v1840, 7
    %v1842 = vsub.s32 %v1713, %v1841
    %v1843 = vrot.slane %v1658, %v1842
    %v1844 = vsel %vm1718, %v1843, %v1839
    %v1845 = vlaneseq
    %v1846 = vshrl.u32 %v1845, 7
    %v1847 = vsub.s32 %v1720, %v1846
    %v1848 = vrot.slane %v1659, %v1847
    %v1849 = vsel %vm1725, %v1848, %v1844
    %v1850 = vlaneseq
    %v1851 = vshrl.u32 %v1850, 7
    %v1852 = vsub.s32 %v1727, %v1851
    %v1853 = vrot.slane %v1660, %v1852
    %v1854 = vsel %vm1732, %v1853, %v1849
    %v1855 = vlaneseq
    %v1856 = vshrl.u32 %v1855, 7
    %v1857 = vsub.s32 %v1734, %v1856
    %v1858 = vrot.slane %v1661, %v1857
    %v1859 = vsel %vm1739, %v1858, %v1854
    %v1860 = vsel %vm104, %v1859, 0
    %1862 = vmatprep.subr.mxu0 0.0
    %1863 = vmatpush1.msra.mxu0 %v1526
    %1864 = vmatprep.subr.mxu0 0.0
    %1865 = vmatpush1.msra.mxu0 %v1527
    %1866 = vmatprep.subr.mxu0 0.0
    %1867 = vmatpush1.msra.mxu0 %v1528
    %1868 = vmatprep.subr.mxu0 0.0
    %1869 = vmatpush1.msra.mxu0 %v1529
    %1870 = vmatprep.subr.mxu0 0.0
    %1871 = vmatpush1.msra.mxu0 %v1530
    %1872 = vmatprep.subr.mxu0 0.0
    %1873 = vmatpush1.msra.mxu0 %v1531
    %1874 = vmatprep.subr.mxu0 0.0
    %1875 = vmatpush1.msra.mxu0 %v1532
    %1876 = vmatprep.subr.mxu0 0.0
    %1877 = vmatpush1.msra.mxu0 %v1533
    %1878 = vmatprep.subr.mxu0 0.0
    %1879 = vmatpush1.msra.mxu0 0.0
    %1880 = vmatprep.subr.mxu0 0.0
    %1881 = vmatpush1.msra.mxu0 0.0
    %1882 = vmatprep.subr.mxu0 0.0
    %1883 = vmatpush1.msra.mxu0 0.0
    %1884 = vmatprep.subr.mxu0 0.0
    %1885 = vmatpush1.msra.mxu0 0.0
    %1886 = vmatprep.subr.mxu0 0.0
    %1887 = vmatpush1.msra.mxu0 0.0
    %1888 = vmatprep.subr.mxu0 0.0
    %1889 = vmatpush1.msra.mxu0 0.0
    %1890 = vmatprep.subr.mxu0 0.0
    %1891 = vmatpush1.msra.mxu0 0.0
    %1892 = vmatprep.subr.mxu0 0.0
    %1893 = vmatpush1.msra.mxu0 0.0
    %1894 = vmatprep.subr.mxu0 0.0
    %1895 = vmatpush1.msra.mxu0 0.0
    %1896 = vmatprep.subr.mxu0 0.0
    %1897 = vmatpush1.msra.mxu0 0.0
    %1898 = vmatprep.subr.mxu0 0.0
    %1899 = vmatpush1.msra.mxu0 0.0
    %1900 = vmatprep.subr.mxu0 0.0
    %1901 = vmatpush1.msra.mxu0 0.0
    %1902 = vmatprep.subr.mxu0 0.0
    %1903 = vmatpush1.msra.mxu0 0.0
    %1904 = vmatprep.subr.mxu0 0.0
    %1905 = vmatpush1.msra.mxu0 0.0
    %1906 = vmatprep.subr.mxu0 0.0
    %1907 = vmatpush1.msra.mxu0 0.0
    %1908 = vmatprep.subr.mxu0 0.0
    %1909 = vmatpush1.msra.mxu0 0.0
    %1910 = vmatprep.subr.mxu0 0.0
    %1911 = vmatpush1.msra.mxu0 0.0
    %1912 = vmatprep.subr.mxu0 0.0
    %1913 = vmatpush1.msra.mxu0 0.0
    %1914 = vmatprep.subr.mxu0 0.0
    %1915 = vmatpush1.msra.mxu0 0.0
    %1916 = vmatprep.subr.mxu0 0.0
    %1917 = vmatpush1.msra.mxu0 0.0
    %1918 = vmatprep.subr.mxu0 0.0
    %1919 = vmatpush1.msra.mxu0 0.0
    %1920 = vmatprep.subr.mxu0 0.0
    %1921 = vmatpush1.msra.mxu0 0.0
    %1922 = vmatprep.subr.mxu0 0.0
    %1923 = vmatpush1.msra.mxu0 0.0
    %1924 = vmatprep.subr.mxu0 0.0
    %1925 = vmatpush1.msra.mxu0 0.0
    %1926 = vmatprep.mubr.f32.mxu0 0.0
    %1927 = vmatmul.mubr.f32.gmra.mrb[0].mxu0 %v1860
    %v1928 = vpop.f32.mrb[0].mxu0
    %v1929 = vadd.f32 0.0, %v1928
    %v1930 = vpop.f32.mrb[0].mxu0
    %1931 = vdwg.mxu0
    %v1940 = vlaneseq
    %v1941 = vshrl.u32 %v1940, 7
    %v1942 = vsub.s32 %v1687, %v1941
    %v1943 = vrot.slane %v1662, %v1942
    %v1944 = vlaneseq
    %v1945 = vshrl.u32 %v1944, 7
    %v1946 = vsub.s32 %v1692, %v1945
    %v1947 = vrot.slane %v1663, %v1946
    %v1948 = vsel %vm1697, %v1947, %v1943
    %v1949 = vlaneseq
    %v1950 = vshrl.u32 %v1949, 7
    %v1951 = vsub.s32 %v1699, %v1950
    %v1952 = vrot.slane %v1664, %v1951
    %v1953 = vsel %vm1704, %v1952, %v1948
    %v1954 = vlaneseq
    %v1955 = vshrl.u32 %v1954, 7
    %v1956 = vsub.s32 %v1706, %v1955
    %v1957 = vrot.slane %v1665, %v1956
    %v1958 = vsel %vm1711, %v1957, %v1953
    %v1959 = vlaneseq
    %v1960 = vshrl.u32 %v1959, 7
    %v1961 = vsub.s32 %v1713, %v1960
    %v1962 = vrot.slane %v1666, %v1961
    %v1963 = vsel %vm1718, %v1962, %v1958
    %v1964 = vlaneseq
    %v1965 = vshrl.u32 %v1964, 7
    %v1966 = vsub.s32 %v1720, %v1965
    %v1967 = vrot.slane %v1667, %v1966
    %v1968 = vsel %vm1725, %v1967, %v1963
    %v1969 = vlaneseq
    %v1970 = vshrl.u32 %v1969, 7
    %v1971 = vsub.s32 %v1727, %v1970
    %v1972 = vrot.slane %v1668, %v1971
    %v1973 = vsel %vm1732, %v1972, %v1968
    %v1974 = vlaneseq
    %v1975 = vshrl.u32 %v1974, 7
    %v1976 = vsub.s32 %v1734, %v1975
    %v1977 = vrot.slane %v1669, %v1976
    %v1978 = vsel %vm1739, %v1977, %v1973
    %v1979 = vsel %vm104, %v1978, 0
    %1981 = vmatprep.subr.mxu0 0.0
    %1982 = vmatpush1.msra.mxu0 %v1534
    %1983 = vmatprep.subr.mxu0 0.0
    %1984 = vmatpush1.msra.mxu0 %v1535
    %1985 = vmatprep.subr.mxu0 0.0
    %1986 = vmatpush1.msra.mxu0 %v1536
    %1987 = vmatprep.subr.mxu0 0.0
    %1988 = vmatpush1.msra.mxu0 %v1537
    %1989 = vmatprep.subr.mxu0 0.0
    %1990 = vmatpush1.msra.mxu0 %v1538
    %1991 = vmatprep.subr.mxu0 0.0
    %1992 = vmatpush1.msra.mxu0 %v1539
    %1993 = vmatprep.subr.mxu0 0.0
    %1994 = vmatpush1.msra.mxu0 %v1540
    %1995 = vmatprep.subr.mxu0 0.0
    %1996 = vmatpush1.msra.mxu0 %v1541
    %1997 = vmatprep.subr.mxu0 0.0
    %1998 = vmatpush1.msra.mxu0 0.0
    %1999 = vmatprep.subr.mxu0 0.0
    %2000 = vmatpush1.msra.mxu0 0.0
    %2001 = vmatprep.subr.mxu0 0.0
    %2002 = vmatpush1.msra.mxu0 0.0
    %2003 = vmatprep.subr.mxu0 0.0
    %2004 = vmatpush1.msra.mxu0 0.0
    %2005 = vmatprep.subr.mxu0 0.0
    %2006 = vmatpush1.msra.mxu0 0.0
    %2007 = vmatprep.subr.mxu0 0.0
    %2008 = vmatpush1.msra.mxu0 0.0
    %2009 = vmatprep.subr.mxu0 0.0
    %2010 = vmatpush1.msra.mxu0 0.0
    %2011 = vmatprep.subr.mxu0 0.0
    %2012 = vmatpush1.msra.mxu0 0.0
    %2013 = vmatprep.subr.mxu0 0.0
    %2014 = vmatpush1.msra.mxu0 0.0
    %2015 = vmatprep.subr.mxu0 0.0
    %2016 = vmatpush1.msra.mxu0 0.0
    %2017 = vmatprep.subr.mxu0 0.0
    %2018 = vmatpush1.msra.mxu0 0.0
    %2019 = vmatprep.subr.mxu0 0.0
    %2020 = vmatpush1.msra.mxu0 0.0
    %2021 = vmatprep.subr.mxu0 0.0
    %2022 = vmatpush1.msra.mxu0 0.0
    %2023 = vmatprep.subr.mxu0 0.0
    %2024 = vmatpush1.msra.mxu0 0.0
    %2025 = vmatprep.subr.mxu0 0.0
    %2026 = vmatpush1.msra.mxu0 0.0
    %2027 = vmatprep.subr.mxu0 0.0
    %2028 = vmatpush1.msra.mxu0 0.0
    %2029 = vmatprep.subr.mxu0 0.0
    %2030 = vmatpush1.msra.mxu0 0.0
    %2031 = vmatprep.subr.mxu0 0.0
    %2032 = vmatpush1.msra.mxu0 0.0
    %2033 = vmatprep.subr.mxu0 0.0
    %2034 = vmatpush1.msra.mxu0 0.0
    %2035 = vmatprep.subr.mxu0 0.0
    %2036 = vmatpush1.msra.mxu0 0.0
    %2037 = vmatprep.subr.mxu0 0.0
    %2038 = vmatpush1.msra.mxu0 0.0
    %2039 = vmatprep.subr.mxu0 0.0
    %2040 = vmatpush1.msra.mxu0 0.0
    %2041 = vmatprep.subr.mxu0 0.0
    %2042 = vmatpush1.msra.mxu0 0.0
    %2043 = vmatprep.subr.mxu0 0.0
    %2044 = vmatpush1.msra.mxu0 0.0
    %2045 = vmatprep.mubr.f32.mxu0 0.0
    %2046 = vmatmul.mubr.f32.gmra.mrb[0].mxu0 %v1979
    %v2047 = vpop.f32.mrb[0].mxu0
    %v2048 = vadd.f32 0.0, %v2047
    %v2049 = vpop.f32.mrb[0].mxu0
    %2050 = vdwg.mxu0
    %v2059 = vlaneseq
    %v2060 = vshrl.u32 %v2059, 7
    %v2061 = vsub.s32 %v1687, %v2060
    %v2062 = vrot.slane %v1670, %v2061
    %v2063 = vlaneseq
    %v2064 = vshrl.u32 %v2063, 7
    %v2065 = vsub.s32 %v1692, %v2064
    %v2066 = vrot.slane %v1671, %v2065
    %v2067 = vsel %vm1697, %v2066, %v2062
    %v2068 = vlaneseq
    %v2069 = vshrl.u32 %v2068, 7
    %v2070 = vsub.s32 %v1699, %v2069
    %v2071 = vrot.slane %v1672, %v2070
    %v2072 = vsel %vm1704, %v2071, %v2067
    %v2073 = vlaneseq
    %v2074 = vshrl.u32 %v2073, 7
    %v2075 = vsub.s32 %v1706, %v2074
    %v2076 = vrot.slane %v1673, %v2075
    %v2077 = vsel %vm1711, %v2076, %v2072
    %v2078 = vlaneseq
    %v2079 = vshrl.u32 %v2078, 7
    %v2080 = vsub.s32 %v1713, %v2079
    %v2081 = vrot.slane %v1674, %v2080
    %v2082 = vsel %vm1718, %v2081, %v2077
    %v2083 = vlaneseq
    %v2084 = vshrl.u32 %v2083, 7
    %v2085 = vsub.s32 %v1720, %v2084
    %v2086 = vrot.slane %v1675, %v2085
    %v2087 = vsel %vm1725, %v2086, %v2082
    %v2088 = vlaneseq
    %v2089 = vshrl.u32 %v2088, 7
    %v2090 = vsub.s32 %v1727, %v2089
    %v2091 = vrot.slane %v1676, %v2090
    %v2092 = vsel %vm1732, %v2091, %v2087
    %v2093 = vlaneseq
    %v2094 = vshrl.u32 %v2093, 7
    %v2095 = vsub.s32 %v1734, %v2094
    %v2096 = vrot.slane %v1677, %v2095
    %v2097 = vsel %vm1739, %v2096, %v2092
    %v2098 = vsel %vm104, %v2097, 0
    %2100 = vmatprep.subr.mxu0 0.0
    %2101 = vmatpush1.msra.mxu0 %v1542
    %2102 = vmatprep.subr.mxu0 0.0
    %2103 = vmatpush1.msra.mxu0 %v1543
    %2104 = vmatprep.subr.mxu0 0.0
    %2105 = vmatpush1.msra.mxu0 %v1544
    %2106 = vmatprep.subr.mxu0 0.0
    %2107 = vmatpush1.msra.mxu0 %v1545
    %2108 = vmatprep.subr.mxu0 0.0
    %2109 = vmatpush1.msra.mxu0 %v1546
    %2110 = vmatprep.subr.mxu0 0.0
    %2111 = vmatpush1.msra.mxu0 %v1547
    %2112 = vmatprep.subr.mxu0 0.0
    %2113 = vmatpush1.msra.mxu0 %v1548
    %2114 = vmatprep.subr.mxu0 0.0
    %2115 = vmatpush1.msra.mxu0 %v1549
    %2116 = vmatprep.subr.mxu0 0.0
    %2117 = vmatpush1.msra.mxu0 0.0
    %2118 = vmatprep.subr.mxu0 0.0
    %2119 = vmatpush1.msra.mxu0 0.0
    %2120 = vmatprep.subr.mxu0 0.0
    %2121 = vmatpush1.msra.mxu0 0.0
    %2122 = vmatprep.subr.mxu0 0.0
    %2123 = vmatpush1.msra.mxu0 0.0
    %2124 = vmatprep.subr.mxu0 0.0
    %2125 = vmatpush1.msra.mxu0 0.0
    %2126 = vmatprep.subr.mxu0 0.0
    %2127 = vmatpush1.msra.mxu0 0.0
    %2128 = vmatprep.subr.mxu0 0.0
    %2129 = vmatpush1.msra.mxu0 0.0
    %2130 = vmatprep.subr.mxu0 0.0
    %2131 = vmatpush1.msra.mxu0 0.0
    %2132 = vmatprep.subr.mxu0 0.0
    %2133 = vmatpush1.msra.mxu0 0.0
    %2134 = vmatprep.subr.mxu0 0.0
    %2135 = vmatpush1.msra.mxu0 0.0
    %2136 = vmatprep.subr.mxu0 0.0
    %2137 = vmatpush1.msra.mxu0 0.0
    %2138 = vmatprep.subr.mxu0 0.0
    %2139 = vmatpush1.msra.mxu0 0.0
    %2140 = vmatprep.subr.mxu0 0.0
    %2141 = vmatpush1.msra.mxu0 0.0
    %2142 = vmatprep.subr.mxu0 0.0
    %2143 = vmatpush1.msra.mxu0 0.0
    %2144 = vmatprep.subr.mxu0 0.0
    %2145 = vmatpush1.msra.mxu0 0.0
    %2146 = vmatprep.subr.mxu0 0.0
    %2147 = vmatpush1.msra.mxu0 0.0
    %2148 = vmatprep.subr.mxu0 0.0
    %2149 = vmatpush1.msra.mxu0 0.0
    %2150 = vmatprep.subr.mxu0 0.0
    %2151 = vmatpush1.msra.mxu0 0.0
    %2152 = vmatprep.subr.mxu0 0.0
    %2153 = vmatpush1.msra.mxu0 0.0
    %2154 = vmatprep.subr.mxu0 0.0
    %2155 = vmatpush1.msra.mxu0 0.0
    %2156 = vmatprep.subr.mxu0 0.0
    %2157 = vmatpush1.msra.mxu0 0.0
    %2158 = vmatprep.subr.mxu0 0.0
    %2159 = vmatpush1.msra.mxu0 0.0
    %2160 = vmatprep.subr.mxu0 0.0
    %2161 = vmatpush1.msra.mxu0 0.0
    %2162 = vmatprep.subr.mxu0 0.0
    %2163 = vmatpush1.msra.mxu0 0.0
    %2164 = vmatprep.mubr.f32.mxu0 0.0
    %2165 = vmatmul.mubr.f32.gmra.mrb[0].mxu0 %v2098
    %v2166 = vpop.f32.mrb[0].mxu0
    %v2167 = vadd.f32 0.0, %v2166
    %v2168 = vpop.f32.mrb[0].mxu0
    %2169 = vdwg.mxu0
    %v2174 = vlaneseq
    %v2175 = vshrl.u32 %v2174, 7
    %v2176 = vsub.s32 0, %v2175
    %v2177 = vrot.slane %v1810, %v2176
    %2179 = vbcast.lane.b32.xlu0 %v2177, 256
    %v2180 = vpop.permute.xlu0 %2179
    %s2182 = sor.u32 256, 8
    %2183 = vbcast.lane.b32.xlu0 %v2177, %s2182
    %v2184 = vpop.permute.xlu0 %2183
    %s2186 = sor.u32 256, 16
    %2187 = vbcast.lane.b32.xlu0 %v2177, %s2186
    %v2188 = vpop.permute.xlu0 %2187
    %s2190 = sor.u32 256, 24
    %2191 = vbcast.lane.b32.xlu0 %v2177, %s2190
    %v2192 = vpop.permute.xlu0 %2191
    %s2194 = sor.u32 256, 32
    %2195 = vbcast.lane.b32.xlu0 %v2177, %s2194
    %v2196 = vpop.permute.xlu0 %2195
    %s2198 = sor.u32 256, 40
    %2199 = vbcast.lane.b32.xlu0 %v2177, %s2198
    %v2200 = vpop.permute.xlu0 %2199
    %s2202 = sor.u32 256, 48
    %2203 = vbcast.lane.b32.xlu0 %v2177, %s2202
    %v2204 = vpop.permute.xlu0 %2203
    %s2206 = sor.u32 256, 56
    %2207 = vbcast.lane.b32.xlu0 %v2177, %s2206
    %v2208 = vpop.permute.xlu0 %2207
    %v2209 = vlaneseq
    %v2210 = vshrl.u32 %v2209, 7
    %v2211 = vsub.s32 0, %v2210
    %v2212 = vrot.slane %v1929, %v2211
    %2214 = vbcast.lane.b32.xlu0 %v2212, 256
    %v2215 = vpop.permute.xlu0 %2214
    %s2217 = sor.u32 256, 8
    %2218 = vbcast.lane.b32.xlu0 %v2212, %s2217
    %v2219 = vpop.permute.xlu0 %2218
    %s2221 = sor.u32 256, 16
    %2222 = vbcast.lane.b32.xlu0 %v2212, %s2221
    %v2223 = vpop.permute.xlu0 %2222
    %s2225 = sor.u32 256, 24
    %2226 = vbcast.lane.b32.xlu0 %v2212, %s2225
    %v2227 = vpop.permute.xlu0 %2226
    %s2229 = sor.u32 256, 32
    %2230 = vbcast.lane.b32.xlu0 %v2212, %s2229
    %v2231 = vpop.permute.xlu0 %2230
    %s2233 = sor.u32 256, 40
    %2234 = vbcast.lane.b32.xlu0 %v2212, %s2233
    %v2235 = vpop.permute.xlu0 %2234
    %s2237 = sor.u32 256, 48
    %2238 = vbcast.lane.b32.xlu0 %v2212, %s2237
    %v2239 = vpop.permute.xlu0 %2238
    %s2241 = sor.u32 256, 56
    %2242 = vbcast.lane.b32.xlu0 %v2212, %s2241
    %v2243 = vpop.permute.xlu0 %2242
    %v2244 = vlaneseq
    %v2245 = vshrl.u32 %v2244, 7
    %v2246 = vsub.s32 0, %v2245
    %v2247 = vrot.slane %v2048, %v2246
    %2249 = vbcast.lane.b32.xlu0 %v2247, 256
    %v2250 = vpop.permute.xlu0 %2249
    %s2252 = sor.u32 256, 8
    %2253 = vbcast.lane.b32.xlu0 %v2247, %s2252
    %v2254 = vpop.permute.xlu0 %2253
    %s2256 = sor.u32 256, 16
    %2257 = vbcast.lane.b32.xlu0 %v2247, %s2256
    %v2258 = vpop.permute.xlu0 %2257
    %s2260 = sor.u32 256, 24
    %2261 = vbcast.lane.b32.xlu0 %v2247, %s2260
    %v2262 = vpop.permute.xlu0 %2261
    %s2264 = sor.u32 256, 32
    %2265 = vbcast.lane.b32.xlu0 %v2247, %s2264
    %v2266 = vpop.permute.xlu0 %2265
    %s2268 = sor.u32 256, 40
    %2269 = vbcast.lane.b32.xlu0 %v2247, %s2268
    %v2270 = vpop.permute.xlu0 %2269
    %s2272 = sor.u32 256, 48
    %2273 = vbcast.lane.b32.xlu0 %v2247, %s2272
    %v2274 = vpop.permute.xlu0 %2273
    %s2276 = sor.u32 256, 56
    %2277 = vbcast.lane.b32.xlu0 %v2247, %s2276
    %v2278 = vpop.permute.xlu0 %2277
    %v2279 = vlaneseq
    %v2280 = vshrl.u32 %v2279, 7
    %v2281 = vsub.s32 0, %v2280
    %v2282 = vrot.slane %v2167, %v2281
    %2284 = vbcast.lane.b32.xlu0 %v2282, 256
    %v2285 = vpop.permute.xlu0 %2284
    %s2287 = sor.u32 256, 8
    %2288 = vbcast.lane.b32.xlu0 %v2282, %s2287
    %v2289 = vpop.permute.xlu0 %2288
    %s2291 = sor.u32 256, 16
    %2292 = vbcast.lane.b32.xlu0 %v2282, %s2291
    %v2293 = vpop.permute.xlu0 %2292
    %s2295 = sor.u32 256, 24
    %2296 = vbcast.lane.b32.xlu0 %v2282, %s2295
    %v2297 = vpop.permute.xlu0 %2296
    %s2299 = sor.u32 256, 32
    %2300 = vbcast.lane.b32.xlu0 %v2282, %s2299
    %v2301 = vpop.permute.xlu0 %2300
    %s2303 = sor.u32 256, 40
    %2304 = vbcast.lane.b32.xlu0 %v2282, %s2303
    %v2305 = vpop.permute.xlu0 %2304
    %s2307 = sor.u32 256, 48
    %2308 = vbcast.lane.b32.xlu0 %v2282, %s2307
    %v2309 = vpop.permute.xlu0 %2308
    %s2311 = sor.u32 256, 56
    %2312 = vbcast.lane.b32.xlu0 %v2282, %s2311
    %v2313 = vpop.permute.xlu0 %2312
    %v2346 = vadd.f32 %v1646, %v2180
    %v2347 = vadd.f32 %v1647, %v2184
    %v2348 = vadd.f32 %v1648, %v2188
    %v2349 = vadd.f32 %v1649, %v2192
    %v2350 = vadd.f32 %v1650, %v2196
    %v2351 = vadd.f32 %v1651, %v2200
    %v2352 = vadd.f32 %v1652, %v2204
    %v2353 = vadd.f32 %v1653, %v2208
    %v2354 = vadd.f32 %v1654, %v2215
    %v2355 = vadd.f32 %v1655, %v2219
    %v2356 = vadd.f32 %v1656, %v2223
    %v2357 = vadd.f32 %v1657, %v2227
    %v2358 = vadd.f32 %v1658, %v2231
    %v2359 = vadd.f32 %v1659, %v2235
    %v2360 = vadd.f32 %v1660, %v2239
    %v2361 = vadd.f32 %v1661, %v2243
    %v2362 = vadd.f32 %v1662, %v2250
    %v2363 = vadd.f32 %v1663, %v2254
    %v2364 = vadd.f32 %v1664, %v2258
    %v2365 = vadd.f32 %v1665, %v2262
    %v2366 = vadd.f32 %v1666, %v2266
    %v2367 = vadd.f32 %v1667, %v2270
    %v2368 = vadd.f32 %v1668, %v2274
    %v2369 = vadd.f32 %v1669, %v2278
    %v2370 = vadd.f32 %v1670, %v2285
    %v2371 = vadd.f32 %v1671, %v2289
    %v2372 = vadd.f32 %v1672, %v2293
    %v2373 = vadd.f32 %v1673, %v2297
    %v2374 = vadd.f32 %v1674, %v2301
    %v2375 = vadd.f32 %v1675, %v2305
    %v2376 = vadd.f32 %v1676, %v2309
    %v2377 = vadd.f32 %v1677, %v2313
    %v2379 = vsel %vm104, %v1518, 0
    %v2382 = vsel %vm104, %v1519, 0
    %v2385 = vsel %vm104, %v1520, 0
    %v2388 = vsel %vm104, %v1521, 0
    %v2391 = vsel %vm104, %v1522, 0
    %v2394 = vsel %vm104, %v1523, 0
    %v2397 = vsel %vm104, %v1524, 0
    %v2400 = vsel %vm104, %v1525, 0
    %2402 = vmatprep.subr.mxu0 0.0
    %2403 = vmatpush1.msra.mxu0 %v1518
    %2404 = vmatprep.subr.mxu0 0.0
    %2405 = vmatpush1.msra.mxu0 %v1519
    %2406 = vmatprep.subr.mxu0 0.0
    %2407 = vmatpush1.msra.mxu0 %v1520
    %2408 = vmatprep.subr.mxu0 0.0
    %2409 = vmatpush1.msra.mxu0 %v1521
    %2410 = vmatprep.subr.mxu0 0.0
    %2411 = vmatpush1.msra.mxu0 %v1522
    %2412 = vmatprep.subr.mxu0 0.0
    %2413 = vmatpush1.msra.mxu0 %v1523
    %2414 = vmatprep.subr.mxu0 0.0
    %2415 = vmatpush1.msra.mxu0 %v1524
    %2416 = vmatprep.subr.mxu0 0.0
    %2417 = vmatpush1.msra.mxu0 %v1525
    %2418 = vmatprep.subr.mxu0 0.0
    %2419 = vmatpush1.msra.mxu0 0.0
    %2420 = vmatprep.subr.mxu0 0.0
    %2421 = vmatpush1.msra.mxu0 0.0
    %2422 = vmatprep.subr.mxu0 0.0
    %2423 = vmatpush1.msra.mxu0 0.0
    %2424 = vmatprep.subr.mxu0 0.0
    %2425 = vmatpush1.msra.mxu0 0.0
    %2426 = vmatprep.subr.mxu0 0.0
    %2427 = vmatpush1.msra.mxu0 0.0
    %2428 = vmatprep.subr.mxu0 0.0
    %2429 = vmatpush1.msra.mxu0 0.0
    %2430 = vmatprep.subr.mxu0 0.0
    %2431 = vmatpush1.msra.mxu0 0.0
    %2432 = vmatprep.subr.mxu0 0.0
    %2433 = vmatpush1.msra.mxu0 0.0
    %2434 = vmatprep.subr.mxu0 0.0
    %2435 = vmatpush1.msra.mxu0 0.0
    %2436 = vmatprep.subr.mxu0 0.0
    %2437 = vmatpush1.msra.mxu0 0.0
    %2438 = vmatprep.subr.mxu0 0.0
    %2439 = vmatpush1.msra.mxu0 0.0
    %2440 = vmatprep.subr.mxu0 0.0
    %2441 = vmatpush1.msra.mxu0 0.0
    %2442 = vmatprep.subr.mxu0 0.0
    %2443 = vmatpush1.msra.mxu0 0.0
    %2444 = vmatprep.subr.mxu0 0.0
    %2445 = vmatpush1.msra.mxu0 0.0
    %2446 = vmatprep.subr.mxu0 0.0
    %2447 = vmatpush1.msra.mxu0 0.0
    %2448 = vmatprep.subr.mxu0 0.0
    %2449 = vmatpush1.msra.mxu0 0.0
    %2450 = vmatprep.subr.mxu0 0.0
    %2451 = vmatpush1.msra.mxu0 0.0
    %2452 = vmatprep.subr.mxu0 0.0
    %2453 = vmatpush1.msra.mxu0 0.0
    %2454 = vmatprep.subr.mxu0 0.0
    %2455 = vmatpush1.msra.mxu0 0.0
    %2456 = vmatprep.subr.mxu0 0.0
    %2457 = vmatpush1.msra.mxu0 0.0
    %2458 = vmatprep.subr.mxu0 0.0
    %2459 = vmatpush1.msra.mxu0 0.0
    %2460 = vmatprep.subr.mxu0 0.0
    %2461 = vmatpush1.msra.mxu0 0.0
    %2462 = vmatprep.subr.mxu0 0.0
    %2463 = vmatpush1.msra.mxu0 0.0
    %2464 = vmatprep.subr.mxu0 0.0
    %2465 = vmatpush1.msra.mxu0 0.0
    %2466 = vmatprep.mubr.f32.mxu0 0.0
    %2467 = vmatmul.mubr.f32.gmra.mrb[0].mxu0 %v2379
    %v2468 = vpop.f32.mrb[0].mxu0
    %v2469 = vadd.f32 0.0, %v2468
    %v2470 = vpop.f32.mrb[0].mxu0
    %2471 = vmatprep.mubr.f32.mxu0 0.0
    %2472 = vmatmul.mubr.f32.gmra.mrb[0].mxu0 %v2382
    %v2473 = vpop.f32.mrb[0].mxu0
    %v2474 = vadd.f32 0.0, %v2473
    %v2475 = vpop.f32.mrb[0].mxu0
    %2476 = vmatprep.mubr.f32.mxu0 0.0
    %2477 = vmatmul.mubr.f32.gmra.mrb[0].mxu0 %v2385
    %v2478 = vpop.f32.mrb[0].mxu0
    %v2479 = vadd.f32 0.0, %v2478
    %v2480 = vpop.f32.mrb[0].mxu0
    %2481 = vmatprep.mubr.f32.mxu0 0.0
    %2482 = vmatmul.mubr.f32.gmra.mrb[0].mxu0 %v2388
    %v2483 = vpop.f32.mrb[0].mxu0
    %v2484 = vadd.f32 0.0, %v2483
    %v2485 = vpop.f32.mrb[0].mxu0
    %2486 = vmatprep.mubr.f32.mxu0 0.0
    %2487 = vmatmul.mubr.f32.gmra.mrb[0].mxu0 %v2391
    %v2488 = vpop.f32.mrb[0].mxu0
    %v2489 = vadd.f32 0.0, %v2488
    %v2490 = vpop.f32.mrb[0].mxu0
    %2491 = vmatprep.mubr.f32.mxu0 0.0
    %2492 = vmatmul.mubr.f32.gmra.mrb[0].mxu0 %v2394
    %v2493 = vpop.f32.mrb[0].mxu0
    %v2494 = vadd.f32 0.0, %v2493
    %v2495 = vpop.f32.mrb[0].mxu0
    %2496 = vmatprep.mubr.f32.mxu0 0.0
    %2497 = vmatmul.mubr.f32.gmra.mrb[0].mxu0 %v2397
    %v2498 = vpop.f32.mrb[0].mxu0
    %v2499 = vadd.f32 0.0, %v2498
    %v2500 = vpop.f32.mrb[0].mxu0
    %2501 = vmatprep.mubr.f32.mxu0 0.0
    %2502 = vmatmul.mubr.f32.gmra.mrb[0].mxu0 %v2400
    %v2503 = vpop.f32.mrb[0].mxu0
    %v2504 = vadd.f32 0.0, %v2503
    %v2505 = vpop.f32.mrb[0].mxu0
    %2506 = vdwg.mxu0
    %v2508 = vsel %vm104, %v1526, 0
    %v2511 = vsel %vm104, %v1527, 0
    %v2514 = vsel %vm104, %v1528, 0
    %v2517 = vsel %vm104, %v1529, 0
    %v2520 = vsel %vm104, %v1530, 0
    %v2523 = vsel %vm104, %v1531, 0
    %v2526 = vsel %vm104, %v1532, 0
    %v2529 = vsel %vm104, %v1533, 0
    %2531 = vmatprep.subr.mxu0 0.0
    %2532 = vmatpush1.msra.mxu0 %v1526
    %2533 = vmatprep.subr.mxu0 0.0
    %2534 = vmatpush1.msra.mxu0 %v1527
    %2535 = vmatprep.subr.mxu0 0.0
    %2536 = vmatpush1.msra.mxu0 %v1528
    %2537 = vmatprep.subr.mxu0 0.0
    %2538 = vmatpush1.msra.mxu0 %v1529
    %2539 = vmatprep.subr.mxu0 0.0
    %2540 = vmatpush1.msra.mxu0 %v1530
    %2541 = vmatprep.subr.mxu0 0.0
    %2542 = vmatpush1.msra.mxu0 %v1531
    %2543 = vmatprep.subr.mxu0 0.0
    %2544 = vmatpush1.msra.mxu0 %v1532
    %2545 = vmatprep.subr.mxu0 0.0
    %2546 = vmatpush1.msra.mxu0 %v1533
    %2547 = vmatprep.subr.mxu0 0.0
    %2548 = vmatpush1.msra.mxu0 0.0
    %2549 = vmatprep.subr.mxu0 0.0
    %2550 = vmatpush1.msra.mxu0 0.0
    %2551 = vmatprep.subr.mxu0 0.0
    %2552 = vmatpush1.msra.mxu0 0.0
    %2553 = vmatprep.subr.mxu0 0.0
    %2554 = vmatpush1.msra.mxu0 0.0
    %2555 = vmatprep.subr.mxu0 0.0
    %2556 = vmatpush1.msra.mxu0 0.0
    %2557 = vmatprep.subr.mxu0 0.0
    %2558 = vmatpush1.msra.mxu0 0.0
    %2559 = vmatprep.subr.mxu0 0.0
    %2560 = vmatpush1.msra.mxu0 0.0
    %2561 = vmatprep.subr.mxu0 0.0
    %2562 = vmatpush1.msra.mxu0 0.0
    %2563 = vmatprep.subr.mxu0 0.0
    %2564 = vmatpush1.msra.mxu0 0.0
    %2565 = vmatprep.subr.mxu0 0.0
    %2566 = vmatpush1.msra.mxu0 0.0
    %2567 = vmatprep.subr.mxu0 0.0
    %2568 = vmatpush1.msra.mxu0 0.0
    %2569 = vmatprep.subr.mxu0 0.0
    %2570 = vmatpush1.msra.mxu0 0.0
    %2571 = vmatprep.subr.mxu0 0.0
    %2572 = vmatpush1.msra.mxu0 0.0
    %2573 = vmatprep.subr.mxu0 0.0
    %2574 = vmatpush1.msra.mxu0 0.0
    %2575 = vmatprep.subr.mxu0 0.0
    %2576 = vmatpush1.msra.mxu0 0.0
    %2577 = vmatprep.subr.mxu0 0.0
    %2578 = vmatpush1.msra.mxu0 0.0
    %2579 = vmatprep.subr.mxu0 0.0
    %2580 = vmatpush1.msra.mxu0 0.0
    %2581 = vmatprep.subr.mxu0 0.0
    %2582 = vmatpush1.msra.mxu0 0.0
    %2583 = vmatprep.subr.mxu0 0.0
    %2584 = vmatpush1.msra.mxu0 0.0
    %2585 = vmatprep.subr.mxu0 0.0
    %2586 = vmatpush1.msra.mxu0 0.0
    %2587 = vmatprep.subr.mxu0 0.0
    %2588 = vmatpush1.msra.mxu0 0.0
    %2589 = vmatprep.subr.mxu0 0.0
    %2590 = vmatpush1.msra.mxu0 0.0
    %2591 = vmatprep.subr.mxu0 0.0
    %2592 = vmatpush1.msra.mxu0 0.0
    %2593 = vmatprep.subr.mxu0 0.0
    %2594 = vmatpush1.msra.mxu0 0.0
    %2595 = vmatprep.mubr.f32.mxu0 0.0
    %2596 = vmatmul.mubr.f32.gmra.mrb[0].mxu0 %v2508
    %v2597 = vpop.f32.mrb[0].mxu0
    %v2598 = vadd.f32 0.0, %v2597
    %v2599 = vpop.f32.mrb[0].mxu0
    %2600 = vmatprep.mubr.f32.mxu0 0.0
    %2601 = vmatmul.mubr.f32.gmra.mrb[0].mxu0 %v2511
    %v2602 = vpop.f32.mrb[0].mxu0
    %v2603 = vadd.f32 0.0, %v2602
    %v2604 = vpop.f32.mrb[0].mxu0
    %2605 = vmatprep.mubr.f32.mxu0 0.0
    %2606 = vmatmul.mubr.f32.gmra.mrb[0].mxu0 %v2514
    %v2607 = vpop.f32.mrb[0].mxu0
    %v2608 = vadd.f32 0.0, %v2607
    %v2609 = vpop.f32.mrb[0].mxu0
    %2610 = vmatprep.mubr.f32.mxu0 0.0
    %2611 = vmatmul.mubr.f32.gmra.mrb[0].mxu0 %v2517
    %v2612 = vpop.f32.mrb[0].mxu0
    %v2613 = vadd.f32 0.0, %v2612
    %v2614 = vpop.f32.mrb[0].mxu0
    %2615 = vmatprep.mubr.f32.mxu0 0.0
    %2616 = vmatmul.mubr.f32.gmra.mrb[0].mxu0 %v2520
    %v2617 = vpop.f32.mrb[0].mxu0
    %v2618 = vadd.f32 0.0, %v2617
    %v2619 = vpop.f32.mrb[0].mxu0
    %2620 = vmatprep.mubr.f32.mxu0 0.0
    %2621 = vmatmul.mubr.f32.gmra.mrb[0].mxu0 %v2523
    %v2622 = vpop.f32.mrb[0].mxu0
    %v2623 = vadd.f32 0.0, %v2622
    %v2624 = vpop.f32.mrb[0].mxu0
    %2625 = vmatprep.mubr.f32.mxu0 0.0
    %2626 = vmatmul.mubr.f32.gmra.mrb[0].mxu0 %v2526
    %v2627 = vpop.f32.mrb[0].mxu0
    %v2628 = vadd.f32 0.0, %v2627
    %v2629 = vpop.f32.mrb[0].mxu0
    %2630 = vmatprep.mubr.f32.mxu0 0.0
    %2631 = vmatmul.mubr.f32.gmra.mrb[0].mxu0 %v2529
    %v2632 = vpop.f32.mrb[0].mxu0
    %v2633 = vadd.f32 0.0, %v2632
    %v2634 = vpop.f32.mrb[0].mxu0
    %2635 = vdwg.mxu0
    %v2637 = vsel %vm104, %v1534, 0
    %v2640 = vsel %vm104, %v1535, 0
    %v2643 = vsel %vm104, %v1536, 0
    %v2646 = vsel %vm104, %v1537, 0
    %v2649 = vsel %vm104, %v1538, 0
    %v2652 = vsel %vm104, %v1539, 0
    %v2655 = vsel %vm104, %v1540, 0
    %v2658 = vsel %vm104, %v1541, 0
    %2660 = vmatprep.subr.mxu0 0.0
    %2661 = vmatpush1.msra.mxu0 %v1534
    %2662 = vmatprep.subr.mxu0 0.0
    %2663 = vmatpush1.msra.mxu0 %v1535
    %2664 = vmatprep.subr.mxu0 0.0
    %2665 = vmatpush1.msra.mxu0 %v1536
    %2666 = vmatprep.subr.mxu0 0.0
    %2667 = vmatpush1.msra.mxu0 %v1537
    %2668 = vmatprep.subr.mxu0 0.0
    %2669 = vmatpush1.msra.mxu0 %v1538
    %2670 = vmatprep.subr.mxu0 0.0
    %2671 = vmatpush1.msra.mxu0 %v1539
    %2672 = vmatprep.subr.mxu0 0.0
    %2673 = vmatpush1.msra.mxu0 %v1540
    %2674 = vmatprep.subr.mxu0 0.0
    %2675 = vmatpush1.msra.mxu0 %v1541
    %2676 = vmatprep.subr.mxu0 0.0
    %2677 = vmatpush1.msra.mxu0 0.0
    %2678 = vmatprep.subr.mxu0 0.0
    %2679 = vmatpush1.msra.mxu0 0.0
    %2680 = vmatprep.subr.mxu0 0.0
    %2681 = vmatpush1.msra.mxu0 0.0
    %2682 = vmatprep.subr.mxu0 0.0
    %2683 = vmatpush1.msra.mxu0 0.0
    %2684 = vmatprep.subr.mxu0 0.0
    %2685 = vmatpush1.msra.mxu0 0.0
    %2686 = vmatprep.subr.mxu0 0.0
    %2687 = vmatpush1.msra.mxu0 0.0
    %2688 = vmatprep.subr.mxu0 0.0
    %2689 = vmatpush1.msra.mxu0 0.0
    %2690 = vmatprep.subr.mxu0 0.0
    %2691 = vmatpush1.msra.mxu0 0.0
    %2692 = vmatprep.subr.mxu0 0.0
    %2693 = vmatpush1.msra.mxu0 0.0
    %2694 = vmatprep.subr.mxu0 0.0
    %2695 = vmatpush1.msra.mxu0 0.0
    %2696 = vmatprep.subr.mxu0 0.0
    %2697 = vmatpush1.msra.mxu0 0.0
    %2698 = vmatprep.subr.mxu0 0.0
    %2699 = vmatpush1.msra.mxu0 0.0
    %2700 = vmatprep.subr.mxu0 0.0
    %2701 = vmatpush1.msra.mxu0 0.0
    %2702 = vmatprep.subr.mxu0 0.0
    %2703 = vmatpush1.msra.mxu0 0.0
    %2704 = vmatprep.subr.mxu0 0.0
    %2705 = vmatpush1.msra.mxu0 0.0
    %2706 = vmatprep.subr.mxu0 0.0
    %2707 = vmatpush1.msra.mxu0 0.0
    %2708 = vmatprep.subr.mxu0 0.0
    %2709 = vmatpush1.msra.mxu0 0.0
    %2710 = vmatprep.subr.mxu0 0.0
    %2711 = vmatpush1.msra.mxu0 0.0
    %2712 = vmatprep.subr.mxu0 0.0
    %2713 = vmatpush1.msra.mxu0 0.0
    %2714 = vmatprep.subr.mxu0 0.0
    %2715 = vmatpush1.msra.mxu0 0.0
    %2716 = vmatprep.subr.mxu0 0.0
    %2717 = vmatpush1.msra.mxu0 0.0
    %2718 = vmatprep.subr.mxu0 0.0
    %2719 = vmatpush1.msra.mxu0 0.0
    %2720 = vmatprep.subr.mxu0 0.0
    %2721 = vmatpush1.msra.mxu0 0.0
    %2722 = vmatprep.subr.mxu0 0.0
    %2723 = vmatpush1.msra.mxu0 0.0
    %2724 = vmatprep.mubr.f32.mxu0 0.0
    %2725 = vmatmul.mubr.f32.gmra.mrb[0].mxu0 %v2637
    %v2726 = vpop.f32.mrb[0].mxu0
    %v2727 = vadd.f32 0.0, %v2726
    %v2728 = vpop.f32.mrb[0].mxu0
    %2729 = vmatprep.mubr.f32.mxu0 0.0
    %2730 = vmatmul.mubr.f32.gmra.mrb[0].mxu0 %v2640
    %v2731 = vpop.f32.mrb[0].mxu0
    %v2732 = vadd.f32 0.0, %v2731
    %v2733 = vpop.f32.mrb[0].mxu0
    %2734 = vmatprep.mubr.f32.mxu0 0.0
    %2735 = vmatmul.mubr.f32.gmra.mrb[0].mxu0 %v2643
    %v2736 = vpop.f32.mrb[0].mxu0
    %v2737 = vadd.f32 0.0, %v2736
    %v2738 = vpop.f32.mrb[0].mxu0
    %2739 = vmatprep.mubr.f32.mxu0 0.0
    %2740 = vmatmul.mubr.f32.gmra.mrb[0].mxu0 %v2646
    %v2741 = vpop.f32.mrb[0].mxu0
    %v2742 = vadd.f32 0.0, %v2741
    %v2743 = vpop.f32.mrb[0].mxu0
    %2744 = vmatprep.mubr.f32.mxu0 0.0
    %2745 = vmatmul.mubr.f32.gmra.mrb[0].mxu0 %v2649
    %v2746 = vpop.f32.mrb[0].mxu0
    %v2747 = vadd.f32 0.0, %v2746
    %v2748 = vpop.f32.mrb[0].mxu0
    %2749 = vmatprep.mubr.f32.mxu0 0.0
    %2750 = vmatmul.mubr.f32.gmra.mrb[0].mxu0 %v2652
    %v2751 = vpop.f32.mrb[0].mxu0
    %v2752 = vadd.f32 0.0, %v2751
    %v2753 = vpop.f32.mrb[0].mxu0
    %2754 = vmatprep.mubr.f32.mxu0 0.0
    %2755 = vmatmul.mubr.f32.gmra.mrb[0].mxu0 %v2655
    %v2756 = vpop.f32.mrb[0].mxu0
    %v2757 = vadd.f32 0.0, %v2756
    %v2758 = vpop.f32.mrb[0].mxu0
    %2759 = vmatprep.mubr.f32.mxu0 0.0
    %2760 = vmatmul.mubr.f32.gmra.mrb[0].mxu0 %v2658
    %v2761 = vpop.f32.mrb[0].mxu0
    %v2762 = vadd.f32 0.0, %v2761
    %v2763 = vpop.f32.mrb[0].mxu0
    %2764 = vdwg.mxu0
    %v2766 = vsel %vm104, %v1542, 0
    %v2769 = vsel %vm104, %v1543, 0
    %v2772 = vsel %vm104, %v1544, 0
    %v2775 = vsel %vm104, %v1545, 0
    %v2778 = vsel %vm104, %v1546, 0
    %v2781 = vsel %vm104, %v1547, 0
    %v2784 = vsel %vm104, %v1548, 0
    %v2787 = vsel %vm104, %v1549, 0
    %2789 = vmatprep.subr.mxu0 0.0
    %2790 = vmatpush1.msra.mxu0 %v1542
    %2791 = vmatprep.subr.mxu0 0.0
    %2792 = vmatpush1.msra.mxu0 %v1543
    %2793 = vmatprep.subr.mxu0 0.0
    %2794 = vmatpush1.msra.mxu0 %v1544
    %2795 = vmatprep.subr.mxu0 0.0
    %2796 = vmatpush1.msra.mxu0 %v1545
    %2797 = vmatprep.subr.mxu0 0.0
    %2798 = vmatpush1.msra.mxu0 %v1546
    %2799 = vmatprep.subr.mxu0 0.0
    %2800 = vmatpush1.msra.mxu0 %v1547
    %2801 = vmatprep.subr.mxu0 0.0
    %2802 = vmatpush1.msra.mxu0 %v1548
    %2803 = vmatprep.subr.mxu0 0.0
    %2804 = vmatpush1.msra.mxu0 %v1549
    %2805 = vmatprep.subr.mxu0 0.0
    %2806 = vmatpush1.msra.mxu0 0.0
    %2807 = vmatprep.subr.mxu0 0.0
    %2808 = vmatpush1.msra.mxu0 0.0
    %2809 = vmatprep.subr.mxu0 0.0
    %2810 = vmatpush1.msra.mxu0 0.0
    %2811 = vmatprep.subr.mxu0 0.0
    %2812 = vmatpush1.msra.mxu0 0.0
    %2813 = vmatprep.subr.mxu0 0.0
    %2814 = vmatpush1.msra.mxu0 0.0
    %2815 = vmatprep.subr.mxu0 0.0
    %2816 = vmatpush1.msra.mxu0 0.0
    %2817 = vmatprep.subr.mxu0 0.0
    %2818 = vmatpush1.msra.mxu0 0.0
    %2819 = vmatprep.subr.mxu0 0.0
    %2820 = vmatpush1.msra.mxu0 0.0
    %2821 = vmatprep.subr.mxu0 0.0
    %2822 = vmatpush1.msra.mxu0 0.0
    %2823 = vmatprep.subr.mxu0 0.0
    %2824 = vmatpush1.msra.mxu0 0.0
    %2825 = vmatprep.subr.mxu0 0.0
    %2826 = vmatpush1.msra.mxu0 0.0
    %2827 = vmatprep.subr.mxu0 0.0
    %2828 = vmatpush1.msra.mxu0 0.0
    %2829 = vmatprep.subr.mxu0 0.0
    %2830 = vmatpush1.msra.mxu0 0.0
    %2831 = vmatprep.subr.mxu0 0.0
    %2832 = vmatpush1.msra.mxu0 0.0
    %2833 = vmatprep.subr.mxu0 0.0
    %2834 = vmatpush1.msra.mxu0 0.0
    %2835 = vmatprep.subr.mxu0 0.0
    %2836 = vmatpush1.msra.mxu0 0.0
    %2837 = vmatprep.subr.mxu0 0.0
    %2838 = vmatpush1.msra.mxu0 0.0
    %2839 = vmatprep.subr.mxu0 0.0
    %2840 = vmatpush1.msra.mxu0 0.0
    %2841 = vmatprep.subr.mxu0 0.0
    %2842 = vmatpush1.msra.mxu0 0.0
    %2843 = vmatprep.subr.mxu0 0.0
    %2844 = vmatpush1.msra.mxu0 0.0
    %2845 = vmatprep.subr.mxu0 0.0
    %2846 = vmatpush1.msra.mxu0 0.0
    %2847 = vmatprep.subr.mxu0 0.0
    %2848 = vmatpush1.msra.mxu0 0.0
    %2849 = vmatprep.subr.mxu0 0.0
    %2850 = vmatpush1.msra.mxu0 0.0
    %2851 = vmatprep.subr.mxu0 0.0
    %2852 = vmatpush1.msra.mxu0 0.0
    %2853 = vmatprep.mubr.f32.mxu0 0.0
    %2854 = vmatmul.mubr.f32.gmra.mrb[0].mxu0 %v2766
    %v2855 = vpop.f32.mrb[0].mxu0
    %v2856 = vadd.f32 0.0, %v2855
    %v2857 = vpop.f32.mrb[0].mxu0
    %2858 = vmatprep.mubr.f32.mxu0 0.0
    %2859 = vmatmul.mubr.f32.gmra.mrb[0].mxu0 %v2769
    %v2860 = vpop.f32.mrb[0].mxu0
    %v2861 = vadd.f32 0.0, %v2860
    %v2862 = vpop.f32.mrb[0].mxu0
    %2863 = vmatprep.mubr.f32.mxu0 0.0
    %2864 = vmatmul.mubr.f32.gmra.mrb[0].mxu0 %v2772
    %v2865 = vpop.f32.mrb[0].mxu0
    %v2866 = vadd.f32 0.0, %v2865
    %v2867 = vpop.f32.mrb[0].mxu0
    %2868 = vmatprep.mubr.f32.mxu0 0.0
    %2869 = vmatmul.mubr.f32.gmra.mrb[0].mxu0 %v2775
    %v2870 = vpop.f32.mrb[0].mxu0
    %v2871 = vadd.f32 0.0, %v2870
    %v2872 = vpop.f32.mrb[0].mxu0
    %2873 = vmatprep.mubr.f32.mxu0 0.0
    %2874 = vmatmul.mubr.f32.gmra.mrb[0].mxu0 %v2778
    %v2875 = vpop.f32.mrb[0].mxu0
    %v2876 = vadd.f32 0.0, %v2875
    %v2877 = vpop.f32.mrb[0].mxu0
    %2878 = vmatprep.mubr.f32.mxu0 0.0
    %2879 = vmatmul.mubr.f32.gmra.mrb[0].mxu0 %v2781
    %v2880 = vpop.f32.mrb[0].mxu0
    %v2881 = vadd.f32 0.0, %v2880
    %v2882 = vpop.f32.mrb[0].mxu0
    %2883 = vmatprep.mubr.f32.mxu0 0.0
    %2884 = vmatmul.mubr.f32.gmra.mrb[0].mxu0 %v2784
    %v2885 = vpop.f32.mrb[0].mxu0
    %v2886 = vadd.f32 0.0, %v2885
    %v2887 = vpop.f32.mrb[0].mxu0
    %2888 = vmatprep.mubr.f32.mxu0 0.0
    %2889 = vmatmul.mubr.f32.gmra.mrb[0].mxu0 %v2787
    %v2890 = vpop.f32.mrb[0].mxu0
    %v2891 = vadd.f32 0.0, %v2890
    %v2892 = vpop.f32.mrb[0].mxu0
    %2893 = vdwg.mxu0
    %2902 = vset.pattern.permute.xlu0 0
    %2903 = vperm.xlu0 %2902, %v2346
    %v2904 = vpop.permute.xlu0 %2903
    %2905 = vset.pattern.permute.xlu0 0
    %2906 = vperm.xlu0 %2905, %v2347
    %v2907 = vpop.permute.xlu0 %2906
    %2908 = vset.pattern.permute.xlu0 0
    %2909 = vperm.xlu0 %2908, %v2348
    %v2910 = vpop.permute.xlu0 %2909
    %2911 = vset.pattern.permute.xlu0 0
    %2912 = vperm.xlu0 %2911, %v2349
    %v2913 = vpop.permute.xlu0 %2912
    %2914 = vset.pattern.permute.xlu0 0
    %2915 = vperm.xlu0 %2914, %v2350
    %v2916 = vpop.permute.xlu0 %2915
    %2917 = vset.pattern.permute.xlu0 0
    %2918 = vperm.xlu0 %2917, %v2351
    %v2919 = vpop.permute.xlu0 %2918
    %2920 = vset.pattern.permute.xlu0 0
    %2921 = vperm.xlu0 %2920, %v2352
    %v2922 = vpop.permute.xlu0 %2921
    %2923 = vset.pattern.permute.xlu0 0
    %2924 = vperm.xlu0 %2923, %v2353
    %v2925 = vpop.permute.xlu0 %2924
    %v2926 = vlaneseq
    %v2927 = vshrl.u32 %v2926, 7
    %v2928 = vsub.s32 %v1687, %v2927
    %v2929 = vrot.slane %v2904, %v2928
    %v2930 = vlaneseq
    %v2931 = vshrl.u32 %v2930, 7
    %v2932 = vsub.s32 %v1692, %v2931
    %v2933 = vrot.slane %v2907, %v2932
    %v2934 = vsel %vm1697, %v2933, %v2929
    %v2935 = vlaneseq
    %v2936 = vshrl.u32 %v2935, 7
    %v2937 = vsub.s32 %v1699, %v2936
    %v2938 = vrot.slane %v2910, %v2937
    %v2939 = vsel %vm1704, %v2938, %v2934
    %v2940 = vlaneseq
    %v2941 = vshrl.u32 %v2940, 7
    %v2942 = vsub.s32 %v1706, %v2941
    %v2943 = vrot.slane %v2913, %v2942
    %v2944 = vsel %vm1711, %v2943, %v2939
    %v2945 = vlaneseq
    %v2946 = vshrl.u32 %v2945, 7
    %v2947 = vsub.s32 %v1713, %v2946
    %v2948 = vrot.slane %v2916, %v2947
    %v2949 = vsel %vm1718, %v2948, %v2944
    %v2950 = vlaneseq
    %v2951 = vshrl.u32 %v2950, 7
    %v2952 = vsub.s32 %v1720, %v2951
    %v2953 = vrot.slane %v2919, %v2952
    %v2954 = vsel %vm1725, %v2953, %v2949
    %v2955 = vlaneseq
    %v2956 = vshrl.u32 %v2955, 7
    %v2957 = vsub.s32 %v1727, %v2956
    %v2958 = vrot.slane %v2922, %v2957
    %v2959 = vsel %vm1732, %v2958, %v2954
    %v2960 = vlaneseq
    %v2961 = vshrl.u32 %v2960, 7
    %v2962 = vsub.s32 %v1734, %v2961
    %v2963 = vrot.slane %v2925, %v2962
    %v2964 = vsel %vm1739, %v2963, %v2959
    %v2965 = vsel %vm104, %v2964, 0
    %2967 = vmatprep.subr.mxu0 0.0
    %2968 = vmatpush1.msra.mxu0 %v2469
    %2969 = vmatprep.subr.mxu0 0.0
    %2970 = vmatpush1.msra.mxu0 %v2474
    %2971 = vmatprep.subr.mxu0 0.0
    %2972 = vmatpush1.msra.mxu0 %v2479
    %2973 = vmatprep.subr.mxu0 0.0
    %2974 = vmatpush1.msra.mxu0 %v2484
    %2975 = vmatprep.subr.mxu0 0.0
    %2976 = vmatpush1.msra.mxu0 %v2489
    %2977 = vmatprep.subr.mxu0 0.0
    %2978 = vmatpush1.msra.mxu0 %v2494
    %2979 = vmatprep.subr.mxu0 0.0
    %2980 = vmatpush1.msra.mxu0 %v2499
    %2981 = vmatprep.subr.mxu0 0.0
    %2982 = vmatpush1.msra.mxu0 %v2504
    %2983 = vmatprep.subr.mxu0 0.0
    %2984 = vmatpush1.msra.mxu0 0.0
    %2985 = vmatprep.subr.mxu0 0.0
    %2986 = vmatpush1.msra.mxu0 0.0
    %2987 = vmatprep.subr.mxu0 0.0
    %2988 = vmatpush1.msra.mxu0 0.0
    %2989 = vmatprep.subr.mxu0 0.0
    %2990 = vmatpush1.msra.mxu0 0.0
    %2991 = vmatprep.subr.mxu0 0.0
    %2992 = vmatpush1.msra.mxu0 0.0
    %2993 = vmatprep.subr.mxu0 0.0
    %2994 = vmatpush1.msra.mxu0 0.0
    %2995 = vmatprep.subr.mxu0 0.0
    %2996 = vmatpush1.msra.mxu0 0.0
    %2997 = vmatprep.subr.mxu0 0.0
    %2998 = vmatpush1.msra.mxu0 0.0
    %2999 = vmatprep.subr.mxu0 0.0
    %3000 = vmatpush1.msra.mxu0 0.0
    %3001 = vmatprep.subr.mxu0 0.0
    %3002 = vmatpush1.msra.mxu0 0.0
    %3003 = vmatprep.subr.mxu0 0.0
    %3004 = vmatpush1.msra.mxu0 0.0
    %3005 = vmatprep.subr.mxu0 0.0
    %3006 = vmatpush1.msra.mxu0 0.0
    %3007 = vmatprep.subr.mxu0 0.0
    %3008 = vmatpush1.msra.mxu0 0.0
    %3009 = vmatprep.subr.mxu0 0.0
    %3010 = vmatpush1.msra.mxu0 0.0
    %3011 = vmatprep.subr.mxu0 0.0
    %3012 = vmatpush1.msra.mxu0 0.0
    %3013 = vmatprep.subr.mxu0 0.0
    %3014 = vmatpush1.msra.mxu0 0.0
    %3015 = vmatprep.subr.mxu0 0.0
    %3016 = vmatpush1.msra.mxu0 0.0
    %3017 = vmatprep.subr.mxu0 0.0
    %3018 = vmatpush1.msra.mxu0 0.0
    %3019 = vmatprep.subr.mxu0 0.0
    %3020 = vmatpush1.msra.mxu0 0.0
    %3021 = vmatprep.subr.mxu0 0.0
    %3022 = vmatpush1.msra.mxu0 0.0
    %3023 = vmatprep.subr.mxu0 0.0
    %3024 = vmatpush1.msra.mxu0 0.0
    %3025 = vmatprep.subr.mxu0 0.0
    %3026 = vmatpush1.msra.mxu0 0.0
    %3027 = vmatprep.subr.mxu0 0.0
    %3028 = vmatpush1.msra.mxu0 0.0
    %3029 = vmatprep.subr.mxu0 0.0
    %3030 = vmatpush1.msra.mxu0 0.0
    %3031 = vmatprep.mubr.f32.mxu0 0.0
    %3032 = vmatmul.mubr.f32.gmra.mrb[0].mxu0 %v2965
    %v3033 = vpop.f32.mrb[0].mxu0
    %v3034 = vadd.f32 0.0, %v3033
    %v3035 = vpop.f32.mrb[0].mxu0
    %3036 = vdwg.mxu0
    %3045 = vset.pattern.permute.xlu0 0
    %3046 = vperm.xlu0 %3045, %v2354
    %v3047 = vpop.permute.xlu0 %3046
    %3048 = vset.pattern.permute.xlu0 0
    %3049 = vperm.xlu0 %3048, %v2355
    %v3050 = vpop.permute.xlu0 %3049
    %3051 = vset.pattern.permute.xlu0 0
    %3052 = vperm.xlu0 %3051, %v2356
    %v3053 = vpop.permute.xlu0 %3052
    %3054 = vset.pattern.permute.xlu0 0
    %3055 = vperm.xlu0 %3054, %v2357
    %v3056 = vpop.permute.xlu0 %3055
    %3057 = vset.pattern.permute.xlu0 0
    %3058 = vperm.xlu0 %3057, %v2358
    %v3059 = vpop.permute.xlu0 %3058
    %3060 = vset.pattern.permute.xlu0 0
    %3061 = vperm.xlu0 %3060, %v2359
    %v3062 = vpop.permute.xlu0 %3061
    %3063 = vset.pattern.permute.xlu0 0
    %3064 = vperm.xlu0 %3063, %v2360
    %v3065 = vpop.permute.xlu0 %3064
    %3066 = vset.pattern.permute.xlu0 0
    %3067 = vperm.xlu0 %3066, %v2361
    %v3068 = vpop.permute.xlu0 %3067
    %v3069 = vlaneseq
    %v3070 = vshrl.u32 %v3069, 7
    %v3071 = vsub.s32 %v1687, %v3070
    %v3072 = vrot.slane %v3047, %v3071
    %v3073 = vlaneseq
    %v3074 = vshrl.u32 %v3073, 7
    %v3075 = vsub.s32 %v1692, %v3074
    %v3076 = vrot.slane %v3050, %v3075
    %v3077 = vsel %vm1697, %v3076, %v3072
    %v3078 = vlaneseq
    %v3079 = vshrl.u32 %v3078, 7
    %v3080 = vsub.s32 %v1699, %v3079
    %v3081 = vrot.slane %v3053, %v3080
    %v3082 = vsel %vm1704, %v3081, %v3077
    %v3083 = vlaneseq
    %v3084 = vshrl.u32 %v3083, 7
    %v3085 = vsub.s32 %v1706, %v3084
    %v3086 = vrot.slane %v3056, %v3085
    %v3087 = vsel %vm1711, %v3086, %v3082
    %v3088 = vlaneseq
    %v3089 = vshrl.u32 %v3088, 7
    %v3090 = vsub.s32 %v1713, %v3089
    %v3091 = vrot.slane %v3059, %v3090
    %v3092 = vsel %vm1718, %v3091, %v3087
    %v3093 = vlaneseq
    %v3094 = vshrl.u32 %v3093, 7
    %v3095 = vsub.s32 %v1720, %v3094
    %v3096 = vrot.slane %v3062, %v3095
    %v3097 = vsel %vm1725, %v3096, %v3092
    %v3098 = vlaneseq
    %v3099 = vshrl.u32 %v3098, 7
    %v3100 = vsub.s32 %v1727, %v3099
    %v3101 = vrot.slane %v3065, %v3100
    %v3102 = vsel %vm1732, %v3101, %v3097
    %v3103 = vlaneseq
    %v3104 = vshrl.u32 %v3103, 7
    %v3105 = vsub.s32 %v1734, %v3104
    %v3106 = vrot.slane %v3068, %v3105
    %v3107 = vsel %vm1739, %v3106, %v3102
    %v3108 = vsel %vm104, %v3107, 0
    %3110 = vmatprep.subr.mxu0 0.0
    %3111 = vmatpush1.msra.mxu0 %v2598
    %3112 = vmatprep.subr.mxu0 0.0
    %3113 = vmatpush1.msra.mxu0 %v2603
    %3114 = vmatprep.subr.mxu0 0.0
    %3115 = vmatpush1.msra.mxu0 %v2608
    %3116 = vmatprep.subr.mxu0 0.0
    %3117 = vmatpush1.msra.mxu0 %v2613
    %3118 = vmatprep.subr.mxu0 0.0
    %3119 = vmatpush1.msra.mxu0 %v2618
    %3120 = vmatprep.subr.mxu0 0.0
    %3121 = vmatpush1.msra.mxu0 %v2623
    %3122 = vmatprep.subr.mxu0 0.0
    %3123 = vmatpush1.msra.mxu0 %v2628
    %3124 = vmatprep.subr.mxu0 0.0
    %3125 = vmatpush1.msra.mxu0 %v2633
    %3126 = vmatprep.subr.mxu0 0.0
    %3127 = vmatpush1.msra.mxu0 0.0
    %3128 = vmatprep.subr.mxu0 0.0
    %3129 = vmatpush1.msra.mxu0 0.0
    %3130 = vmatprep.subr.mxu0 0.0
    %3131 = vmatpush1.msra.mxu0 0.0
    %3132 = vmatprep.subr.mxu0 0.0
    %3133 = vmatpush1.msra.mxu0 0.0
    %3134 = vmatprep.subr.mxu0 0.0
    %3135 = vmatpush1.msra.mxu0 0.0
    %3136 = vmatprep.subr.mxu0 0.0
    %3137 = vmatpush1.msra.mxu0 0.0
    %3138 = vmatprep.subr.mxu0 0.0
    %3139 = vmatpush1.msra.mxu0 0.0
    %3140 = vmatprep.subr.mxu0 0.0
    %3141 = vmatpush1.msra.mxu0 0.0
    %3142 = vmatprep.subr.mxu0 0.0
    %3143 = vmatpush1.msra.mxu0 0.0
    %3144 = vmatprep.subr.mxu0 0.0
    %3145 = vmatpush1.msra.mxu0 0.0
    %3146 = vmatprep.subr.mxu0 0.0
    %3147 = vmatpush1.msra.mxu0 0.0
    %3148 = vmatprep.subr.mxu0 0.0
    %3149 = vmatpush1.msra.mxu0 0.0
    %3150 = vmatprep.subr.mxu0 0.0
    %3151 = vmatpush1.msra.mxu0 0.0
    %3152 = vmatprep.subr.mxu0 0.0
    %3153 = vmatpush1.msra.mxu0 0.0
    %3154 = vmatprep.subr.mxu0 0.0
    %3155 = vmatpush1.msra.mxu0 0.0
    %3156 = vmatprep.subr.mxu0 0.0
    %3157 = vmatpush1.msra.mxu0 0.0
    %3158 = vmatprep.subr.mxu0 0.0
    %3159 = vmatpush1.msra.mxu0 0.0
    %3160 = vmatprep.subr.mxu0 0.0
    %3161 = vmatpush1.msra.mxu0 0.0
    %3162 = vmatprep.subr.mxu0 0.0
    %3163 = vmatpush1.msra.mxu0 0.0
    %3164 = vmatprep.subr.mxu0 0.0
    %3165 = vmatpush1.msra.mxu0 0.0
    %3166 = vmatprep.subr.mxu0 0.0
    %3167 = vmatpush1.msra.mxu0 0.0
    %3168 = vmatprep.subr.mxu0 0.0
    %3169 = vmatpush1.msra.mxu0 0.0
    %3170 = vmatprep.subr.mxu0 0.0
    %3171 = vmatpush1.msra.mxu0 0.0
    %3172 = vmatprep.subr.mxu0 0.0
    %3173 = vmatpush1.msra.mxu0 0.0
    %3174 = vmatprep.mubr.f32.mxu0 0.0
    %3175 = vmatmul.mubr.f32.gmra.mrb[0].mxu0 %v3108
    %v3176 = vpop.f32.mrb[0].mxu0
    %v3177 = vadd.f32 0.0, %v3176
    %v3178 = vpop.f32.mrb[0].mxu0
    %3179 = vdwg.mxu0
    %3188 = vset.pattern.permute.xlu0 0
    %3189 = vperm.xlu0 %3188, %v2362
    %v3190 = vpop.permute.xlu0 %3189
    %3191 = vset.pattern.permute.xlu0 0
    %3192 = vperm.xlu0 %3191, %v2363
    %v3193 = vpop.permute.xlu0 %3192
    %3194 = vset.pattern.permute.xlu0 0
    %3195 = vperm.xlu0 %3194, %v2364
    %v3196 = vpop.permute.xlu0 %3195
    %3197 = vset.pattern.permute.xlu0 0
    %3198 = vperm.xlu0 %3197, %v2365
    %v3199 = vpop.permute.xlu0 %3198
    %3200 = vset.pattern.permute.xlu0 0
    %3201 = vperm.xlu0 %3200, %v2366
    %v3202 = vpop.permute.xlu0 %3201
    %3203 = vset.pattern.permute.xlu0 0
    %3204 = vperm.xlu0 %3203, %v2367
    %v3205 = vpop.permute.xlu0 %3204
    %3206 = vset.pattern.permute.xlu0 0
    %3207 = vperm.xlu0 %3206, %v2368
    %v3208 = vpop.permute.xlu0 %3207
    %3209 = vset.pattern.permute.xlu0 0
    %3210 = vperm.xlu0 %3209, %v2369
    %v3211 = vpop.permute.xlu0 %3210
    %v3212 = vlaneseq
    %v3213 = vshrl.u32 %v3212, 7
    %v3214 = vsub.s32 %v1687, %v3213
    %v3215 = vrot.slane %v3190, %v3214
    %v3216 = vlaneseq
    %v3217 = vshrl.u32 %v3216, 7
    %v3218 = vsub.s32 %v1692, %v3217
    %v3219 = vrot.slane %v3193, %v3218
    %v3220 = vsel %vm1697, %v3219, %v3215
    %v3221 = vlaneseq
    %v3222 = vshrl.u32 %v3221, 7
    %v3223 = vsub.s32 %v1699, %v3222
    %v3224 = vrot.slane %v3196, %v3223
    %v3225 = vsel %vm1704, %v3224, %v3220
    %v3226 = vlaneseq
    %v3227 = vshrl.u32 %v3226, 7
    %v3228 = vsub.s32 %v1706, %v3227
    %v3229 = vrot.slane %v3199, %v3228
    %v3230 = vsel %vm1711, %v3229, %v3225
    %v3231 = vlaneseq
    %v3232 = vshrl.u32 %v3231, 7
    %v3233 = vsub.s32 %v1713, %v3232
    %v3234 = vrot.slane %v3202, %v3233
    %v3235 = vsel %vm1718, %v3234, %v3230
    %v3236 = vlaneseq
    %v3237 = vshrl.u32 %v3236, 7
    %v3238 = vsub.s32 %v1720, %v3237
    %v3239 = vrot.slane %v3205, %v3238
    %v3240 = vsel %vm1725, %v3239, %v3235
    %v3241 = vlaneseq
    %v3242 = vshrl.u32 %v3241, 7
    %v3243 = vsub.s32 %v1727, %v3242
    %v3244 = vrot.slane %v3208, %v3243
    %v3245 = vsel %vm1732, %v3244, %v3240
    %v3246 = vlaneseq
    %v3247 = vshrl.u32 %v3246, 7
    %v3248 = vsub.s32 %v1734, %v3247
    %v3249 = vrot.slane %v3211, %v3248
    %v3250 = vsel %vm1739, %v3249, %v3245
    %v3251 = vsel %vm104, %v3250, 0
    %3253 = vmatprep.subr.mxu0 0.0
    %3254 = vmatpush1.msra.mxu0 %v2727
    %3255 = vmatprep.subr.mxu0 0.0
    %3256 = vmatpush1.msra.mxu0 %v2732
    %3257 = vmatprep.subr.mxu0 0.0
    %3258 = vmatpush1.msra.mxu0 %v2737
    %3259 = vmatprep.subr.mxu0 0.0
    %3260 = vmatpush1.msra.mxu0 %v2742
    %3261 = vmatprep.subr.mxu0 0.0
    %3262 = vmatpush1.msra.mxu0 %v2747
    %3263 = vmatprep.subr.mxu0 0.0
    %3264 = vmatpush1.msra.mxu0 %v2752
    %3265 = vmatprep.subr.mxu0 0.0
    %3266 = vmatpush1.msra.mxu0 %v2757
    %3267 = vmatprep.subr.mxu0 0.0
    %3268 = vmatpush1.msra.mxu0 %v2762
    %3269 = vmatprep.subr.mxu0 0.0
    %3270 = vmatpush1.msra.mxu0 0.0
    %3271 = vmatprep.subr.mxu0 0.0
    %3272 = vmatpush1.msra.mxu0 0.0
    %3273 = vmatprep.subr.mxu0 0.0
    %3274 = vmatpush1.msra.mxu0 0.0
    %3275 = vmatprep.subr.mxu0 0.0
    %3276 = vmatpush1.msra.mxu0 0.0
    %3277 = vmatprep.subr.mxu0 0.0
    %3278 = vmatpush1.msra.mxu0 0.0
    %3279 = vmatprep.subr.mxu0 0.0
    %3280 = vmatpush1.msra.mxu0 0.0
    %3281 = vmatprep.subr.mxu0 0.0
    %3282 = vmatpush1.msra.mxu0 0.0
    %3283 = vmatprep.subr.mxu0 0.0
    %3284 = vmatpush1.msra.mxu0 0.0
    %3285 = vmatprep.subr.mxu0 0.0
    %3286 = vmatpush1.msra.mxu0 0.0
    %3287 = vmatprep.subr.mxu0 0.0
    %3288 = vmatpush1.msra.mxu0 0.0
    %3289 = vmatprep.subr.mxu0 0.0
    %3290 = vmatpush1.msra.mxu0 0.0
    %3291 = vmatprep.subr.mxu0 0.0
    %3292 = vmatpush1.msra.mxu0 0.0
    %3293 = vmatprep.subr.mxu0 0.0
    %3294 = vmatpush1.msra.mxu0 0.0
    %3295 = vmatprep.subr.mxu0 0.0
    %3296 = vmatpush1.msra.mxu0 0.0
    %3297 = vmatprep.subr.mxu0 0.0
    %3298 = vmatpush1.msra.mxu0 0.0
    %3299 = vmatprep.subr.mxu0 0.0
    %3300 = vmatpush1.msra.mxu0 0.0
    %3301 = vmatprep.subr.mxu0 0.0
    %3302 = vmatpush1.msra.mxu0 0.0
    %3303 = vmatprep.subr.mxu0 0.0
    %3304 = vmatpush1.msra.mxu0 0.0
    %3305 = vmatprep.subr.mxu0 0.0
    %3306 = vmatpush1.msra.mxu0 0.0
    %3307 = vmatprep.subr.mxu0 0.0
    %3308 = vmatpush1.msra.mxu0 0.0
    %3309 = vmatprep.subr.mxu0 0.0
    %3310 = vmatpush1.msra.mxu0 0.0
    %3311 = vmatprep.subr.mxu0 0.0
    %3312 = vmatpush1.msra.mxu0 0.0
    %3313 = vmatprep.subr.mxu0 0.0
    %3314 = vmatpush1.msra.mxu0 0.0
    %3315 = vmatprep.subr.mxu0 0.0
    %3316 = vmatpush1.msra.mxu0 0.0
    %3317 = vmatprep.mubr.f32.mxu0 0.0
    %3318 = vmatmul.mubr.f32.gmra.mrb[0].mxu0 %v3251
    %v3319 = vpop.f32.mrb[0].mxu0
    %v3320 = vadd.f32 0.0, %v3319
    %v3321 = vpop.f32.mrb[0].mxu0
    %3322 = vdwg.mxu0
    %3331 = vset.pattern.permute.xlu0 0
    %3332 = vperm.xlu0 %3331, %v2370
    %v3333 = vpop.permute.xlu0 %3332
    %3334 = vset.pattern.permute.xlu0 0
    %3335 = vperm.xlu0 %3334, %v2371
    %v3336 = vpop.permute.xlu0 %3335
    %3337 = vset.pattern.permute.xlu0 0
    %3338 = vperm.xlu0 %3337, %v2372
    %v3339 = vpop.permute.xlu0 %3338
    %3340 = vset.pattern.permute.xlu0 0
    %3341 = vperm.xlu0 %3340, %v2373
    %v3342 = vpop.permute.xlu0 %3341
    %3343 = vset.pattern.permute.xlu0 0
    %3344 = vperm.xlu0 %3343, %v2374
    %v3345 = vpop.permute.xlu0 %3344
    %3346 = vset.pattern.permute.xlu0 0
    %3347 = vperm.xlu0 %3346, %v2375
    %v3348 = vpop.permute.xlu0 %3347
    %3349 = vset.pattern.permute.xlu0 0
    %3350 = vperm.xlu0 %3349, %v2376
    %v3351 = vpop.permute.xlu0 %3350
    %3352 = vset.pattern.permute.xlu0 0
    %3353 = vperm.xlu0 %3352, %v2377
    %v3354 = vpop.permute.xlu0 %3353
    %v3355 = vlaneseq
    %v3356 = vshrl.u32 %v3355, 7
    %v3357 = vsub.s32 %v1687, %v3356
    %v3358 = vrot.slane %v3333, %v3357
    %v3359 = vlaneseq
    %v3360 = vshrl.u32 %v3359, 7
    %v3361 = vsub.s32 %v1692, %v3360
    %v3362 = vrot.slane %v3336, %v3361
    %v3363 = vsel %vm1697, %v3362, %v3358
    %v3364 = vlaneseq
    %v3365 = vshrl.u32 %v3364, 7
    %v3366 = vsub.s32 %v1699, %v3365
    %v3367 = vrot.slane %v3339, %v3366
    %v3368 = vsel %vm1704, %v3367, %v3363
    %v3369 = vlaneseq
    %v3370 = vshrl.u32 %v3369, 7
    %v3371 = vsub.s32 %v1706, %v3370
    %v3372 = vrot.slane %v3342, %v3371
    %v3373 = vsel %vm1711, %v3372, %v3368
    %v3374 = vlaneseq
    %v3375 = vshrl.u32 %v3374, 7
    %v3376 = vsub.s32 %v1713, %v3375
    %v3377 = vrot.slane %v3345, %v3376
    %v3378 = vsel %vm1718, %v3377, %v3373
    %v3379 = vlaneseq
    %v3380 = vshrl.u32 %v3379, 7
    %v3381 = vsub.s32 %v1720, %v3380
    %v3382 = vrot.slane %v3348, %v3381
    %v3383 = vsel %vm1725, %v3382, %v3378
    %v3384 = vlaneseq
    %v3385 = vshrl.u32 %v3384, 7
    %v3386 = vsub.s32 %v1727, %v3385
    %v3387 = vrot.slane %v3351, %v3386
    %v3388 = vsel %vm1732, %v3387, %v3383
    %v3389 = vlaneseq
    %v3390 = vshrl.u32 %v3389, 7
    %v3391 = vsub.s32 %v1734, %v3390
    %v3392 = vrot.slane %v3354, %v3391
    %v3393 = vsel %vm1739, %v3392, %v3388
    %v3394 = vsel %vm104, %v3393, 0
    %3396 = vmatprep.subr.mxu0 0.0
    %3397 = vmatpush1.msra.mxu0 %v2856
    %3398 = vmatprep.subr.mxu0 0.0
    %3399 = vmatpush1.msra.mxu0 %v2861
    %3400 = vmatprep.subr.mxu0 0.0
    %3401 = vmatpush1.msra.mxu0 %v2866
    %3402 = vmatprep.subr.mxu0 0.0
    %3403 = vmatpush1.msra.mxu0 %v2871
    %3404 = vmatprep.subr.mxu0 0.0
    %3405 = vmatpush1.msra.mxu0 %v2876
    %3406 = vmatprep.subr.mxu0 0.0
    %3407 = vmatpush1.msra.mxu0 %v2881
    %3408 = vmatprep.subr.mxu0 0.0
    %3409 = vmatpush1.msra.mxu0 %v2886
    %3410 = vmatprep.subr.mxu0 0.0
    %3411 = vmatpush1.msra.mxu0 %v2891
    %3412 = vmatprep.subr.mxu0 0.0
    %3413 = vmatpush1.msra.mxu0 0.0
    %3414 = vmatprep.subr.mxu0 0.0
    %3415 = vmatpush1.msra.mxu0 0.0
    %3416 = vmatprep.subr.mxu0 0.0
    %3417 = vmatpush1.msra.mxu0 0.0
    %3418 = vmatprep.subr.mxu0 0.0
    %3419 = vmatpush1.msra.mxu0 0.0
    %3420 = vmatprep.subr.mxu0 0.0
    %3421 = vmatpush1.msra.mxu0 0.0
    %3422 = vmatprep.subr.mxu0 0.0
    %3423 = vmatpush1.msra.mxu0 0.0
    %3424 = vmatprep.subr.mxu0 0.0
    %3425 = vmatpush1.msra.mxu0 0.0
    %3426 = vmatprep.subr.mxu0 0.0
    %3427 = vmatpush1.msra.mxu0 0.0
    %3428 = vmatprep.subr.mxu0 0.0
    %3429 = vmatpush1.msra.mxu0 0.0
    %3430 = vmatprep.subr.mxu0 0.0
    %3431 = vmatpush1.msra.mxu0 0.0
    %3432 = vmatprep.subr.mxu0 0.0
    %3433 = vmatpush1.msra.mxu0 0.0
    %3434 = vmatprep.subr.mxu0 0.0
    %3435 = vmatpush1.msra.mxu0 0.0
    %3436 = vmatprep.subr.mxu0 0.0
    %3437 = vmatpush1.msra.mxu0 0.0
    %3438 = vmatprep.subr.mxu0 0.0
    %3439 = vmatpush1.msra.mxu0 0.0
    %3440 = vmatprep.subr.mxu0 0.0
    %3441 = vmatpush1.msra.mxu0 0.0
    %3442 = vmatprep.subr.mxu0 0.0
    %3443 = vmatpush1.msra.mxu0 0.0
    %3444 = vmatprep.subr.mxu0 0.0
    %3445 = vmatpush1.msra.mxu0 0.0
    %3446 = vmatprep.subr.mxu0 0.0
    %3447 = vmatpush1.msra.mxu0 0.0
    %3448 = vmatprep.subr.mxu0 0.0
    %3449 = vmatpush1.msra.mxu0 0.0
    %3450 = vmatprep.subr.mxu0 0.0
    %3451 = vmatpush1.msra.mxu0 0.0
    %3452 = vmatprep.subr.mxu0 0.0
    %3453 = vmatpush1.msra.mxu0 0.0
    %3454 = vmatprep.subr.mxu0 0.0
    %3455 = vmatpush1.msra.mxu0 0.0
    %3456 = vmatprep.subr.mxu0 0.0
    %3457 = vmatpush1.msra.mxu0 0.0
    %3458 = vmatprep.subr.mxu0 0.0
    %3459 = vmatpush1.msra.mxu0 0.0
    %3460 = vmatprep.mubr.f32.mxu0 0.0
    %3461 = vmatmul.mubr.f32.gmra.mrb[0].mxu0 %v3394
    %v3462 = vpop.f32.mrb[0].mxu0
    %v3463 = vadd.f32 0.0, %v3462
    %v3464 = vpop.f32.mrb[0].mxu0
    %3465 = vdwg.mxu0
    %v3470 = vlaneseq
    %v3471 = vshrl.u32 %v3470, 7
    %v3472 = vsub.s32 0, %v3471
    %v3473 = vrot.slane %v3034, %v3472
    %3475 = vbcast.lane.b32.xlu0 %v3473, 256
    %v3476 = vpop.permute.xlu0 %3475
    %s3478 = sor.u32 256, 8
    %3479 = vbcast.lane.b32.xlu0 %v3473, %s3478
    %v3480 = vpop.permute.xlu0 %3479
    %s3482 = sor.u32 256, 16
    %3483 = vbcast.lane.b32.xlu0 %v3473, %s3482
    %v3484 = vpop.permute.xlu0 %3483
    %s3486 = sor.u32 256, 24
    %3487 = vbcast.lane.b32.xlu0 %v3473, %s3486
    %v3488 = vpop.permute.xlu0 %3487
    %s3490 = sor.u32 256, 32
    %3491 = vbcast.lane.b32.xlu0 %v3473, %s3490
    %v3492 = vpop.permute.xlu0 %3491
    %s3494 = sor.u32 256, 40
    %3495 = vbcast.lane.b32.xlu0 %v3473, %s3494
    %v3496 = vpop.permute.xlu0 %3495
    %s3498 = sor.u32 256, 48
    %3499 = vbcast.lane.b32.xlu0 %v3473, %s3498
    %v3500 = vpop.permute.xlu0 %3499
    %s3502 = sor.u32 256, 56
    %3503 = vbcast.lane.b32.xlu0 %v3473, %s3502
    %v3504 = vpop.permute.xlu0 %3503
    %v3505 = vlaneseq
    %v3506 = vshrl.u32 %v3505, 7
    %v3507 = vsub.s32 0, %v3506
    %v3508 = vrot.slane %v3177, %v3507
    %3510 = vbcast.lane.b32.xlu0 %v3508, 256
    %v3511 = vpop.permute.xlu0 %3510
    %s3513 = sor.u32 256, 8
    %3514 = vbcast.lane.b32.xlu0 %v3508, %s3513
    %v3515 = vpop.permute.xlu0 %3514
    %s3517 = sor.u32 256, 16
    %3518 = vbcast.lane.b32.xlu0 %v3508, %s3517
    %v3519 = vpop.permute.xlu0 %3518
    %s3521 = sor.u32 256, 24
    %3522 = vbcast.lane.b32.xlu0 %v3508, %s3521
    %v3523 = vpop.permute.xlu0 %3522
    %s3525 = sor.u32 256, 32
    %3526 = vbcast.lane.b32.xlu0 %v3508, %s3525
    %v3527 = vpop.permute.xlu0 %3526
    %s3529 = sor.u32 256, 40
    %3530 = vbcast.lane.b32.xlu0 %v3508, %s3529
    %v3531 = vpop.permute.xlu0 %3530
    %s3533 = sor.u32 256, 48
    %3534 = vbcast.lane.b32.xlu0 %v3508, %s3533
    %v3535 = vpop.permute.xlu0 %3534
    %s3537 = sor.u32 256, 56
    %3538 = vbcast.lane.b32.xlu0 %v3508, %s3537
    %v3539 = vpop.permute.xlu0 %3538
    %v3540 = vlaneseq
    %v3541 = vshrl.u32 %v3540, 7
    %v3542 = vsub.s32 0, %v3541
    %v3543 = vrot.slane %v3320, %v3542
    %3545 = vbcast.lane.b32.xlu0 %v3543, 256
    %v3546 = vpop.permute.xlu0 %3545
    %s3548 = sor.u32 256, 8
    %3549 = vbcast.lane.b32.xlu0 %v3543, %s3548
    %v3550 = vpop.permute.xlu0 %3549
    %s3552 = sor.u32 256, 16
    %3553 = vbcast.lane.b32.xlu0 %v3543, %s3552
    %v3554 = vpop.permute.xlu0 %3553
    %s3556 = sor.u32 256, 24
    %3557 = vbcast.lane.b32.xlu0 %v3543, %s3556
    %v3558 = vpop.permute.xlu0 %3557
    %s3560 = sor.u32 256, 32
    %3561 = vbcast.lane.b32.xlu0 %v3543, %s3560
    %v3562 = vpop.permute.xlu0 %3561
    %s3564 = sor.u32 256, 40
    %3565 = vbcast.lane.b32.xlu0 %v3543, %s3564
    %v3566 = vpop.permute.xlu0 %3565
    %s3568 = sor.u32 256, 48
    %3569 = vbcast.lane.b32.xlu0 %v3543, %s3568
    %v3570 = vpop.permute.xlu0 %3569
    %s3572 = sor.u32 256, 56
    %3573 = vbcast.lane.b32.xlu0 %v3543, %s3572
    %v3574 = vpop.permute.xlu0 %3573
    %v3575 = vlaneseq
    %v3576 = vshrl.u32 %v3575, 7
    %v3577 = vsub.s32 0, %v3576
    %v3578 = vrot.slane %v3463, %v3577
    %3580 = vbcast.lane.b32.xlu0 %v3578, 256
    %v3581 = vpop.permute.xlu0 %3580
    %s3583 = sor.u32 256, 8
    %3584 = vbcast.lane.b32.xlu0 %v3578, %s3583
    %v3585 = vpop.permute.xlu0 %3584
    %s3587 = sor.u32 256, 16
    %3588 = vbcast.lane.b32.xlu0 %v3578, %s3587
    %v3589 = vpop.permute.xlu0 %3588
    %s3591 = sor.u32 256, 24
    %3592 = vbcast.lane.b32.xlu0 %v3578, %s3591
    %v3593 = vpop.permute.xlu0 %3592
    %s3595 = sor.u32 256, 32
    %3596 = vbcast.lane.b32.xlu0 %v3578, %s3595
    %v3597 = vpop.permute.xlu0 %3596
    %s3599 = sor.u32 256, 40
    %3600 = vbcast.lane.b32.xlu0 %v3578, %s3599
    %v3601 = vpop.permute.xlu0 %3600
    %s3603 = sor.u32 256, 48
    %3604 = vbcast.lane.b32.xlu0 %v3578, %s3603
    %v3605 = vpop.permute.xlu0 %3604
    %s3607 = sor.u32 256, 56
    %3608 = vbcast.lane.b32.xlu0 %v3578, %s3607
    %v3609 = vpop.permute.xlu0 %3608
    %v3642 = vadd.f32 %v2346, %v3476
    %v3643 = vadd.f32 %v2347, %v3480
    %v3644 = vadd.f32 %v2348, %v3484
    %v3645 = vadd.f32 %v2349, %v3488
    %v3646 = vadd.f32 %v2350, %v3492
    %v3647 = vadd.f32 %v2351, %v3496
    %v3648 = vadd.f32 %v2352, %v3500
    %v3649 = vadd.f32 %v2353, %v3504
    %v3650 = vadd.f32 %v2354, %v3511
    %v3651 = vadd.f32 %v2355, %v3515
    %v3652 = vadd.f32 %v2356, %v3519
    %v3653 = vadd.f32 %v2357, %v3523
    %v3654 = vadd.f32 %v2358, %v3527
    %v3655 = vadd.f32 %v2359, %v3531
    %v3656 = vadd.f32 %v2360, %v3535
    %v3657 = vadd.f32 %v2361, %v3539
    %v3658 = vadd.f32 %v2362, %v3546
    %v3659 = vadd.f32 %v2363, %v3550
    %v3660 = vadd.f32 %v2364, %v3554
    %v3661 = vadd.f32 %v2365, %v3558
    %v3662 = vadd.f32 %v2366, %v3562
    %v3663 = vadd.f32 %v2367, %v3566
    %v3664 = vadd.f32 %v2368, %v3570
    %v3665 = vadd.f32 %v2369, %v3574
    %v3666 = vadd.f32 %v2370, %v3581
    %v3667 = vadd.f32 %v2371, %v3585
    %v3668 = vadd.f32 %v2372, %v3589
    %v3669 = vadd.f32 %v2373, %v3593
    %v3670 = vadd.f32 %v2374, %v3597
    %v3671 = vadd.f32 %v2375, %v3601
    %v3672 = vadd.f32 %v2376, %v3605
    %v3673 = vadd.f32 %v2377, %v3609
    %v3675 = vsel %vm104, %v2469, 0
    %v3678 = vsel %vm104, %v2474, 0
    %v3681 = vsel %vm104, %v2479, 0
    %v3684 = vsel %vm104, %v2484, 0
    %v3687 = vsel %vm104, %v2489, 0
    %v3690 = vsel %vm104, %v2494, 0
    %v3693 = vsel %vm104, %v2499, 0
    %v3696 = vsel %vm104, %v2504, 0
    %3698 = vmatprep.subr.mxu0 0.0
    %3699 = vmatpush1.msra.mxu0 %v2469
    %3700 = vmatprep.subr.mxu0 0.0
    %3701 = vmatpush1.msra.mxu0 %v2474
    %3702 = vmatprep.subr.mxu0 0.0
    %3703 = vmatpush1.msra.mxu0 %v2479
    %3704 = vmatprep.subr.mxu0 0.0
    %3705 = vmatpush1.msra.mxu0 %v2484
    %3706 = vmatprep.subr.mxu0 0.0
    %3707 = vmatpush1.msra.mxu0 %v2489
    %3708 = vmatprep.subr.mxu0 0.0
    %3709 = vmatpush1.msra.mxu0 %v2494
    %3710 = vmatprep.subr.mxu0 0.0
    %3711 = vmatpush1.msra.mxu0 %v2499
    %3712 = vmatprep.subr.mxu0 0.0
    %3713 = vmatpush1.msra.mxu0 %v2504
    %3714 = vmatprep.subr.mxu0 0.0
    %3715 = vmatpush1.msra.mxu0 0.0
    %3716 = vmatprep.subr.mxu0 0.0
    %3717 = vmatpush1.msra.mxu0 0.0
    %3718 = vmatprep.subr.mxu0 0.0
    %3719 = vmatpush1.msra.mxu0 0.0
    %3720 = vmatprep.subr.mxu0 0.0
    %3721 = vmatpush1.msra.mxu0 0.0
    %3722 = vmatprep.subr.mxu0 0.0
    %3723 = vmatpush1.msra.mxu0 0.0
    %3724 = vmatprep.subr.mxu0 0.0
    %3725 = vmatpush1.msra.mxu0 0.0
    %3726 = vmatprep.subr.mxu0 0.0
    %3727 = vmatpush1.msra.mxu0 0.0
    %3728 = vmatprep.subr.mxu0 0.0
    %3729 = vmatpush1.msra.mxu0 0.0
    %3730 = vmatprep.subr.mxu0 0.0
    %3731 = vmatpush1.msra.mxu0 0.0
    %3732 = vmatprep.subr.mxu0 0.0
    %3733 = vmatpush1.msra.mxu0 0.0
    %3734 = vmatprep.subr.mxu0 0.0
    %3735 = vmatpush1.msra.mxu0 0.0
    %3736 = vmatprep.subr.mxu0 0.0
    %3737 = vmatpush1.msra.mxu0 0.0
    %3738 = vmatprep.subr.mxu0 0.0
    %3739 = vmatpush1.msra.mxu0 0.0
    %3740 = vmatprep.subr.mxu0 0.0
    %3741 = vmatpush1.msra.mxu0 0.0
    %3742 = vmatprep.subr.mxu0 0.0
    %3743 = vmatpush1.msra.mxu0 0.0
    %3744 = vmatprep.subr.mxu0 0.0
    %3745 = vmatpush1.msra.mxu0 0.0
    %3746 = vmatprep.subr.mxu0 0.0
    %3747 = vmatpush1.msra.mxu0 0.0
    %3748 = vmatprep.subr.mxu0 0.0
    %3749 = vmatpush1.msra.mxu0 0.0
    %3750 = vmatprep.subr.mxu0 0.0
    %3751 = vmatpush1.msra.mxu0 0.0
    %3752 = vmatprep.subr.mxu0 0.0
    %3753 = vmatpush1.msra.mxu0 0.0
    %3754 = vmatprep.subr.mxu0 0.0
    %3755 = vmatpush1.msra.mxu0 0.0
    %3756 = vmatprep.subr.mxu0 0.0
    %3757 = vmatpush1.msra.mxu0 0.0
    %3758 = vmatprep.subr.mxu0 0.0
    %3759 = vmatpush1.msra.mxu0 0.0
    %3760 = vmatprep.subr.mxu0 0.0
    %3761 = vmatpush1.msra.mxu0 0.0
    %3762 = vmatprep.mubr.f32.mxu0 0.0
    %3763 = vmatmul.mubr.f32.gmra.mrb[0].mxu0 %v3675
    %v3764 = vpop.f32.mrb[0].mxu0
    %v3765 = vadd.f32 0.0, %v3764
    %v3766 = vpop.f32.mrb[0].mxu0
    %3767 = vmatprep.mubr.f32.mxu0 0.0
    %3768 = vmatmul.mubr.f32.gmra.mrb[0].mxu0 %v3678
    %v3769 = vpop.f32.mrb[0].mxu0
    %v3770 = vadd.f32 0.0, %v3769
    %v3771 = vpop.f32.mrb[0].mxu0
    %3772 = vmatprep.mubr.f32.mxu0 0.0
    %3773 = vmatmul.mubr.f32.gmra.mrb[0].mxu0 %v3681
    %v3774 = vpop.f32.mrb[0].mxu0
    %v3775 = vadd.f32 0.0, %v3774
    %v3776 = vpop.f32.mrb[0].mxu0
    %3777 = vmatprep.mubr.f32.mxu0 0.0
    %3778 = vmatmul.mubr.f32.gmra.mrb[0].mxu0 %v3684
    %v3779 = vpop.f32.mrb[0].mxu0
    %v3780 = vadd.f32 0.0, %v3779
    %v3781 = vpop.f32.mrb[0].mxu0
    %3782 = vmatprep.mubr.f32.mxu0 0.0
    %3783 = vmatmul.mubr.f32.gmra.mrb[0].mxu0 %v3687
    %v3784 = vpop.f32.mrb[0].mxu0
    %v3785 = vadd.f32 0.0, %v3784
    %v3786 = vpop.f32.mrb[0].mxu0
    %3787 = vmatprep.mubr.f32.mxu0 0.0
    %3788 = vmatmul.mubr.f32.gmra.mrb[0].mxu0 %v3690
    %v3789 = vpop.f32.mrb[0].mxu0
    %v3790 = vadd.f32 0.0, %v3789
    %v3791 = vpop.f32.mrb[0].mxu0
    %3792 = vmatprep.mubr.f32.mxu0 0.0
    %3793 = vmatmul.mubr.f32.gmra.mrb[0].mxu0 %v3693
    %v3794 = vpop.f32.mrb[0].mxu0
    %v3795 = vadd.f32 0.0, %v3794
    %v3796 = vpop.f32.mrb[0].mxu0
    %3797 = vmatprep.mubr.f32.mxu0 0.0
    %3798 = vmatmul.mubr.f32.gmra.mrb[0].mxu0 %v3696
    %v3799 = vpop.f32.mrb[0].mxu0
    %v3800 = vadd.f32 0.0, %v3799
    %v3801 = vpop.f32.mrb[0].mxu0
    %3802 = vdwg.mxu0
    %v3804 = vsel %vm104, %v2598, 0
    %v3807 = vsel %vm104, %v2603, 0
    %v3810 = vsel %vm104, %v2608, 0
    %v3813 = vsel %vm104, %v2613, 0
    %v3816 = vsel %vm104, %v2618, 0
    %v3819 = vsel %vm104, %v2623, 0
    %v3822 = vsel %vm104, %v2628, 0
    %v3825 = vsel %vm104, %v2633, 0
    %3827 = vmatprep.subr.mxu0 0.0
    %3828 = vmatpush1.msra.mxu0 %v2598
    %3829 = vmatprep.subr.mxu0 0.0
    %3830 = vmatpush1.msra.mxu0 %v2603
    %3831 = vmatprep.subr.mxu0 0.0
    %3832 = vmatpush1.msra.mxu0 %v2608
    %3833 = vmatprep.subr.mxu0 0.0
    %3834 = vmatpush1.msra.mxu0 %v2613
    %3835 = vmatprep.subr.mxu0 0.0
    %3836 = vmatpush1.msra.mxu0 %v2618
    %3837 = vmatprep.subr.mxu0 0.0
    %3838 = vmatpush1.msra.mxu0 %v2623
    %3839 = vmatprep.subr.mxu0 0.0
    %3840 = vmatpush1.msra.mxu0 %v2628
    %3841 = vmatprep.subr.mxu0 0.0
    %3842 = vmatpush1.msra.mxu0 %v2633
    %3843 = vmatprep.subr.mxu0 0.0
    %3844 = vmatpush1.msra.mxu0 0.0
    %3845 = vmatprep.subr.mxu0 0.0
    %3846 = vmatpush1.msra.mxu0 0.0
    %3847 = vmatprep.subr.mxu0 0.0
    %3848 = vmatpush1.msra.mxu0 0.0
    %3849 = vmatprep.subr.mxu0 0.0
    %3850 = vmatpush1.msra.mxu0 0.0
    %3851 = vmatprep.subr.mxu0 0.0
    %3852 = vmatpush1.msra.mxu0 0.0
    %3853 = vmatprep.subr.mxu0 0.0
    %3854 = vmatpush1.msra.mxu0 0.0
    %3855 = vmatprep.subr.mxu0 0.0
    %3856 = vmatpush1.msra.mxu0 0.0
    %3857 = vmatprep.subr.mxu0 0.0
    %3858 = vmatpush1.msra.mxu0 0.0
    %3859 = vmatprep.subr.mxu0 0.0
    %3860 = vmatpush1.msra.mxu0 0.0
    %3861 = vmatprep.subr.mxu0 0.0
    %3862 = vmatpush1.msra.mxu0 0.0
    %3863 = vmatprep.subr.mxu0 0.0
    %3864 = vmatpush1.msra.mxu0 0.0
    %3865 = vmatprep.subr.mxu0 0.0
    %3866 = vmatpush1.msra.mxu0 0.0
    %3867 = vmatprep.subr.mxu0 0.0
    %3868 = vmatpush1.msra.mxu0 0.0
    %3869 = vmatprep.subr.mxu0 0.0
    %3870 = vmatpush1.msra.mxu0 0.0
    %3871 = vmatprep.subr.mxu0 0.0
    %3872 = vmatpush1.msra.mxu0 0.0
    %3873 = vmatprep.subr.mxu0 0.0
    %3874 = vmatpush1.msra.mxu0 0.0
    %3875 = vmatprep.subr.mxu0 0.0
    %3876 = vmatpush1.msra.mxu0 0.0
    %3877 = vmatprep.subr.mxu0 0.0
    %3878 = vmatpush1.msra.mxu0 0.0
    %3879 = vmatprep.subr.mxu0 0.0
    %3880 = vmatpush1.msra.mxu0 0.0
    %3881 = vmatprep.subr.mxu0 0.0
    %3882 = vmatpush1.msra.mxu0 0.0
    %3883 = vmatprep.subr.mxu0 0.0
    %3884 = vmatpush1.msra.mxu0 0.0
    %3885 = vmatprep.subr.mxu0 0.0
    %3886 = vmatpush1.msra.mxu0 0.0
    %3887 = vmatprep.subr.mxu0 0.0
    %3888 = vmatpush1.msra.mxu0 0.0
    %3889 = vmatprep.subr.mxu0 0.0
    %3890 = vmatpush1.msra.mxu0 0.0
    %3891 = vmatprep.mubr.f32.mxu0 0.0
    %3892 = vmatmul.mubr.f32.gmra.mrb[0].mxu0 %v3804
    %v3893 = vpop.f32.mrb[0].mxu0
    %v3894 = vadd.f32 0.0, %v3893
    %v3895 = vpop.f32.mrb[0].mxu0
    %3896 = vmatprep.mubr.f32.mxu0 0.0
    %3897 = vmatmul.mubr.f32.gmra.mrb[0].mxu0 %v3807
    %v3898 = vpop.f32.mrb[0].mxu0
    %v3899 = vadd.f32 0.0, %v3898
    %v3900 = vpop.f32.mrb[0].mxu0
    %3901 = vmatprep.mubr.f32.mxu0 0.0
    %3902 = vmatmul.mubr.f32.gmra.mrb[0].mxu0 %v3810
    %v3903 = vpop.f32.mrb[0].mxu0
    %v3904 = vadd.f32 0.0, %v3903
    %v3905 = vpop.f32.mrb[0].mxu0
    %3906 = vmatprep.mubr.f32.mxu0 0.0
    %3907 = vmatmul.mubr.f32.gmra.mrb[0].mxu0 %v3813
    %v3908 = vpop.f32.mrb[0].mxu0
    %v3909 = vadd.f32 0.0, %v3908
    %v3910 = vpop.f32.mrb[0].mxu0
    %3911 = vmatprep.mubr.f32.mxu0 0.0
    %3912 = vmatmul.mubr.f32.gmra.mrb[0].mxu0 %v3816
    %v3913 = vpop.f32.mrb[0].mxu0
    %v3914 = vadd.f32 0.0, %v3913
    %v3915 = vpop.f32.mrb[0].mxu0
    %3916 = vmatprep.mubr.f32.mxu0 0.0
    %3917 = vmatmul.mubr.f32.gmra.mrb[0].mxu0 %v3819
    %v3918 = vpop.f32.mrb[0].mxu0
    %v3919 = vadd.f32 0.0, %v3918
    %v3920 = vpop.f32.mrb[0].mxu0
    %3921 = vmatprep.mubr.f32.mxu0 0.0
    %3922 = vmatmul.mubr.f32.gmra.mrb[0].mxu0 %v3822
    %v3923 = vpop.f32.mrb[0].mxu0
    %v3924 = vadd.f32 0.0, %v3923
    %v3925 = vpop.f32.mrb[0].mxu0
    %3926 = vmatprep.mubr.f32.mxu0 0.0
    %3927 = vmatmul.mubr.f32.gmra.mrb[0].mxu0 %v3825
    %v3928 = vpop.f32.mrb[0].mxu0
    %v3929 = vadd.f32 0.0, %v3928
    %v3930 = vpop.f32.mrb[0].mxu0
    %3931 = vdwg.mxu0
    %v3933 = vsel %vm104, %v2727, 0
    %v3936 = vsel %vm104, %v2732, 0
    %v3939 = vsel %vm104, %v2737, 0
    %v3942 = vsel %vm104, %v2742, 0
    %v3945 = vsel %vm104, %v2747, 0
    %v3948 = vsel %vm104, %v2752, 0
    %v3951 = vsel %vm104, %v2757, 0
    %v3954 = vsel %vm104, %v2762, 0
    %3956 = vmatprep.subr.mxu0 0.0
    %3957 = vmatpush1.msra.mxu0 %v2727
    %3958 = vmatprep.subr.mxu0 0.0
    %3959 = vmatpush1.msra.mxu0 %v2732
    %3960 = vmatprep.subr.mxu0 0.0
    %3961 = vmatpush1.msra.mxu0 %v2737
    %3962 = vmatprep.subr.mxu0 0.0
    %3963 = vmatpush1.msra.mxu0 %v2742
    %3964 = vmatprep.subr.mxu0 0.0
    %3965 = vmatpush1.msra.mxu0 %v2747
    %3966 = vmatprep.subr.mxu0 0.0
    %3967 = vmatpush1.msra.mxu0 %v2752
    %3968 = vmatprep.subr.mxu0 0.0
    %3969 = vmatpush1.msra.mxu0 %v2757
    %3970 = vmatprep.subr.mxu0 0.0
    %3971 = vmatpush1.msra.mxu0 %v2762
    %3972 = vmatprep.subr.mxu0 0.0
    %3973 = vmatpush1.msra.mxu0 0.0
    %3974 = vmatprep.subr.mxu0 0.0
    %3975 = vmatpush1.msra.mxu0 0.0
    %3976 = vmatprep.subr.mxu0 0.0
    %3977 = vmatpush1.msra.mxu0 0.0
    %3978 = vmatprep.subr.mxu0 0.0
    %3979 = vmatpush1.msra.mxu0 0.0
    %3980 = vmatprep.subr.mxu0 0.0
    %3981 = vmatpush1.msra.mxu0 0.0
    %3982 = vmatprep.subr.mxu0 0.0
    %3983 = vmatpush1.msra.mxu0 0.0
    %3984 = vmatprep.subr.mxu0 0.0
    %3985 = vmatpush1.msra.mxu0 0.0
    %3986 = vmatprep.subr.mxu0 0.0
    %3987 = vmatpush1.msra.mxu0 0.0
    %3988 = vmatprep.subr.mxu0 0.0
    %3989 = vmatpush1.msra.mxu0 0.0
    %3990 = vmatprep.subr.mxu0 0.0
    %3991 = vmatpush1.msra.mxu0 0.0
    %3992 = vmatprep.subr.mxu0 0.0
    %3993 = vmatpush1.msra.mxu0 0.0
    %3994 = vmatprep.subr.mxu0 0.0
    %3995 = vmatpush1.msra.mxu0 0.0
    %3996 = vmatprep.subr.mxu0 0.0
    %3997 = vmatpush1.msra.mxu0 0.0
    %3998 = vmatprep.subr.mxu0 0.0
    %3999 = vmatpush1.msra.mxu0 0.0
    %4000 = vmatprep.subr.mxu0 0.0
    %4001 = vmatpush1.msra.mxu0 0.0
    %4002 = vmatprep.subr.mxu0 0.0
    %4003 = vmatpush1.msra.mxu0 0.0
    %4004 = vmatprep.subr.mxu0 0.0
    %4005 = vmatpush1.msra.mxu0 0.0
    %4006 = vmatprep.subr.mxu0 0.0
    %4007 = vmatpush1.msra.mxu0 0.0
    %4008 = vmatprep.subr.mxu0 0.0
    %4009 = vmatpush1.msra.mxu0 0.0
    %4010 = vmatprep.subr.mxu0 0.0
    %4011 = vmatpush1.msra.mxu0 0.0
    %4012 = vmatprep.subr.mxu0 0.0
    %4013 = vmatpush1.msra.mxu0 0.0
    %4014 = vmatprep.subr.mxu0 0.0
    %4015 = vmatpush1.msra.mxu0 0.0
    %4016 = vmatprep.subr.mxu0 0.0
    %4017 = vmatpush1.msra.mxu0 0.0
    %4018 = vmatprep.subr.mxu0 0.0
    %4019 = vmatpush1.msra.mxu0 0.0
    %4020 = vmatprep.mubr.f32.mxu0 0.0
    %4021 = vmatmul.mubr.f32.gmra.mrb[0].mxu0 %v3933
    %v4022 = vpop.f32.mrb[0].mxu0
    %v4023 = vadd.f32 0.0, %v4022
    %v4024 = vpop.f32.mrb[0].mxu0
    %4025 = vmatprep.mubr.f32.mxu0 0.0
    %4026 = vmatmul.mubr.f32.gmra.mrb[0].mxu0 %v3936
    %v4027 = vpop.f32.mrb[0].mxu0
    %v4028 = vadd.f32 0.0, %v4027
    %v4029 = vpop.f32.mrb[0].mxu0
    %4030 = vmatprep.mubr.f32.mxu0 0.0
    %4031 = vmatmul.mubr.f32.gmra.mrb[0].mxu0 %v3939
    %v4032 = vpop.f32.mrb[0].mxu0
    %v4033 = vadd.f32 0.0, %v4032
    %v4034 = vpop.f32.mrb[0].mxu0
    %4035 = vmatprep.mubr.f32.mxu0 0.0
    %4036 = vmatmul.mubr.f32.gmra.mrb[0].mxu0 %v3942
    %v4037 = vpop.f32.mrb[0].mxu0
    %v4038 = vadd.f32 0.0, %v4037
    %v4039 = vpop.f32.mrb[0].mxu0
    %4040 = vmatprep.mubr.f32.mxu0 0.0
    %4041 = vmatmul.mubr.f32.gmra.mrb[0].mxu0 %v3945
    %v4042 = vpop.f32.mrb[0].mxu0
    %v4043 = vadd.f32 0.0, %v4042
    %v4044 = vpop.f32.mrb[0].mxu0
    %4045 = vmatprep.mubr.f32.mxu0 0.0
    %4046 = vmatmul.mubr.f32.gmra.mrb[0].mxu0 %v3948
    %v4047 = vpop.f32.mrb[0].mxu0
    %v4048 = vadd.f32 0.0, %v4047
    %v4049 = vpop.f32.mrb[0].mxu0
    %4050 = vmatprep.mubr.f32.mxu0 0.0
    %4051 = vmatmul.mubr.f32.gmra.mrb[0].mxu0 %v3951
    %v4052 = vpop.f32.mrb[0].mxu0
    %v4053 = vadd.f32 0.0, %v4052
    %v4054 = vpop.f32.mrb[0].mxu0
    %4055 = vmatprep.mubr.f32.mxu0 0.0
    %4056 = vmatmul.mubr.f32.gmra.mrb[0].mxu0 %v3954
    %v4057 = vpop.f32.mrb[0].mxu0
    %v4058 = vadd.f32 0.0, %v4057
    %v4059 = vpop.f32.mrb[0].mxu0
    %4060 = vdwg.mxu0
    %v4062 = vsel %vm104, %v2856, 0
    %v4065 = vsel %vm104, %v2861, 0
    %v4068 = vsel %vm104, %v2866, 0
    %v4071 = vsel %vm104, %v2871, 0
    %v4074 = vsel %vm104, %v2876, 0
    %v4077 = vsel %vm104, %v2881, 0
    %v4080 = vsel %vm104, %v2886, 0
    %v4083 = vsel %vm104, %v2891, 0
    %4085 = vmatprep.subr.mxu0 0.0
    %4086 = vmatpush1.msra.mxu0 %v2856
    %4087 = vmatprep.subr.mxu0 0.0
    %4088 = vmatpush1.msra.mxu0 %v2861
    %4089 = vmatprep.subr.mxu0 0.0
    %4090 = vmatpush1.msra.mxu0 %v2866
    %4091 = vmatprep.subr.mxu0 0.0
    %4092 = vmatpush1.msra.mxu0 %v2871
    %4093 = vmatprep.subr.mxu0 0.0
    %4094 = vmatpush1.msra.mxu0 %v2876
    %4095 = vmatprep.subr.mxu0 0.0
    %4096 = vmatpush1.msra.mxu0 %v2881
    %4097 = vmatprep.subr.mxu0 0.0
    %4098 = vmatpush1.msra.mxu0 %v2886
    %4099 = vmatprep.subr.mxu0 0.0
    %4100 = vmatpush1.msra.mxu0 %v2891
    %4101 = vmatprep.subr.mxu0 0.0
    %4102 = vmatpush1.msra.mxu0 0.0
    %4103 = vmatprep.subr.mxu0 0.0
    %4104 = vmatpush1.msra.mxu0 0.0
    %4105 = vmatprep.subr.mxu0 0.0
    %4106 = vmatpush1.msra.mxu0 0.0
    %4107 = vmatprep.subr.mxu0 0.0
    %4108 = vmatpush1.msra.mxu0 0.0
    %4109 = vmatprep.subr.mxu0 0.0
    %4110 = vmatpush1.msra.mxu0 0.0
    %4111 = vmatprep.subr.mxu0 0.0
    %4112 = vmatpush1.msra.mxu0 0.0
    %4113 = vmatprep.subr.mxu0 0.0
    %4114 = vmatpush1.msra.mxu0 0.0
    %4115 = vmatprep.subr.mxu0 0.0
    %4116 = vmatpush1.msra.mxu0 0.0
    %4117 = vmatprep.subr.mxu0 0.0
    %4118 = vmatpush1.msra.mxu0 0.0
    %4119 = vmatprep.subr.mxu0 0.0
    %4120 = vmatpush1.msra.mxu0 0.0
    %4121 = vmatprep.subr.mxu0 0.0
    %4122 = vmatpush1.msra.mxu0 0.0
    %4123 = vmatprep.subr.mxu0 0.0
    %4124 = vmatpush1.msra.mxu0 0.0
    %4125 = vmatprep.subr.mxu0 0.0
    %4126 = vmatpush1.msra.mxu0 0.0
    %4127 = vmatprep.subr.mxu0 0.0
    %4128 = vmatpush1.msra.mxu0 0.0
    %4129 = vmatprep.subr.mxu0 0.0
    %4130 = vmatpush1.msra.mxu0 0.0
    %4131 = vmatprep.subr.mxu0 0.0
    %4132 = vmatpush1.msra.mxu0 0.0
    %4133 = vmatprep.subr.mxu0 0.0
    %4134 = vmatpush1.msra.mxu0 0.0
    %4135 = vmatprep.subr.mxu0 0.0
    %4136 = vmatpush1.msra.mxu0 0.0
    %4137 = vmatprep.subr.mxu0 0.0
    %4138 = vmatpush1.msra.mxu0 0.0
    %4139 = vmatprep.subr.mxu0 0.0
    %4140 = vmatpush1.msra.mxu0 0.0
    %4141 = vmatprep.subr.mxu0 0.0
    %4142 = vmatpush1.msra.mxu0 0.0
    %4143 = vmatprep.subr.mxu0 0.0
    %4144 = vmatpush1.msra.mxu0 0.0
    %4145 = vmatprep.subr.mxu0 0.0
    %4146 = vmatpush1.msra.mxu0 0.0
    %4147 = vmatprep.subr.mxu0 0.0
    %4148 = vmatpush1.msra.mxu0 0.0
    %4149 = vmatprep.mubr.f32.mxu0 0.0
    %4150 = vmatmul.mubr.f32.gmra.mrb[0].mxu0 %v4062
    %v4151 = vpop.f32.mrb[0].mxu0
    %v4152 = vadd.f32 0.0, %v4151
    %v4153 = vpop.f32.mrb[0].mxu0
    %4154 = vmatprep.mubr.f32.mxu0 0.0
    %4155 = vmatmul.mubr.f32.gmra.mrb[0].mxu0 %v4065
    %v4156 = vpop.f32.mrb[0].mxu0
    %v4157 = vadd.f32 0.0, %v4156
    %v4158 = vpop.f32.mrb[0].mxu0
    %4159 = vmatprep.mubr.f32.mxu0 0.0
    %4160 = vmatmul.mubr.f32.gmra.mrb[0].mxu0 %v4068
    %v4161 = vpop.f32.mrb[0].mxu0
    %v4162 = vadd.f32 0.0, %v4161
    %v4163 = vpop.f32.mrb[0].mxu0
    %4164 = vmatprep.mubr.f32.mxu0 0.0
    %4165 = vmatmul.mubr.f32.gmra.mrb[0].mxu0 %v4071
    %v4166 = vpop.f32.mrb[0].mxu0
    %v4167 = vadd.f32 0.0, %v4166
    %v4168 = vpop.f32.mrb[0].mxu0
    %4169 = vmatprep.mubr.f32.mxu0 0.0
    %4170 = vmatmul.mubr.f32.gmra.mrb[0].mxu0 %v4074
    %v4171 = vpop.f32.mrb[0].mxu0
    %v4172 = vadd.f32 0.0, %v4171
    %v4173 = vpop.f32.mrb[0].mxu0
    %4174 = vmatprep.mubr.f32.mxu0 0.0
    %4175 = vmatmul.mubr.f32.gmra.mrb[0].mxu0 %v4077
    %v4176 = vpop.f32.mrb[0].mxu0
    %v4177 = vadd.f32 0.0, %v4176
    %v4178 = vpop.f32.mrb[0].mxu0
    %4179 = vmatprep.mubr.f32.mxu0 0.0
    %4180 = vmatmul.mubr.f32.gmra.mrb[0].mxu0 %v4080
    %v4181 = vpop.f32.mrb[0].mxu0
    %v4182 = vadd.f32 0.0, %v4181
    %v4183 = vpop.f32.mrb[0].mxu0
    %4184 = vmatprep.mubr.f32.mxu0 0.0
    %4185 = vmatmul.mubr.f32.gmra.mrb[0].mxu0 %v4083
    %v4186 = vpop.f32.mrb[0].mxu0
    %v4187 = vadd.f32 0.0, %v4186
    %v4188 = vpop.f32.mrb[0].mxu0
    %4189 = vdwg.mxu0
    %4198 = vset.pattern.permute.xlu0 0
    %4199 = vperm.xlu0 %4198, %v3642
    %v4200 = vpop.permute.xlu0 %4199
    %4201 = vset.pattern.permute.xlu0 0
    %4202 = vperm.xlu0 %4201, %v3643
    %v4203 = vpop.permute.xlu0 %4202
    %4204 = vset.pattern.permute.xlu0 0
    %4205 = vperm.xlu0 %4204, %v3644
    %v4206 = vpop.permute.xlu0 %4205
    %4207 = vset.pattern.permute.xlu0 0
    %4208 = vperm.xlu0 %4207, %v3645
    %v4209 = vpop.permute.xlu0 %4208
    %4210 = vset.pattern.permute.xlu0 0
    %4211 = vperm.xlu0 %4210, %v3646
    %v4212 = vpop.permute.xlu0 %4211
    %4213 = vset.pattern.permute.xlu0 0
    %4214 = vperm.xlu0 %4213, %v3647
    %v4215 = vpop.permute.xlu0 %4214
    %4216 = vset.pattern.permute.xlu0 0
    %4217 = vperm.xlu0 %4216, %v3648
    %v4218 = vpop.permute.xlu0 %4217
    %4219 = vset.pattern.permute.xlu0 0
    %4220 = vperm.xlu0 %4219, %v3649
    %v4221 = vpop.permute.xlu0 %4220
    %v4222 = vlaneseq
    %v4223 = vshrl.u32 %v4222, 7
    %v4224 = vsub.s32 %v1687, %v4223
    %v4225 = vrot.slane %v4200, %v4224
    %v4226 = vlaneseq
    %v4227 = vshrl.u32 %v4226, 7
    %v4228 = vsub.s32 %v1692, %v4227
    %v4229 = vrot.slane %v4203, %v4228
    %v4230 = vsel %vm1697, %v4229, %v4225
    %v4231 = vlaneseq
    %v4232 = vshrl.u32 %v4231, 7
    %v4233 = vsub.s32 %v1699, %v4232
    %v4234 = vrot.slane %v4206, %v4233
    %v4235 = vsel %vm1704, %v4234, %v4230
    %v4236 = vlaneseq
    %v4237 = vshrl.u32 %v4236, 7
    %v4238 = vsub.s32 %v1706, %v4237
    %v4239 = vrot.slane %v4209, %v4238
    %v4240 = vsel %vm1711, %v4239, %v4235
    %v4241 = vlaneseq
    %v4242 = vshrl.u32 %v4241, 7
    %v4243 = vsub.s32 %v1713, %v4242
    %v4244 = vrot.slane %v4212, %v4243
    %v4245 = vsel %vm1718, %v4244, %v4240
    %v4246 = vlaneseq
    %v4247 = vshrl.u32 %v4246, 7
    %v4248 = vsub.s32 %v1720, %v4247
    %v4249 = vrot.slane %v4215, %v4248
    %v4250 = vsel %vm1725, %v4249, %v4245
    %v4251 = vlaneseq
    %v4252 = vshrl.u32 %v4251, 7
    %v4253 = vsub.s32 %v1727, %v4252
    %v4254 = vrot.slane %v4218, %v4253
    %v4255 = vsel %vm1732, %v4254, %v4250
    %v4256 = vlaneseq
    %v4257 = vshrl.u32 %v4256, 7
    %v4258 = vsub.s32 %v1734, %v4257
    %v4259 = vrot.slane %v4221, %v4258
    %v4260 = vsel %vm1739, %v4259, %v4255
    %v4261 = vsel %vm104, %v4260, 0
    %4263 = vmatprep.subr.mxu0 0.0
    %4264 = vmatpush1.msra.mxu0 %v3765
    %4265 = vmatprep.subr.mxu0 0.0
    %4266 = vmatpush1.msra.mxu0 %v3770
    %4267 = vmatprep.subr.mxu0 0.0
    %4268 = vmatpush1.msra.mxu0 %v3775
    %4269 = vmatprep.subr.mxu0 0.0
    %4270 = vmatpush1.msra.mxu0 %v3780
    %4271 = vmatprep.subr.mxu0 0.0
    %4272 = vmatpush1.msra.mxu0 %v3785
    %4273 = vmatprep.subr.mxu0 0.0
    %4274 = vmatpush1.msra.mxu0 %v3790
    %4275 = vmatprep.subr.mxu0 0.0
    %4276 = vmatpush1.msra.mxu0 %v3795
    %4277 = vmatprep.subr.mxu0 0.0
    %4278 = vmatpush1.msra.mxu0 %v3800
    %4279 = vmatprep.subr.mxu0 0.0
    %4280 = vmatpush1.msra.mxu0 0.0
    %4281 = vmatprep.subr.mxu0 0.0
    %4282 = vmatpush1.msra.mxu0 0.0
    %4283 = vmatprep.subr.mxu0 0.0
    %4284 = vmatpush1.msra.mxu0 0.0
    %4285 = vmatprep.subr.mxu0 0.0
    %4286 = vmatpush1.msra.mxu0 0.0
    %4287 = vmatprep.subr.mxu0 0.0
    %4288 = vmatpush1.msra.mxu0 0.0
    %4289 = vmatprep.subr.mxu0 0.0
    %4290 = vmatpush1.msra.mxu0 0.0
    %4291 = vmatprep.subr.mxu0 0.0
    %4292 = vmatpush1.msra.mxu0 0.0
    %4293 = vmatprep.subr.mxu0 0.0
    %4294 = vmatpush1.msra.mxu0 0.0
    %4295 = vmatprep.subr.mxu0 0.0
    %4296 = vmatpush1.msra.mxu0 0.0
    %4297 = vmatprep.subr.mxu0 0.0
    %4298 = vmatpush1.msra.mxu0 0.0
    %4299 = vmatprep.subr.mxu0 0.0
    %4300 = vmatpush1.msra.mxu0 0.0
    %4301 = vmatprep.subr.mxu0 0.0
    %4302 = vmatpush1.msra.mxu0 0.0
    %4303 = vmatprep.subr.mxu0 0.0
    %4304 = vmatpush1.msra.mxu0 0.0
    %4305 = vmatprep.subr.mxu0 0.0
    %4306 = vmatpush1.msra.mxu0 0.0
    %4307 = vmatprep.subr.mxu0 0.0
    %4308 = vmatpush1.msra.mxu0 0.0
    %4309 = vmatprep.subr.mxu0 0.0
    %4310 = vmatpush1.msra.mxu0 0.0
    %4311 = vmatprep.subr.mxu0 0.0
    %4312 = vmatpush1.msra.mxu0 0.0
    %4313 = vmatprep.subr.mxu0 0.0
    %4314 = vmatpush1.msra.mxu0 0.0
    %4315 = vmatprep.subr.mxu0 0.0
    %4316 = vmatpush1.msra.mxu0 0.0
    %4317 = vmatprep.subr.mxu0 0.0
    %4318 = vmatpush1.msra.mxu0 0.0
    %4319 = vmatprep.subr.mxu0 0.0
    %4320 = vmatpush1.msra.mxu0 0.0
    %4321 = vmatprep.subr.mxu0 0.0
    %4322 = vmatpush1.msra.mxu0 0.0
    %4323 = vmatprep.subr.mxu0 0.0
    %4324 = vmatpush1.msra.mxu0 0.0
    %4325 = vmatprep.subr.mxu0 0.0
    %4326 = vmatpush1.msra.mxu0 0.0
    %4327 = vmatprep.mubr.f32.mxu0 0.0
    %4328 = vmatmul.mubr.f32.gmra.mrb[0].mxu0 %v4261
    %v4329 = vpop.f32.mrb[0].mxu0
    %v4330 = vadd.f32 0.0, %v4329
    %v4331 = vpop.f32.mrb[0].mxu0
    %4332 = vdwg.mxu0
    %4341 = vset.pattern.permute.xlu0 0
    %4342 = vperm.xlu0 %4341, %v3650
    %v4343 = vpop.permute.xlu0 %4342
    %4344 = vset.pattern.permute.xlu0 0
    %4345 = vperm.xlu0 %4344, %v3651
    %v4346 = vpop.permute.xlu0 %4345
    %4347 = vset.pattern.permute.xlu0 0
    %4348 = vperm.xlu0 %4347, %v3652
    %v4349 = vpop.permute.xlu0 %4348
    %4350 = vset.pattern.permute.xlu0 0
    %4351 = vperm.xlu0 %4350, %v3653
    %v4352 = vpop.permute.xlu0 %4351
    %4353 = vset.pattern.permute.xlu0 0
    %4354 = vperm.xlu0 %4353, %v3654
    %v4355 = vpop.permute.xlu0 %4354
    %4356 = vset.pattern.permute.xlu0 0
    %4357 = vperm.xlu0 %4356, %v3655
    %v4358 = vpop.permute.xlu0 %4357
    %4359 = vset.pattern.permute.xlu0 0
    %4360 = vperm.xlu0 %4359, %v3656
    %v4361 = vpop.permute.xlu0 %4360
    %4362 = vset.pattern.permute.xlu0 0
    %4363 = vperm.xlu0 %4362, %v3657
    %v4364 = vpop.permute.xlu0 %4363
    %v4365 = vlaneseq
    %v4366 = vshrl.u32 %v4365, 7
    %v4367 = vsub.s32 %v1687, %v4366
    %v4368 = vrot.slane %v4343, %v4367
    %v4369 = vlaneseq
    %v4370 = vshrl.u32 %v4369, 7
    %v4371 = vsub.s32 %v1692, %v4370
    %v4372 = vrot.slane %v4346, %v4371
    %v4373 = vsel %vm1697, %v4372, %v4368
    %v4374 = vlaneseq
    %v4375 = vshrl.u32 %v4374, 7
    %v4376 = vsub.s32 %v1699, %v4375
    %v4377 = vrot.slane %v4349, %v4376
    %v4378 = vsel %vm1704, %v4377, %v4373
    %v4379 = vlaneseq
    %v4380 = vshrl.u32 %v4379, 7
    %v4381 = vsub.s32 %v1706, %v4380
    %v4382 = vrot.slane %v4352, %v4381
    %v4383 = vsel %vm1711, %v4382, %v4378
    %v4384 = vlaneseq
    %v4385 = vshrl.u32 %v4384, 7
    %v4386 = vsub.s32 %v1713, %v4385
    %v4387 = vrot.slane %v4355, %v4386
    %v4388 = vsel %vm1718, %v4387, %v4383
    %v4389 = vlaneseq
    %v4390 = vshrl.u32 %v4389, 7
    %v4391 = vsub.s32 %v1720, %v4390
    %v4392 = vrot.slane %v4358, %v4391
    %v4393 = vsel %vm1725, %v4392, %v4388
    %v4394 = vlaneseq
    %v4395 = vshrl.u32 %v4394, 7
    %v4396 = vsub.s32 %v1727, %v4395
    %v4397 = vrot.slane %v4361, %v4396
    %v4398 = vsel %vm1732, %v4397, %v4393
    %v4399 = vlaneseq
    %v4400 = vshrl.u32 %v4399, 7
    %v4401 = vsub.s32 %v1734, %v4400
    %v4402 = vrot.slane %v4364, %v4401
    %v4403 = vsel %vm1739, %v4402, %v4398
    %v4404 = vsel %vm104, %v4403, 0
    %4406 = vmatprep.subr.mxu0 0.0
    %4407 = vmatpush1.msra.mxu0 %v3894
    %4408 = vmatprep.subr.mxu0 0.0
    %4409 = vmatpush1.msra.mxu0 %v3899
    %4410 = vmatprep.subr.mxu0 0.0
    %4411 = vmatpush1.msra.mxu0 %v3904
    %4412 = vmatprep.subr.mxu0 0.0
    %4413 = vmatpush1.msra.mxu0 %v3909
    %4414 = vmatprep.subr.mxu0 0.0
    %4415 = vmatpush1.msra.mxu0 %v3914
    %4416 = vmatprep.subr.mxu0 0.0
    %4417 = vmatpush1.msra.mxu0 %v3919
    %4418 = vmatprep.subr.mxu0 0.0
    %4419 = vmatpush1.msra.mxu0 %v3924
    %4420 = vmatprep.subr.mxu0 0.0
    %4421 = vmatpush1.msra.mxu0 %v3929
    %4422 = vmatprep.subr.mxu0 0.0
    %4423 = vmatpush1.msra.mxu0 0.0
    %4424 = vmatprep.subr.mxu0 0.0
    %4425 = vmatpush1.msra.mxu0 0.0
    %4426 = vmatprep.subr.mxu0 0.0
    %4427 = vmatpush1.msra.mxu0 0.0
    %4428 = vmatprep.subr.mxu0 0.0
    %4429 = vmatpush1.msra.mxu0 0.0
    %4430 = vmatprep.subr.mxu0 0.0
    %4431 = vmatpush1.msra.mxu0 0.0
    %4432 = vmatprep.subr.mxu0 0.0
    %4433 = vmatpush1.msra.mxu0 0.0
    %4434 = vmatprep.subr.mxu0 0.0
    %4435 = vmatpush1.msra.mxu0 0.0
    %4436 = vmatprep.subr.mxu0 0.0
    %4437 = vmatpush1.msra.mxu0 0.0
    %4438 = vmatprep.subr.mxu0 0.0
    %4439 = vmatpush1.msra.mxu0 0.0
    %4440 = vmatprep.subr.mxu0 0.0
    %4441 = vmatpush1.msra.mxu0 0.0
    %4442 = vmatprep.subr.mxu0 0.0
    %4443 = vmatpush1.msra.mxu0 0.0
    %4444 = vmatprep.subr.mxu0 0.0
    %4445 = vmatpush1.msra.mxu0 0.0
    %4446 = vmatprep.subr.mxu0 0.0
    %4447 = vmatpush1.msra.mxu0 0.0
    %4448 = vmatprep.subr.mxu0 0.0
    %4449 = vmatpush1.msra.mxu0 0.0
    %4450 = vmatprep.subr.mxu0 0.0
    %4451 = vmatpush1.msra.mxu0 0.0
    %4452 = vmatprep.subr.mxu0 0.0
    %4453 = vmatpush1.msra.mxu0 0.0
    %4454 = vmatprep.subr.mxu0 0.0
    %4455 = vmatpush1.msra.mxu0 0.0
    %4456 = vmatprep.subr.mxu0 0.0
    %4457 = vmatpush1.msra.mxu0 0.0
    %4458 = vmatprep.subr.mxu0 0.0
    %4459 = vmatpush1.msra.mxu0 0.0
    %4460 = vmatprep.subr.mxu0 0.0
    %4461 = vmatpush1.msra.mxu0 0.0
    %4462 = vmatprep.subr.mxu0 0.0
    %4463 = vmatpush1.msra.mxu0 0.0
    %4464 = vmatprep.subr.mxu0 0.0
    %4465 = vmatpush1.msra.mxu0 0.0
    %4466 = vmatprep.subr.mxu0 0.0
    %4467 = vmatpush1.msra.mxu0 0.0
    %4468 = vmatprep.subr.mxu0 0.0
    %4469 = vmatpush1.msra.mxu0 0.0
    %4470 = vmatprep.mubr.f32.mxu0 0.0
    %4471 = vmatmul.mubr.f32.gmra.mrb[0].mxu0 %v4404
    %v4472 = vpop.f32.mrb[0].mxu0
    %v4473 = vadd.f32 0.0, %v4472
    %v4474 = vpop.f32.mrb[0].mxu0
    %4475 = vdwg.mxu0
    %4484 = vset.pattern.permute.xlu0 0
    %4485 = vperm.xlu0 %4484, %v3658
    %v4486 = vpop.permute.xlu0 %4485
    %4487 = vset.pattern.permute.xlu0 0
    %4488 = vperm.xlu0 %4487, %v3659
    %v4489 = vpop.permute.xlu0 %4488
    %4490 = vset.pattern.permute.xlu0 0
    %4491 = vperm.xlu0 %4490, %v3660
    %v4492 = vpop.permute.xlu0 %4491
    %4493 = vset.pattern.permute.xlu0 0
    %4494 = vperm.xlu0 %4493, %v3661
    %v4495 = vpop.permute.xlu0 %4494
    %4496 = vset.pattern.permute.xlu0 0
    %4497 = vperm.xlu0 %4496, %v3662
    %v4498 = vpop.permute.xlu0 %4497
    %4499 = vset.pattern.permute.xlu0 0
    %4500 = vperm.xlu0 %4499, %v3663
    %v4501 = vpop.permute.xlu0 %4500
    %4502 = vset.pattern.permute.xlu0 0
    %4503 = vperm.xlu0 %4502, %v3664
    %v4504 = vpop.permute.xlu0 %4503
    %4505 = vset.pattern.permute.xlu0 0
    %4506 = vperm.xlu0 %4505, %v3665
    %v4507 = vpop.permute.xlu0 %4506
    %v4508 = vlaneseq
    %v4509 = vshrl.u32 %v4508, 7
    %v4510 = vsub.s32 %v1687, %v4509
    %v4511 = vrot.slane %v4486, %v4510
    %v4512 = vlaneseq
    %v4513 = vshrl.u32 %v4512, 7
    %v4514 = vsub.s32 %v1692, %v4513
    %v4515 = vrot.slane %v4489, %v4514
    %v4516 = vsel %vm1697, %v4515, %v4511
    %v4517 = vlaneseq
    %v4518 = vshrl.u32 %v4517, 7
    %v4519 = vsub.s32 %v1699, %v4518
    %v4520 = vrot.slane %v4492, %v4519
    %v4521 = vsel %vm1704, %v4520, %v4516
    %v4522 = vlaneseq
    %v4523 = vshrl.u32 %v4522, 7
    %v4524 = vsub.s32 %v1706, %v4523
    %v4525 = vrot.slane %v4495, %v4524
    %v4526 = vsel %vm1711, %v4525, %v4521
    %v4527 = vlaneseq
    %v4528 = vshrl.u32 %v4527, 7
    %v4529 = vsub.s32 %v1713, %v4528
    %v4530 = vrot.slane %v4498, %v4529
    %v4531 = vsel %vm1718, %v4530, %v4526
    %v4532 = vlaneseq
    %v4533 = vshrl.u32 %v4532, 7
    %v4534 = vsub.s32 %v1720, %v4533
    %v4535 = vrot.slane %v4501, %v4534
    %v4536 = vsel %vm1725, %v4535, %v4531
    %v4537 = vlaneseq
    %v4538 = vshrl.u32 %v4537, 7
    %v4539 = vsub.s32 %v1727, %v4538
    %v4540 = vrot.slane %v4504, %v4539
    %v4541 = vsel %vm1732, %v4540, %v4536
    %v4542 = vlaneseq
    %v4543 = vshrl.u32 %v4542, 7
    %v4544 = vsub.s32 %v1734, %v4543
    %v4545 = vrot.slane %v4507, %v4544
    %v4546 = vsel %vm1739, %v4545, %v4541
    %v4547 = vsel %vm104, %v4546, 0
    %4549 = vmatprep.subr.mxu0 0.0
    %4550 = vmatpush1.msra.mxu0 %v4023
    %4551 = vmatprep.subr.mxu0 0.0
    %4552 = vmatpush1.msra.mxu0 %v4028
    %4553 = vmatprep.subr.mxu0 0.0
    %4554 = vmatpush1.msra.mxu0 %v4033
    %4555 = vmatprep.subr.mxu0 0.0
    %4556 = vmatpush1.msra.mxu0 %v4038
    %4557 = vmatprep.subr.mxu0 0.0
    %4558 = vmatpush1.msra.mxu0 %v4043
    %4559 = vmatprep.subr.mxu0 0.0
    %4560 = vmatpush1.msra.mxu0 %v4048
    %4561 = vmatprep.subr.mxu0 0.0
    %4562 = vmatpush1.msra.mxu0 %v4053
    %4563 = vmatprep.subr.mxu0 0.0
    %4564 = vmatpush1.msra.mxu0 %v4058
    %4565 = vmatprep.subr.mxu0 0.0
    %4566 = vmatpush1.msra.mxu0 0.0
    %4567 = vmatprep.subr.mxu0 0.0
    %4568 = vmatpush1.msra.mxu0 0.0
    %4569 = vmatprep.subr.mxu0 0.0
    %4570 = vmatpush1.msra.mxu0 0.0
    %4571 = vmatprep.subr.mxu0 0.0
    %4572 = vmatpush1.msra.mxu0 0.0
    %4573 = vmatprep.subr.mxu0 0.0
    %4574 = vmatpush1.msra.mxu0 0.0
    %4575 = vmatprep.subr.mxu0 0.0
    %4576 = vmatpush1.msra.mxu0 0.0
    %4577 = vmatprep.subr.mxu0 0.0
    %4578 = vmatpush1.msra.mxu0 0.0
    %4579 = vmatprep.subr.mxu0 0.0
    %4580 = vmatpush1.msra.mxu0 0.0
    %4581 = vmatprep.subr.mxu0 0.0
    %4582 = vmatpush1.msra.mxu0 0.0
    %4583 = vmatprep.subr.mxu0 0.0
    %4584 = vmatpush1.msra.mxu0 0.0
    %4585 = vmatprep.subr.mxu0 0.0
    %4586 = vmatpush1.msra.mxu0 0.0
    %4587 = vmatprep.subr.mxu0 0.0
    %4588 = vmatpush1.msra.mxu0 0.0
    %4589 = vmatprep.subr.mxu0 0.0
    %4590 = vmatpush1.msra.mxu0 0.0
    %4591 = vmatprep.subr.mxu0 0.0
    %4592 = vmatpush1.msra.mxu0 0.0
    %4593 = vmatprep.subr.mxu0 0.0
    %4594 = vmatpush1.msra.mxu0 0.0
    %4595 = vmatprep.subr.mxu0 0.0
    %4596 = vmatpush1.msra.mxu0 0.0
    %4597 = vmatprep.subr.mxu0 0.0
    %4598 = vmatpush1.msra.mxu0 0.0
    %4599 = vmatprep.subr.mxu0 0.0
    %4600 = vmatpush1.msra.mxu0 0.0
    %4601 = vmatprep.subr.mxu0 0.0
    %4602 = vmatpush1.msra.mxu0 0.0
    %4603 = vmatprep.subr.mxu0 0.0
    %4604 = vmatpush1.msra.mxu0 0.0
    %4605 = vmatprep.subr.mxu0 0.0
    %4606 = vmatpush1.msra.mxu0 0.0
    %4607 = vmatprep.subr.mxu0 0.0
    %4608 = vmatpush1.msra.mxu0 0.0
    %4609 = vmatprep.subr.mxu0 0.0
    %4610 = vmatpush1.msra.mxu0 0.0
    %4611 = vmatprep.subr.mxu0 0.0
    %4612 = vmatpush1.msra.mxu0 0.0
    %4613 = vmatprep.mubr.f32.mxu0 0.0
    %4614 = vmatmul.mubr.f32.gmra.mrb[0].mxu0 %v4547
    %v4615 = vpop.f32.mrb[0].mxu0
    %v4616 = vadd.f32 0.0, %v4615
    %v4617 = vpop.f32.mrb[0].mxu0
    %4618 = vdwg.mxu0
    %4627 = vset.pattern.permute.xlu0 0
    %4628 = vperm.xlu0 %4627, %v3666
    %v4629 = vpop.permute.xlu0 %4628
    %4630 = vset.pattern.permute.xlu0 0
    %4631 = vperm.xlu0 %4630, %v3667
    %v4632 = vpop.permute.xlu0 %4631
    %4633 = vset.pattern.permute.xlu0 0
    %4634 = vperm.xlu0 %4633, %v3668
    %v4635 = vpop.permute.xlu0 %4634
    %4636 = vset.pattern.permute.xlu0 0
    %4637 = vperm.xlu0 %4636, %v3669
    %v4638 = vpop.permute.xlu0 %4637
    %4639 = vset.pattern.permute.xlu0 0
    %4640 = vperm.xlu0 %4639, %v3670
    %v4641 = vpop.permute.xlu0 %4640
    %4642 = vset.pattern.permute.xlu0 0
    %4643 = vperm.xlu0 %4642, %v3671
    %v4644 = vpop.permute.xlu0 %4643
    %4645 = vset.pattern.permute.xlu0 0
    %4646 = vperm.xlu0 %4645, %v3672
    %v4647 = vpop.permute.xlu0 %4646
    %4648 = vset.pattern.permute.xlu0 0
    %4649 = vperm.xlu0 %4648, %v3673
    %v4650 = vpop.permute.xlu0 %4649
    %v4651 = vlaneseq
    %v4652 = vshrl.u32 %v4651, 7
    %v4653 = vsub.s32 %v1687, %v4652
    %v4654 = vrot.slane %v4629, %v4653
    %v4655 = vlaneseq
    %v4656 = vshrl.u32 %v4655, 7
    %v4657 = vsub.s32 %v1692, %v4656
    %v4658 = vrot.slane %v4632, %v4657
    %v4659 = vsel %vm1697, %v4658, %v4654
    %v4660 = vlaneseq
    %v4661 = vshrl.u32 %v4660, 7
    %v4662 = vsub.s32 %v1699, %v4661
    %v4663 = vrot.slane %v4635, %v4662
    %v4664 = vsel %vm1704, %v4663, %v4659
    %v4665 = vlaneseq
    %v4666 = vshrl.u32 %v4665, 7
    %v4667 = vsub.s32 %v1706, %v4666
    %v4668 = vrot.slane %v4638, %v4667
    %v4669 = vsel %vm1711, %v4668, %v4664
    %v4670 = vlaneseq
    %v4671 = vshrl.u32 %v4670, 7
    %v4672 = vsub.s32 %v1713, %v4671
    %v4673 = vrot.slane %v4641, %v4672
    %v4674 = vsel %vm1718, %v4673, %v4669
    %v4675 = vlaneseq
    %v4676 = vshrl.u32 %v4675, 7
    %v4677 = vsub.s32 %v1720, %v4676
    %v4678 = vrot.slane %v4644, %v4677
    %v4679 = vsel %vm1725, %v4678, %v4674
    %v4680 = vlaneseq
    %v4681 = vshrl.u32 %v4680, 7
    %v4682 = vsub.s32 %v1727, %v4681
    %v4683 = vrot.slane %v4647, %v4682
    %v4684 = vsel %vm1732, %v4683, %v4679
    %v4685 = vlaneseq
    %v4686 = vshrl.u32 %v4685, 7
    %v4687 = vsub.s32 %v1734, %v4686
    %v4688 = vrot.slane %v4650, %v4687
    %v4689 = vsel %vm1739, %v4688, %v4684
    %v4690 = vsel %vm104, %v4689, 0
    %4692 = vmatprep.subr.mxu0 0.0
    %4693 = vmatpush1.msra.mxu0 %v4152
    %4694 = vmatprep.subr.mxu0 0.0
    %4695 = vmatpush1.msra.mxu0 %v4157
    %4696 = vmatprep.subr.mxu0 0.0
    %4697 = vmatpush1.msra.mxu0 %v4162
    %4698 = vmatprep.subr.mxu0 0.0
    %4699 = vmatpush1.msra.mxu0 %v4167
    %4700 = vmatprep.subr.mxu0 0.0
    %4701 = vmatpush1.msra.mxu0 %v4172
    %4702 = vmatprep.subr.mxu0 0.0
    %4703 = vmatpush1.msra.mxu0 %v4177
    %4704 = vmatprep.subr.mxu0 0.0
    %4705 = vmatpush1.msra.mxu0 %v4182
    %4706 = vmatprep.subr.mxu0 0.0
    %4707 = vmatpush1.msra.mxu0 %v4187
    %4708 = vmatprep.subr.mxu0 0.0
    %4709 = vmatpush1.msra.mxu0 0.0
    %4710 = vmatprep.subr.mxu0 0.0
    %4711 = vmatpush1.msra.mxu0 0.0
    %4712 = vmatprep.subr.mxu0 0.0
    %4713 = vmatpush1.msra.mxu0 0.0
    %4714 = vmatprep.subr.mxu0 0.0
    %4715 = vmatpush1.msra.mxu0 0.0
    %4716 = vmatprep.subr.mxu0 0.0
    %4717 = vmatpush1.msra.mxu0 0.0
    %4718 = vmatprep.subr.mxu0 0.0
    %4719 = vmatpush1.msra.mxu0 0.0
    %4720 = vmatprep.subr.mxu0 0.0
    %4721 = vmatpush1.msra.mxu0 0.0
    %4722 = vmatprep.subr.mxu0 0.0
    %4723 = vmatpush1.msra.mxu0 0.0
    %4724 = vmatprep.subr.mxu0 0.0
    %4725 = vmatpush1.msra.mxu0 0.0
    %4726 = vmatprep.subr.mxu0 0.0
    %4727 = vmatpush1.msra.mxu0 0.0
    %4728 = vmatprep.subr.mxu0 0.0
    %4729 = vmatpush1.msra.mxu0 0.0
    %4730 = vmatprep.subr.mxu0 0.0
    %4731 = vmatpush1.msra.mxu0 0.0
    %4732 = vmatprep.subr.mxu0 0.0
    %4733 = vmatpush1.msra.mxu0 0.0
    %4734 = vmatprep.subr.mxu0 0.0
    %4735 = vmatpush1.msra.mxu0 0.0
    %4736 = vmatprep.subr.mxu0 0.0
    %4737 = vmatpush1.msra.mxu0 0.0
    %4738 = vmatprep.subr.mxu0 0.0
    %4739 = vmatpush1.msra.mxu0 0.0
    %4740 = vmatprep.subr.mxu0 0.0
    %4741 = vmatpush1.msra.mxu0 0.0
    %4742 = vmatprep.subr.mxu0 0.0
    %4743 = vmatpush1.msra.mxu0 0.0
    %4744 = vmatprep.subr.mxu0 0.0
    %4745 = vmatpush1.msra.mxu0 0.0
    %4746 = vmatprep.subr.mxu0 0.0
    %4747 = vmatpush1.msra.mxu0 0.0
    %4748 = vmatprep.subr.mxu0 0.0
    %4749 = vmatpush1.msra.mxu0 0.0
    %4750 = vmatprep.subr.mxu0 0.0
    %4751 = vmatpush1.msra.mxu0 0.0
    %4752 = vmatprep.subr.mxu0 0.0
    %4753 = vmatpush1.msra.mxu0 0.0
    %4754 = vmatprep.subr.mxu0 0.0
    %4755 = vmatpush1.msra.mxu0 0.0
    %4756 = vmatprep.mubr.f32.mxu0 0.0
    %4757 = vmatmul.mubr.f32.gmra.mrb[0].mxu0 %v4690
    %v4758 = vpop.f32.mrb[0].mxu0
    %v4759 = vadd.f32 0.0, %v4758
    %v4760 = vpop.f32.mrb[0].mxu0
    %4761 = vdwg.mxu0
    %v4766 = vlaneseq
    %v4767 = vshrl.u32 %v4766, 7
    %v4768 = vsub.s32 0, %v4767
    %v4769 = vrot.slane %v4330, %v4768
    %4771 = vbcast.lane.b32.xlu0 %v4769, 256
    %v4772 = vpop.permute.xlu0 %4771
    %s4774 = sor.u32 256, 8
    %4775 = vbcast.lane.b32.xlu0 %v4769, %s4774
    %v4776 = vpop.permute.xlu0 %4775
    %s4778 = sor.u32 256, 16
    %4779 = vbcast.lane.b32.xlu0 %v4769, %s4778
    %v4780 = vpop.permute.xlu0 %4779
    %s4782 = sor.u32 256, 24
    %4783 = vbcast.lane.b32.xlu0 %v4769, %s4782
    %v4784 = vpop.permute.xlu0 %4783
    %s4786 = sor.u32 256, 32
    %4787 = vbcast.lane.b32.xlu0 %v4769, %s4786
    %v4788 = vpop.permute.xlu0 %4787
    %s4790 = sor.u32 256, 40
    %4791 = vbcast.lane.b32.xlu0 %v4769, %s4790
    %v4792 = vpop.permute.xlu0 %4791
    %s4794 = sor.u32 256, 48
    %4795 = vbcast.lane.b32.xlu0 %v4769, %s4794
    %v4796 = vpop.permute.xlu0 %4795
    %s4798 = sor.u32 256, 56
    %4799 = vbcast.lane.b32.xlu0 %v4769, %s4798
    %v4800 = vpop.permute.xlu0 %4799
    %v4801 = vlaneseq
    %v4802 = vshrl.u32 %v4801, 7
    %v4803 = vsub.s32 0, %v4802
    %v4804 = vrot.slane %v4473, %v4803
    %4806 = vbcast.lane.b32.xlu0 %v4804, 256
    %v4807 = vpop.permute.xlu0 %4806
    %s4809 = sor.u32 256, 8
    %4810 = vbcast.lane.b32.xlu0 %v4804, %s4809
    %v4811 = vpop.permute.xlu0 %4810
    %s4813 = sor.u32 256, 16
    %4814 = vbcast.lane.b32.xlu0 %v4804, %s4813
    %v4815 = vpop.permute.xlu0 %4814
    %s4817 = sor.u32 256, 24
    %4818 = vbcast.lane.b32.xlu0 %v4804, %s4817
    %v4819 = vpop.permute.xlu0 %4818
    %s4821 = sor.u32 256, 32
    %4822 = vbcast.lane.b32.xlu0 %v4804, %s4821
    %v4823 = vpop.permute.xlu0 %4822
    %s4825 = sor.u32 256, 40
    %4826 = vbcast.lane.b32.xlu0 %v4804, %s4825
    %v4827 = vpop.permute.xlu0 %4826
    %s4829 = sor.u32 256, 48
    %4830 = vbcast.lane.b32.xlu0 %v4804, %s4829
    %v4831 = vpop.permute.xlu0 %4830
    %s4833 = sor.u32 256, 56
    %4834 = vbcast.lane.b32.xlu0 %v4804, %s4833
    %v4835 = vpop.permute.xlu0 %4834
    %v4836 = vlaneseq
    %v4837 = vshrl.u32 %v4836, 7
    %v4838 = vsub.s32 0, %v4837
    %v4839 = vrot.slane %v4616, %v4838
    %4841 = vbcast.lane.b32.xlu0 %v4839, 256
    %v4842 = vpop.permute.xlu0 %4841
    %s4844 = sor.u32 256, 8
    %4845 = vbcast.lane.b32.xlu0 %v4839, %s4844
    %v4846 = vpop.permute.xlu0 %4845
    %s4848 = sor.u32 256, 16
    %4849 = vbcast.lane.b32.xlu0 %v4839, %s4848
    %v4850 = vpop.permute.xlu0 %4849
    %s4852 = sor.u32 256, 24
    %4853 = vbcast.lane.b32.xlu0 %v4839, %s4852
    %v4854 = vpop.permute.xlu0 %4853
    %s4856 = sor.u32 256, 32
    %4857 = vbcast.lane.b32.xlu0 %v4839, %s4856
    %v4858 = vpop.permute.xlu0 %4857
    %s4860 = sor.u32 256, 40
    %4861 = vbcast.lane.b32.xlu0 %v4839, %s4860
    %v4862 = vpop.permute.xlu0 %4861
    %s4864 = sor.u32 256, 48
    %4865 = vbcast.lane.b32.xlu0 %v4839, %s4864
    %v4866 = vpop.permute.xlu0 %4865
    %s4868 = sor.u32 256, 56
    %4869 = vbcast.lane.b32.xlu0 %v4839, %s4868
    %v4870 = vpop.permute.xlu0 %4869
    %v4871 = vlaneseq
    %v4872 = vshrl.u32 %v4871, 7
    %v4873 = vsub.s32 0, %v4872
    %v4874 = vrot.slane %v4759, %v4873
    %4876 = vbcast.lane.b32.xlu0 %v4874, 256
    %v4877 = vpop.permute.xlu0 %4876
    %s4879 = sor.u32 256, 8
    %4880 = vbcast.lane.b32.xlu0 %v4874, %s4879
    %v4881 = vpop.permute.xlu0 %4880
    %s4883 = sor.u32 256, 16
    %4884 = vbcast.lane.b32.xlu0 %v4874, %s4883
    %v4885 = vpop.permute.xlu0 %4884
    %s4887 = sor.u32 256, 24
    %4888 = vbcast.lane.b32.xlu0 %v4874, %s4887
    %v4889 = vpop.permute.xlu0 %4888
    %s4891 = sor.u32 256, 32
    %4892 = vbcast.lane.b32.xlu0 %v4874, %s4891
    %v4893 = vpop.permute.xlu0 %4892
    %s4895 = sor.u32 256, 40
    %4896 = vbcast.lane.b32.xlu0 %v4874, %s4895
    %v4897 = vpop.permute.xlu0 %4896
    %s4899 = sor.u32 256, 48
    %4900 = vbcast.lane.b32.xlu0 %v4874, %s4899
    %v4901 = vpop.permute.xlu0 %4900
    %s4903 = sor.u32 256, 56
    %4904 = vbcast.lane.b32.xlu0 %v4874, %s4903
    %v4905 = vpop.permute.xlu0 %4904
    %v4938 = vadd.f32 %v3642, %v4772
    %v4939 = vadd.f32 %v3643, %v4776
    %v4940 = vadd.f32 %v3644, %v4780
    %v4941 = vadd.f32 %v3645, %v4784
    %v4942 = vadd.f32 %v3646, %v4788
    %v4943 = vadd.f32 %v3647, %v4792
    %v4944 = vadd.f32 %v3648, %v4796
    %v4945 = vadd.f32 %v3649, %v4800
    %v4946 = vadd.f32 %v3650, %v4807
    %v4947 = vadd.f32 %v3651, %v4811
    %v4948 = vadd.f32 %v3652, %v4815
    %v4949 = vadd.f32 %v3653, %v4819
    %v4950 = vadd.f32 %v3654, %v4823
    %v4951 = vadd.f32 %v3655, %v4827
    %v4952 = vadd.f32 %v3656, %v4831
    %v4953 = vadd.f32 %v3657, %v4835
    %v4954 = vadd.f32 %v3658, %v4842
    %v4955 = vadd.f32 %v3659, %v4846
    %v4956 = vadd.f32 %v3660, %v4850
    %v4957 = vadd.f32 %v3661, %v4854
    %v4958 = vadd.f32 %v3662, %v4858
    %v4959 = vadd.f32 %v3663, %v4862
    %v4960 = vadd.f32 %v3664, %v4866
    %v4961 = vadd.f32 %v3665, %v4870
    %v4962 = vadd.f32 %v3666, %v4877
    %v4963 = vadd.f32 %v3667, %v4881
    %v4964 = vadd.f32 %v3668, %v4885
    %v4965 = vadd.f32 %v3669, %v4889
    %v4966 = vadd.f32 %v3670, %v4893
    %v4967 = vadd.f32 %v3671, %v4897
    %v4968 = vadd.f32 %v3672, %v4901
    %v4969 = vadd.f32 %v3673, %v4905
    %v4971 = vsel %vm104, %v3765, 0
    %v4974 = vsel %vm104, %v3770, 0
    %v4977 = vsel %vm104, %v3775, 0
    %v4980 = vsel %vm104, %v3780, 0
    %v4983 = vsel %vm104, %v3785, 0
    %v4986 = vsel %vm104, %v3790, 0
    %v4989 = vsel %vm104, %v3795, 0
    %v4992 = vsel %vm104, %v3800, 0
    %4994 = vmatprep.subr.mxu0 0.0
    %4995 = vmatpush1.msra.mxu0 %v3765
    %4996 = vmatprep.subr.mxu0 0.0
    %4997 = vmatpush1.msra.mxu0 %v3770
    %4998 = vmatprep.subr.mxu0 0.0
    %4999 = vmatpush1.msra.mxu0 %v3775
    %5000 = vmatprep.subr.mxu0 0.0
    %5001 = vmatpush1.msra.mxu0 %v3780
    %5002 = vmatprep.subr.mxu0 0.0
    %5003 = vmatpush1.msra.mxu0 %v3785
    %5004 = vmatprep.subr.mxu0 0.0
    %5005 = vmatpush1.msra.mxu0 %v3790
    %5006 = vmatprep.subr.mxu0 0.0
    %5007 = vmatpush1.msra.mxu0 %v3795
    %5008 = vmatprep.subr.mxu0 0.0
    %5009 = vmatpush1.msra.mxu0 %v3800
    %5010 = vmatprep.subr.mxu0 0.0
    %5011 = vmatpush1.msra.mxu0 0.0
    %5012 = vmatprep.subr.mxu0 0.0
    %5013 = vmatpush1.msra.mxu0 0.0
    %5014 = vmatprep.subr.mxu0 0.0
    %5015 = vmatpush1.msra.mxu0 0.0
    %5016 = vmatprep.subr.mxu0 0.0
    %5017 = vmatpush1.msra.mxu0 0.0
    %5018 = vmatprep.subr.mxu0 0.0
    %5019 = vmatpush1.msra.mxu0 0.0
    %5020 = vmatprep.subr.mxu0 0.0
    %5021 = vmatpush1.msra.mxu0 0.0
    %5022 = vmatprep.subr.mxu0 0.0
    %5023 = vmatpush1.msra.mxu0 0.0
    %5024 = vmatprep.subr.mxu0 0.0
    %5025 = vmatpush1.msra.mxu0 0.0
    %5026 = vmatprep.subr.mxu0 0.0
    %5027 = vmatpush1.msra.mxu0 0.0
    %5028 = vmatprep.subr.mxu0 0.0
    %5029 = vmatpush1.msra.mxu0 0.0
    %5030 = vmatprep.subr.mxu0 0.0
    %5031 = vmatpush1.msra.mxu0 0.0
    %5032 = vmatprep.subr.mxu0 0.0
    %5033 = vmatpush1.msra.mxu0 0.0
    %5034 = vmatprep.subr.mxu0 0.0
    %5035 = vmatpush1.msra.mxu0 0.0
    %5036 = vmatprep.subr.mxu0 0.0
    %5037 = vmatpush1.msra.mxu0 0.0
    %5038 = vmatprep.subr.mxu0 0.0
    %5039 = vmatpush1.msra.mxu0 0.0
    %5040 = vmatprep.subr.mxu0 0.0
    %5041 = vmatpush1.msra.mxu0 0.0
    %5042 = vmatprep.subr.mxu0 0.0
    %5043 = vmatpush1.msra.mxu0 0.0
    %5044 = vmatprep.subr.mxu0 0.0
    %5045 = vmatpush1.msra.mxu0 0.0
    %5046 = vmatprep.subr.mxu0 0.0
    %5047 = vmatpush1.msra.mxu0 0.0
    %5048 = vmatprep.subr.mxu0 0.0
    %5049 = vmatpush1.msra.mxu0 0.0
    %5050 = vmatprep.subr.mxu0 0.0
    %5051 = vmatpush1.msra.mxu0 0.0
    %5052 = vmatprep.subr.mxu0 0.0
    %5053 = vmatpush1.msra.mxu0 0.0
    %5054 = vmatprep.subr.mxu0 0.0
    %5055 = vmatpush1.msra.mxu0 0.0
    %5056 = vmatprep.subr.mxu0 0.0
    %5057 = vmatpush1.msra.mxu0 0.0
    %5058 = vmatprep.mubr.f32.mxu0 0.0
    %5059 = vmatmul.mubr.f32.gmra.mrb[0].mxu0 %v4971
    %v5060 = vpop.f32.mrb[0].mxu0
    %v5061 = vadd.f32 0.0, %v5060
    %v5062 = vpop.f32.mrb[0].mxu0
    %5063 = vmatprep.mubr.f32.mxu0 0.0
    %5064 = vmatmul.mubr.f32.gmra.mrb[0].mxu0 %v4974
    %v5065 = vpop.f32.mrb[0].mxu0
    %v5066 = vadd.f32 0.0, %v5065
    %v5067 = vpop.f32.mrb[0].mxu0
    %5068 = vmatprep.mubr.f32.mxu0 0.0
    %5069 = vmatmul.mubr.f32.gmra.mrb[0].mxu0 %v4977
    %v5070 = vpop.f32.mrb[0].mxu0
    %v5071 = vadd.f32 0.0, %v5070
    %v5072 = vpop.f32.mrb[0].mxu0
    %5073 = vmatprep.mubr.f32.mxu0 0.0
    %5074 = vmatmul.mubr.f32.gmra.mrb[0].mxu0 %v4980
    %v5075 = vpop.f32.mrb[0].mxu0
    %v5076 = vadd.f32 0.0, %v5075
    %v5077 = vpop.f32.mrb[0].mxu0
    %5078 = vmatprep.mubr.f32.mxu0 0.0
    %5079 = vmatmul.mubr.f32.gmra.mrb[0].mxu0 %v4983
    %v5080 = vpop.f32.mrb[0].mxu0
    %v5081 = vadd.f32 0.0, %v5080
    %v5082 = vpop.f32.mrb[0].mxu0
    %5083 = vmatprep.mubr.f32.mxu0 0.0
    %5084 = vmatmul.mubr.f32.gmra.mrb[0].mxu0 %v4986
    %v5085 = vpop.f32.mrb[0].mxu0
    %v5086 = vadd.f32 0.0, %v5085
    %v5087 = vpop.f32.mrb[0].mxu0
    %5088 = vmatprep.mubr.f32.mxu0 0.0
    %5089 = vmatmul.mubr.f32.gmra.mrb[0].mxu0 %v4989
    %v5090 = vpop.f32.mrb[0].mxu0
    %v5091 = vadd.f32 0.0, %v5090
    %v5092 = vpop.f32.mrb[0].mxu0
    %5093 = vmatprep.mubr.f32.mxu0 0.0
    %5094 = vmatmul.mubr.f32.gmra.mrb[0].mxu0 %v4992
    %v5095 = vpop.f32.mrb[0].mxu0
    %v5096 = vadd.f32 0.0, %v5095
    %v5097 = vpop.f32.mrb[0].mxu0
    %5098 = vdwg.mxu0
    %v5100 = vsel %vm104, %v3894, 0
    %v5103 = vsel %vm104, %v3899, 0
    %v5106 = vsel %vm104, %v3904, 0
    %v5109 = vsel %vm104, %v3909, 0
    %v5112 = vsel %vm104, %v3914, 0
    %v5115 = vsel %vm104, %v3919, 0
    %v5118 = vsel %vm104, %v3924, 0
    %v5121 = vsel %vm104, %v3929, 0
    %5123 = vmatprep.subr.mxu0 0.0
    %5124 = vmatpush1.msra.mxu0 %v3894
    %5125 = vmatprep.subr.mxu0 0.0
    %5126 = vmatpush1.msra.mxu0 %v3899
    %5127 = vmatprep.subr.mxu0 0.0
    %5128 = vmatpush1.msra.mxu0 %v3904
    %5129 = vmatprep.subr.mxu0 0.0
    %5130 = vmatpush1.msra.mxu0 %v3909
    %5131 = vmatprep.subr.mxu0 0.0
    %5132 = vmatpush1.msra.mxu0 %v3914
    %5133 = vmatprep.subr.mxu0 0.0
    %5134 = vmatpush1.msra.mxu0 %v3919
    %5135 = vmatprep.subr.mxu0 0.0
    %5136 = vmatpush1.msra.mxu0 %v3924
    %5137 = vmatprep.subr.mxu0 0.0
    %5138 = vmatpush1.msra.mxu0 %v3929
    %5139 = vmatprep.subr.mxu0 0.0
    %5140 = vmatpush1.msra.mxu0 0.0
    %5141 = vmatprep.subr.mxu0 0.0
    %5142 = vmatpush1.msra.mxu0 0.0
    %5143 = vmatprep.subr.mxu0 0.0
    %5144 = vmatpush1.msra.mxu0 0.0
    %5145 = vmatprep.subr.mxu0 0.0
    %5146 = vmatpush1.msra.mxu0 0.0
    %5147 = vmatprep.subr.mxu0 0.0
    %5148 = vmatpush1.msra.mxu0 0.0
    %5149 = vmatprep.subr.mxu0 0.0
    %5150 = vmatpush1.msra.mxu0 0.0
    %5151 = vmatprep.subr.mxu0 0.0
    %5152 = vmatpush1.msra.mxu0 0.0
    %5153 = vmatprep.subr.mxu0 0.0
    %5154 = vmatpush1.msra.mxu0 0.0
    %5155 = vmatprep.subr.mxu0 0.0
    %5156 = vmatpush1.msra.mxu0 0.0
    %5157 = vmatprep.subr.mxu0 0.0
    %5158 = vmatpush1.msra.mxu0 0.0
    %5159 = vmatprep.subr.mxu0 0.0
    %5160 = vmatpush1.msra.mxu0 0.0
    %5161 = vmatprep.subr.mxu0 0.0
    %5162 = vmatpush1.msra.mxu0 0.0
    %5163 = vmatprep.subr.mxu0 0.0
    %5164 = vmatpush1.msra.mxu0 0.0
    %5165 = vmatprep.subr.mxu0 0.0
    %5166 = vmatpush1.msra.mxu0 0.0
    %5167 = vmatprep.subr.mxu0 0.0
    %5168 = vmatpush1.msra.mxu0 0.0
    %5169 = vmatprep.subr.mxu0 0.0
    %5170 = vmatpush1.msra.mxu0 0.0
    %5171 = vmatprep.subr.mxu0 0.0
    %5172 = vmatpush1.msra.mxu0 0.0
    %5173 = vmatprep.subr.mxu0 0.0
    %5174 = vmatpush1.msra.mxu0 0.0
    %5175 = vmatprep.subr.mxu0 0.0
    %5176 = vmatpush1.msra.mxu0 0.0
    %5177 = vmatprep.subr.mxu0 0.0
    %5178 = vmatpush1.msra.mxu0 0.0
    %5179 = vmatprep.subr.mxu0 0.0
    %5180 = vmatpush1.msra.mxu0 0.0
    %5181 = vmatprep.subr.mxu0 0.0
    %5182 = vmatpush1.msra.mxu0 0.0
    %5183 = vmatprep.subr.mxu0 0.0
    %5184 = vmatpush1.msra.mxu0 0.0
    %5185 = vmatprep.subr.mxu0 0.0
    %5186 = vmatpush1.msra.mxu0 0.0
    %5187 = vmatprep.mubr.f32.mxu0 0.0
    %5188 = vmatmul.mubr.f32.gmra.mrb[0].mxu0 %v5100
    %v5189 = vpop.f32.mrb[0].mxu0
    %v5190 = vadd.f32 0.0, %v5189
    %v5191 = vpop.f32.mrb[0].mxu0
    %5192 = vmatprep.mubr.f32.mxu0 0.0
    %5193 = vmatmul.mubr.f32.gmra.mrb[0].mxu0 %v5103
    %v5194 = vpop.f32.mrb[0].mxu0
    %v5195 = vadd.f32 0.0, %v5194
    %v5196 = vpop.f32.mrb[0].mxu0
    %5197 = vmatprep.mubr.f32.mxu0 0.0
    %5198 = vmatmul.mubr.f32.gmra.mrb[0].mxu0 %v5106
    %v5199 = vpop.f32.mrb[0].mxu0
    %v5200 = vadd.f32 0.0, %v5199
    %v5201 = vpop.f32.mrb[0].mxu0
    %5202 = vmatprep.mubr.f32.mxu0 0.0
    %5203 = vmatmul.mubr.f32.gmra.mrb[0].mxu0 %v5109
    %v5204 = vpop.f32.mrb[0].mxu0
    %v5205 = vadd.f32 0.0, %v5204
    %v5206 = vpop.f32.mrb[0].mxu0
    %5207 = vmatprep.mubr.f32.mxu0 0.0
    %5208 = vmatmul.mubr.f32.gmra.mrb[0].mxu0 %v5112
    %v5209 = vpop.f32.mrb[0].mxu0
    %v5210 = vadd.f32 0.0, %v5209
    %v5211 = vpop.f32.mrb[0].mxu0
    %5212 = vmatprep.mubr.f32.mxu0 0.0
    %5213 = vmatmul.mubr.f32.gmra.mrb[0].mxu0 %v5115
    %v5214 = vpop.f32.mrb[0].mxu0
    %v5215 = vadd.f32 0.0, %v5214
    %v5216 = vpop.f32.mrb[0].mxu0
    %5217 = vmatprep.mubr.f32.mxu0 0.0
    %5218 = vmatmul.mubr.f32.gmra.mrb[0].mxu0 %v5118
    %v5219 = vpop.f32.mrb[0].mxu0
    %v5220 = vadd.f32 0.0, %v5219
    %v5221 = vpop.f32.mrb[0].mxu0
    %5222 = vmatprep.mubr.f32.mxu0 0.0
    %5223 = vmatmul.mubr.f32.gmra.mrb[0].mxu0 %v5121
    %v5224 = vpop.f32.mrb[0].mxu0
    %v5225 = vadd.f32 0.0, %v5224
    %v5226 = vpop.f32.mrb[0].mxu0
    %5227 = vdwg.mxu0
    %v5229 = vsel %vm104, %v4023, 0
    %v5232 = vsel %vm104, %v4028, 0
    %v5235 = vsel %vm104, %v4033, 0
    %v5238 = vsel %vm104, %v4038, 0
    %v5241 = vsel %vm104, %v4043, 0
    %v5244 = vsel %vm104, %v4048, 0
    %v5247 = vsel %vm104, %v4053, 0
    %v5250 = vsel %vm104, %v4058, 0
    %5252 = vmatprep.subr.mxu0 0.0
    %5253 = vmatpush1.msra.mxu0 %v4023
    %5254 = vmatprep.subr.mxu0 0.0
    %5255 = vmatpush1.msra.mxu0 %v4028
    %5256 = vmatprep.subr.mxu0 0.0
    %5257 = vmatpush1.msra.mxu0 %v4033
    %5258 = vmatprep.subr.mxu0 0.0
    %5259 = vmatpush1.msra.mxu0 %v4038
    %5260 = vmatprep.subr.mxu0 0.0
    %5261 = vmatpush1.msra.mxu0 %v4043
    %5262 = vmatprep.subr.mxu0 0.0
    %5263 = vmatpush1.msra.mxu0 %v4048
    %5264 = vmatprep.subr.mxu0 0.0
    %5265 = vmatpush1.msra.mxu0 %v4053
    %5266 = vmatprep.subr.mxu0 0.0
    %5267 = vmatpush1.msra.mxu0 %v4058
    %5268 = vmatprep.subr.mxu0 0.0
    %5269 = vmatpush1.msra.mxu0 0.0
    %5270 = vmatprep.subr.mxu0 0.0
    %5271 = vmatpush1.msra.mxu0 0.0
    %5272 = vmatprep.subr.mxu0 0.0
    %5273 = vmatpush1.msra.mxu0 0.0
    %5274 = vmatprep.subr.mxu0 0.0
    %5275 = vmatpush1.msra.mxu0 0.0
    %5276 = vmatprep.subr.mxu0 0.0
    %5277 = vmatpush1.msra.mxu0 0.0
    %5278 = vmatprep.subr.mxu0 0.0
    %5279 = vmatpush1.msra.mxu0 0.0
    %5280 = vmatprep.subr.mxu0 0.0
    %5281 = vmatpush1.msra.mxu0 0.0
    %5282 = vmatprep.subr.mxu0 0.0
    %5283 = vmatpush1.msra.mxu0 0.0
    %5284 = vmatprep.subr.mxu0 0.0
    %5285 = vmatpush1.msra.mxu0 0.0
    %5286 = vmatprep.subr.mxu0 0.0
    %5287 = vmatpush1.msra.mxu0 0.0
    %5288 = vmatprep.subr.mxu0 0.0
    %5289 = vmatpush1.msra.mxu0 0.0
    %5290 = vmatprep.subr.mxu0 0.0
    %5291 = vmatpush1.msra.mxu0 0.0
    %5292 = vmatprep.subr.mxu0 0.0
    %5293 = vmatpush1.msra.mxu0 0.0
    %5294 = vmatprep.subr.mxu0 0.0
    %5295 = vmatpush1.msra.mxu0 0.0
    %5296 = vmatprep.subr.mxu0 0.0
    %5297 = vmatpush1.msra.mxu0 0.0
    %5298 = vmatprep.subr.mxu0 0.0
    %5299 = vmatpush1.msra.mxu0 0.0
    %5300 = vmatprep.subr.mxu0 0.0
    %5301 = vmatpush1.msra.mxu0 0.0
    %5302 = vmatprep.subr.mxu0 0.0
    %5303 = vmatpush1.msra.mxu0 0.0
    %5304 = vmatprep.subr.mxu0 0.0
    %5305 = vmatpush1.msra.mxu0 0.0
    %5306 = vmatprep.subr.mxu0 0.0
    %5307 = vmatpush1.msra.mxu0 0.0
    %5308 = vmatprep.subr.mxu0 0.0
    %5309 = vmatpush1.msra.mxu0 0.0
    %5310 = vmatprep.subr.mxu0 0.0
    %5311 = vmatpush1.msra.mxu0 0.0
    %5312 = vmatprep.subr.mxu0 0.0
    %5313 = vmatpush1.msra.mxu0 0.0
    %5314 = vmatprep.subr.mxu0 0.0
    %5315 = vmatpush1.msra.mxu0 0.0
    %5316 = vmatprep.mubr.f32.mxu0 0.0
    %5317 = vmatmul.mubr.f32.gmra.mrb[0].mxu0 %v5229
    %v5318 = vpop.f32.mrb[0].mxu0
    %v5319 = vadd.f32 0.0, %v5318
    %v5320 = vpop.f32.mrb[0].mxu0
    %5321 = vmatprep.mubr.f32.mxu0 0.0
    %5322 = vmatmul.mubr.f32.gmra.mrb[0].mxu0 %v5232
    %v5323 = vpop.f32.mrb[0].mxu0
    %v5324 = vadd.f32 0.0, %v5323
    %v5325 = vpop.f32.mrb[0].mxu0
    %5326 = vmatprep.mubr.f32.mxu0 0.0
    %5327 = vmatmul.mubr.f32.gmra.mrb[0].mxu0 %v5235
    %v5328 = vpop.f32.mrb[0].mxu0
    %v5329 = vadd.f32 0.0, %v5328
    %v5330 = vpop.f32.mrb[0].mxu0
    %5331 = vmatprep.mubr.f32.mxu0 0.0
    %5332 = vmatmul.mubr.f32.gmra.mrb[0].mxu0 %v5238
    %v5333 = vpop.f32.mrb[0].mxu0
    %v5334 = vadd.f32 0.0, %v5333
    %v5335 = vpop.f32.mrb[0].mxu0
    %5336 = vmatprep.mubr.f32.mxu0 0.0
    %5337 = vmatmul.mubr.f32.gmra.mrb[0].mxu0 %v5241
    %v5338 = vpop.f32.mrb[0].mxu0
    %v5339 = vadd.f32 0.0, %v5338
    %v5340 = vpop.f32.mrb[0].mxu0
    %5341 = vmatprep.mubr.f32.mxu0 0.0
    %5342 = vmatmul.mubr.f32.gmra.mrb[0].mxu0 %v5244
    %v5343 = vpop.f32.mrb[0].mxu0
    %v5344 = vadd.f32 0.0, %v5343
    %v5345 = vpop.f32.mrb[0].mxu0
    %5346 = vmatprep.mubr.f32.mxu0 0.0
    %5347 = vmatmul.mubr.f32.gmra.mrb[0].mxu0 %v5247
    %v5348 = vpop.f32.mrb[0].mxu0
    %v5349 = vadd.f32 0.0, %v5348
    %v5350 = vpop.f32.mrb[0].mxu0
    %5351 = vmatprep.mubr.f32.mxu0 0.0
    %5352 = vmatmul.mubr.f32.gmra.mrb[0].mxu0 %v5250
    %v5353 = vpop.f32.mrb[0].mxu0
    %v5354 = vadd.f32 0.0, %v5353
    %v5355 = vpop.f32.mrb[0].mxu0
    %5356 = vdwg.mxu0
    %v5358 = vsel %vm104, %v4152, 0
    %v5361 = vsel %vm104, %v4157, 0
    %v5364 = vsel %vm104, %v4162, 0
    %v5367 = vsel %vm104, %v4167, 0
    %v5370 = vsel %vm104, %v4172, 0
    %v5373 = vsel %vm104, %v4177, 0
    %v5376 = vsel %vm104, %v4182, 0
    %v5379 = vsel %vm104, %v4187, 0
    %5381 = vmatprep.subr.mxu0 0.0
    %5382 = vmatpush1.msra.mxu0 %v4152
    %5383 = vmatprep.subr.mxu0 0.0
    %5384 = vmatpush1.msra.mxu0 %v4157
    %5385 = vmatprep.subr.mxu0 0.0
    %5386 = vmatpush1.msra.mxu0 %v4162
    %5387 = vmatprep.subr.mxu0 0.0
    %5388 = vmatpush1.msra.mxu0 %v4167
    %5389 = vmatprep.subr.mxu0 0.0
    %5390 = vmatpush1.msra.mxu0 %v4172
    %5391 = vmatprep.subr.mxu0 0.0
    %5392 = vmatpush1.msra.mxu0 %v4177
    %5393 = vmatprep.subr.mxu0 0.0
    %5394 = vmatpush1.msra.mxu0 %v4182
    %5395 = vmatprep.subr.mxu0 0.0
    %5396 = vmatpush1.msra.mxu0 %v4187
    %5397 = vmatprep.subr.mxu0 0.0
    %5398 = vmatpush1.msra.mxu0 0.0
    %5399 = vmatprep.subr.mxu0 0.0
    %5400 = vmatpush1.msra.mxu0 0.0
    %5401 = vmatprep.subr.mxu0 0.0
    %5402 = vmatpush1.msra.mxu0 0.0
    %5403 = vmatprep.subr.mxu0 0.0
    %5404 = vmatpush1.msra.mxu0 0.0
    %5405 = vmatprep.subr.mxu0 0.0
    %5406 = vmatpush1.msra.mxu0 0.0
    %5407 = vmatprep.subr.mxu0 0.0
    %5408 = vmatpush1.msra.mxu0 0.0
    %5409 = vmatprep.subr.mxu0 0.0
    %5410 = vmatpush1.msra.mxu0 0.0
    %5411 = vmatprep.subr.mxu0 0.0
    %5412 = vmatpush1.msra.mxu0 0.0
    %5413 = vmatprep.subr.mxu0 0.0
    %5414 = vmatpush1.msra.mxu0 0.0
    %5415 = vmatprep.subr.mxu0 0.0
    %5416 = vmatpush1.msra.mxu0 0.0
    %5417 = vmatprep.subr.mxu0 0.0
    %5418 = vmatpush1.msra.mxu0 0.0
    %5419 = vmatprep.subr.mxu0 0.0
    %5420 = vmatpush1.msra.mxu0 0.0
    %5421 = vmatprep.subr.mxu0 0.0
    %5422 = vmatpush1.msra.mxu0 0.0
    %5423 = vmatprep.subr.mxu0 0.0
    %5424 = vmatpush1.msra.mxu0 0.0
    %5425 = vmatprep.subr.mxu0 0.0
    %5426 = vmatpush1.msra.mxu0 0.0
    %5427 = vmatprep.subr.mxu0 0.0
    %5428 = vmatpush1.msra.mxu0 0.0
    %5429 = vmatprep.subr.mxu0 0.0
    %5430 = vmatpush1.msra.mxu0 0.0
    %5431 = vmatprep.subr.mxu0 0.0
    %5432 = vmatpush1.msra.mxu0 0.0
    %5433 = vmatprep.subr.mxu0 0.0
    %5434 = vmatpush1.msra.mxu0 0.0
    %5435 = vmatprep.subr.mxu0 0.0
    %5436 = vmatpush1.msra.mxu0 0.0
    %5437 = vmatprep.subr.mxu0 0.0
    %5438 = vmatpush1.msra.mxu0 0.0
    %5439 = vmatprep.subr.mxu0 0.0
    %5440 = vmatpush1.msra.mxu0 0.0
    %5441 = vmatprep.subr.mxu0 0.0
    %5442 = vmatpush1.msra.mxu0 0.0
    %5443 = vmatprep.subr.mxu0 0.0
    %5444 = vmatpush1.msra.mxu0 0.0
    %5445 = vmatprep.mubr.f32.mxu0 0.0
    %5446 = vmatmul.mubr.f32.gmra.mrb[0].mxu0 %v5358
    %v5447 = vpop.f32.mrb[0].mxu0
    %v5448 = vadd.f32 0.0, %v5447
    %v5449 = vpop.f32.mrb[0].mxu0
    %5450 = vmatprep.mubr.f32.mxu0 0.0
    %5451 = vmatmul.mubr.f32.gmra.mrb[0].mxu0 %v5361
    %v5452 = vpop.f32.mrb[0].mxu0
    %v5453 = vadd.f32 0.0, %v5452
    %v5454 = vpop.f32.mrb[0].mxu0
    %5455 = vmatprep.mubr.f32.mxu0 0.0
    %5456 = vmatmul.mubr.f32.gmra.mrb[0].mxu0 %v5364
    %v5457 = vpop.f32.mrb[0].mxu0
    %v5458 = vadd.f32 0.0, %v5457
    %v5459 = vpop.f32.mrb[0].mxu0
    %5460 = vmatprep.mubr.f32.mxu0 0.0
    %5461 = vmatmul.mubr.f32.gmra.mrb[0].mxu0 %v5367
    %v5462 = vpop.f32.mrb[0].mxu0
    %v5463 = vadd.f32 0.0, %v5462
    %v5464 = vpop.f32.mrb[0].mxu0
    %5465 = vmatprep.mubr.f32.mxu0 0.0
    %5466 = vmatmul.mubr.f32.gmra.mrb[0].mxu0 %v5370
    %v5467 = vpop.f32.mrb[0].mxu0
    %v5468 = vadd.f32 0.0, %v5467
    %v5469 = vpop.f32.mrb[0].mxu0
    %5470 = vmatprep.mubr.f32.mxu0 0.0
    %5471 = vmatmul.mubr.f32.gmra.mrb[0].mxu0 %v5373
    %v5472 = vpop.f32.mrb[0].mxu0
    %v5473 = vadd.f32 0.0, %v5472
    %v5474 = vpop.f32.mrb[0].mxu0
    %5475 = vmatprep.mubr.f32.mxu0 0.0
    %5476 = vmatmul.mubr.f32.gmra.mrb[0].mxu0 %v5376
    %v5477 = vpop.f32.mrb[0].mxu0
    %v5478 = vadd.f32 0.0, %v5477
    %v5479 = vpop.f32.mrb[0].mxu0
    %5480 = vmatprep.mubr.f32.mxu0 0.0
    %5481 = vmatmul.mubr.f32.gmra.mrb[0].mxu0 %v5379
    %v5482 = vpop.f32.mrb[0].mxu0
    %v5483 = vadd.f32 0.0, %v5482
    %v5484 = vpop.f32.mrb[0].mxu0
    %5485 = vdwg.mxu0
    %5494 = vset.pattern.permute.xlu0 0
    %5495 = vperm.xlu0 %5494, %v4938
    %v5496 = vpop.permute.xlu0 %5495
    %5497 = vset.pattern.permute.xlu0 0
    %5498 = vperm.xlu0 %5497, %v4939
    %v5499 = vpop.permute.xlu0 %5498
    %5500 = vset.pattern.permute.xlu0 0
    %5501 = vperm.xlu0 %5500, %v4940
    %v5502 = vpop.permute.xlu0 %5501
    %5503 = vset.pattern.permute.xlu0 0
    %5504 = vperm.xlu0 %5503, %v4941
    %v5505 = vpop.permute.xlu0 %5504
    %5506 = vset.pattern.permute.xlu0 0
    %5507 = vperm.xlu0 %5506, %v4942
    %v5508 = vpop.permute.xlu0 %5507
    %5509 = vset.pattern.permute.xlu0 0
    %5510 = vperm.xlu0 %5509, %v4943
    %v5511 = vpop.permute.xlu0 %5510
    %5512 = vset.pattern.permute.xlu0 0
    %5513 = vperm.xlu0 %5512, %v4944
    %v5514 = vpop.permute.xlu0 %5513
    %5515 = vset.pattern.permute.xlu0 0
    %5516 = vperm.xlu0 %5515, %v4945
    %v5517 = vpop.permute.xlu0 %5516
    %v5518 = vlaneseq
    %v5519 = vshrl.u32 %v5518, 7
    %v5520 = vsub.s32 %v1687, %v5519
    %v5521 = vrot.slane %v5496, %v5520
    %v5522 = vlaneseq
    %v5523 = vshrl.u32 %v5522, 7
    %v5524 = vsub.s32 %v1692, %v5523
    %v5525 = vrot.slane %v5499, %v5524
    %v5526 = vsel %vm1697, %v5525, %v5521
    %v5527 = vlaneseq
    %v5528 = vshrl.u32 %v5527, 7
    %v5529 = vsub.s32 %v1699, %v5528
    %v5530 = vrot.slane %v5502, %v5529
    %v5531 = vsel %vm1704, %v5530, %v5526
    %v5532 = vlaneseq
    %v5533 = vshrl.u32 %v5532, 7
    %v5534 = vsub.s32 %v1706, %v5533
    %v5535 = vrot.slane %v5505, %v5534
    %v5536 = vsel %vm1711, %v5535, %v5531
    %v5537 = vlaneseq
    %v5538 = vshrl.u32 %v5537, 7
    %v5539 = vsub.s32 %v1713, %v5538
    %v5540 = vrot.slane %v5508, %v5539
    %v5541 = vsel %vm1718, %v5540, %v5536
    %v5542 = vlaneseq
    %v5543 = vshrl.u32 %v5542, 7
    %v5544 = vsub.s32 %v1720, %v5543
    %v5545 = vrot.slane %v5511, %v5544
    %v5546 = vsel %vm1725, %v5545, %v5541
    %v5547 = vlaneseq
    %v5548 = vshrl.u32 %v5547, 7
    %v5549 = vsub.s32 %v1727, %v5548
    %v5550 = vrot.slane %v5514, %v5549
    %v5551 = vsel %vm1732, %v5550, %v5546
    %v5552 = vlaneseq
    %v5553 = vshrl.u32 %v5552, 7
    %v5554 = vsub.s32 %v1734, %v5553
    %v5555 = vrot.slane %v5517, %v5554
    %v5556 = vsel %vm1739, %v5555, %v5551
    %v5557 = vsel %vm104, %v5556, 0
    %5559 = vmatprep.subr.mxu0 0.0
    %5560 = vmatpush1.msra.mxu0 %v5061
    %5561 = vmatprep.subr.mxu0 0.0
    %5562 = vmatpush1.msra.mxu0 %v5066
    %5563 = vmatprep.subr.mxu0 0.0
    %5564 = vmatpush1.msra.mxu0 %v5071
    %5565 = vmatprep.subr.mxu0 0.0
    %5566 = vmatpush1.msra.mxu0 %v5076
    %5567 = vmatprep.subr.mxu0 0.0
    %5568 = vmatpush1.msra.mxu0 %v5081
    %5569 = vmatprep.subr.mxu0 0.0
    %5570 = vmatpush1.msra.mxu0 %v5086
    %5571 = vmatprep.subr.mxu0 0.0
    %5572 = vmatpush1.msra.mxu0 %v5091
    %5573 = vmatprep.subr.mxu0 0.0
    %5574 = vmatpush1.msra.mxu0 %v5096
    %5575 = vmatprep.subr.mxu0 0.0
    %5576 = vmatpush1.msra.mxu0 0.0
    %5577 = vmatprep.subr.mxu0 0.0
    %5578 = vmatpush1.msra.mxu0 0.0
    %5579 = vmatprep.subr.mxu0 0.0
    %5580 = vmatpush1.msra.mxu0 0.0
    %5581 = vmatprep.subr.mxu0 0.0
    %5582 = vmatpush1.msra.mxu0 0.0
    %5583 = vmatprep.subr.mxu0 0.0
    %5584 = vmatpush1.msra.mxu0 0.0
    %5585 = vmatprep.subr.mxu0 0.0
    %5586 = vmatpush1.msra.mxu0 0.0
    %5587 = vmatprep.subr.mxu0 0.0
    %5588 = vmatpush1.msra.mxu0 0.0
    %5589 = vmatprep.subr.mxu0 0.0
    %5590 = vmatpush1.msra.mxu0 0.0
    %5591 = vmatprep.subr.mxu0 0.0
    %5592 = vmatpush1.msra.mxu0 0.0
    %5593 = vmatprep.subr.mxu0 0.0
    %5594 = vmatpush1.msra.mxu0 0.0
    %5595 = vmatprep.subr.mxu0 0.0
    %5596 = vmatpush1.msra.mxu0 0.0
    %5597 = vmatprep.subr.mxu0 0.0
    %5598 = vmatpush1.msra.mxu0 0.0
    %5599 = vmatprep.subr.mxu0 0.0
    %5600 = vmatpush1.msra.mxu0 0.0
    %5601 = vmatprep.subr.mxu0 0.0
    %5602 = vmatpush1.msra.mxu0 0.0
    %5603 = vmatprep.subr.mxu0 0.0
    %5604 = vmatpush1.msra.mxu0 0.0
    %5605 = vmatprep.subr.mxu0 0.0
    %5606 = vmatpush1.msra.mxu0 0.0
    %5607 = vmatprep.subr.mxu0 0.0
    %5608 = vmatpush1.msra.mxu0 0.0
    %5609 = vmatprep.subr.mxu0 0.0
    %5610 = vmatpush1.msra.mxu0 0.0
    %5611 = vmatprep.subr.mxu0 0.0
    %5612 = vmatpush1.msra.mxu0 0.0
    %5613 = vmatprep.subr.mxu0 0.0
    %5614 = vmatpush1.msra.mxu0 0.0
    %5615 = vmatprep.subr.mxu0 0.0
    %5616 = vmatpush1.msra.mxu0 0.0
    %5617 = vmatprep.subr.mxu0 0.0
    %5618 = vmatpush1.msra.mxu0 0.0
    %5619 = vmatprep.subr.mxu0 0.0
    %5620 = vmatpush1.msra.mxu0 0.0
    %5621 = vmatprep.subr.mxu0 0.0
    %5622 = vmatpush1.msra.mxu0 0.0
    %5623 = vmatprep.mubr.f32.mxu0 0.0
    %5624 = vmatmul.mubr.f32.gmra.mrb[0].mxu0 %v5557
    %v5625 = vpop.f32.mrb[0].mxu0
    %v5626 = vadd.f32 0.0, %v5625
    %v5627 = vpop.f32.mrb[0].mxu0
    %5628 = vdwg.mxu0
    %5637 = vset.pattern.permute.xlu0 0
    %5638 = vperm.xlu0 %5637, %v4946
    %v5639 = vpop.permute.xlu0 %5638
    %5640 = vset.pattern.permute.xlu0 0
    %5641 = vperm.xlu0 %5640, %v4947
    %v5642 = vpop.permute.xlu0 %5641
    %5643 = vset.pattern.permute.xlu0 0
    %5644 = vperm.xlu0 %5643, %v4948
    %v5645 = vpop.permute.xlu0 %5644
    %5646 = vset.pattern.permute.xlu0 0
    %5647 = vperm.xlu0 %5646, %v4949
    %v5648 = vpop.permute.xlu0 %5647
    %5649 = vset.pattern.permute.xlu0 0
    %5650 = vperm.xlu0 %5649, %v4950
    %v5651 = vpop.permute.xlu0 %5650
    %5652 = vset.pattern.permute.xlu0 0
    %5653 = vperm.xlu0 %5652, %v4951
    %v5654 = vpop.permute.xlu0 %5653
    %5655 = vset.pattern.permute.xlu0 0
    %5656 = vperm.xlu0 %5655, %v4952
    %v5657 = vpop.permute.xlu0 %5656
    %5658 = vset.pattern.permute.xlu0 0
    %5659 = vperm.xlu0 %5658, %v4953
    %v5660 = vpop.permute.xlu0 %5659
    %v5661 = vlaneseq
    %v5662 = vshrl.u32 %v5661, 7
    %v5663 = vsub.s32 %v1687, %v5662
    %v5664 = vrot.slane %v5639, %v5663
    %v5665 = vlaneseq
    %v5666 = vshrl.u32 %v5665, 7
    %v5667 = vsub.s32 %v1692, %v5666
    %v5668 = vrot.slane %v5642, %v5667
    %v5669 = vsel %vm1697, %v5668, %v5664
    %v5670 = vlaneseq
    %v5671 = vshrl.u32 %v5670, 7
    %v5672 = vsub.s32 %v1699, %v5671
    %v5673 = vrot.slane %v5645, %v5672
    %v5674 = vsel %vm1704, %v5673, %v5669
    %v5675 = vlaneseq
    %v5676 = vshrl.u32 %v5675, 7
    %v5677 = vsub.s32 %v1706, %v5676
    %v5678 = vrot.slane %v5648, %v5677
    %v5679 = vsel %vm1711, %v5678, %v5674
    %v5680 = vlaneseq
    %v5681 = vshrl.u32 %v5680, 7
    %v5682 = vsub.s32 %v1713, %v5681
    %v5683 = vrot.slane %v5651, %v5682
    %v5684 = vsel %vm1718, %v5683, %v5679
    %v5685 = vlaneseq
    %v5686 = vshrl.u32 %v5685, 7
    %v5687 = vsub.s32 %v1720, %v5686
    %v5688 = vrot.slane %v5654, %v5687
    %v5689 = vsel %vm1725, %v5688, %v5684
    %v5690 = vlaneseq
    %v5691 = vshrl.u32 %v5690, 7
    %v5692 = vsub.s32 %v1727, %v5691
    %v5693 = vrot.slane %v5657, %v5692
    %v5694 = vsel %vm1732, %v5693, %v5689
    %v5695 = vlaneseq
    %v5696 = vshrl.u32 %v5695, 7
    %v5697 = vsub.s32 %v1734, %v5696
    %v5698 = vrot.slane %v5660, %v5697
    %v5699 = vsel %vm1739, %v5698, %v5694
    %v5700 = vsel %vm104, %v5699, 0
    %5702 = vmatprep.subr.mxu0 0.0
    %5703 = vmatpush1.msra.mxu0 %v5190
    %5704 = vmatprep.subr.mxu0 0.0
    %5705 = vmatpush1.msra.mxu0 %v5195
    %5706 = vmatprep.subr.mxu0 0.0
    %5707 = vmatpush1.msra.mxu0 %v5200
    %5708 = vmatprep.subr.mxu0 0.0
    %5709 = vmatpush1.msra.mxu0 %v5205
    %5710 = vmatprep.subr.mxu0 0.0
    %5711 = vmatpush1.msra.mxu0 %v5210
    %5712 = vmatprep.subr.mxu0 0.0
    %5713 = vmatpush1.msra.mxu0 %v5215
    %5714 = vmatprep.subr.mxu0 0.0
    %5715 = vmatpush1.msra.mxu0 %v5220
    %5716 = vmatprep.subr.mxu0 0.0
    %5717 = vmatpush1.msra.mxu0 %v5225
    %5718 = vmatprep.subr.mxu0 0.0
    %5719 = vmatpush1.msra.mxu0 0.0
    %5720 = vmatprep.subr.mxu0 0.0
    %5721 = vmatpush1.msra.mxu0 0.0
    %5722 = vmatprep.subr.mxu0 0.0
    %5723 = vmatpush1.msra.mxu0 0.0
    %5724 = vmatprep.subr.mxu0 0.0
    %5725 = vmatpush1.msra.mxu0 0.0
    %5726 = vmatprep.subr.mxu0 0.0
    %5727 = vmatpush1.msra.mxu0 0.0
    %5728 = vmatprep.subr.mxu0 0.0
    %5729 = vmatpush1.msra.mxu0 0.0
    %5730 = vmatprep.subr.mxu0 0.0
    %5731 = vmatpush1.msra.mxu0 0.0
    %5732 = vmatprep.subr.mxu0 0.0
    %5733 = vmatpush1.msra.mxu0 0.0
    %5734 = vmatprep.subr.mxu0 0.0
    %5735 = vmatpush1.msra.mxu0 0.0
    %5736 = vmatprep.subr.mxu0 0.0
    %5737 = vmatpush1.msra.mxu0 0.0
    %5738 = vmatprep.subr.mxu0 0.0
    %5739 = vmatpush1.msra.mxu0 0.0
    %5740 = vmatprep.subr.mxu0 0.0
    %5741 = vmatpush1.msra.mxu0 0.0
    %5742 = vmatprep.subr.mxu0 0.0
    %5743 = vmatpush1.msra.mxu0 0.0
    %5744 = vmatprep.subr.mxu0 0.0
    %5745 = vmatpush1.msra.mxu0 0.0
    %5746 = vmatprep.subr.mxu0 0.0
    %5747 = vmatpush1.msra.mxu0 0.0
    %5748 = vmatprep.subr.mxu0 0.0
    %5749 = vmatpush1.msra.mxu0 0.0
    %5750 = vmatprep.subr.mxu0 0.0
    %5751 = vmatpush1.msra.mxu0 0.0
    %5752 = vmatprep.subr.mxu0 0.0
    %5753 = vmatpush1.msra.mxu0 0.0
    %5754 = vmatprep.subr.mxu0 0.0
    %5755 = vmatpush1.msra.mxu0 0.0
    %5756 = vmatprep.subr.mxu0 0.0
    %5757 = vmatpush1.msra.mxu0 0.0
    %5758 = vmatprep.subr.mxu0 0.0
    %5759 = vmatpush1.msra.mxu0 0.0
    %5760 = vmatprep.subr.mxu0 0.0
    %5761 = vmatpush1.msra.mxu0 0.0
    %5762 = vmatprep.subr.mxu0 0.0
    %5763 = vmatpush1.msra.mxu0 0.0
    %5764 = vmatprep.subr.mxu0 0.0
    %5765 = vmatpush1.msra.mxu0 0.0
    %5766 = vmatprep.mubr.f32.mxu0 0.0
    %5767 = vmatmul.mubr.f32.gmra.mrb[0].mxu0 %v5700
    %v5768 = vpop.f32.mrb[0].mxu0
    %v5769 = vadd.f32 0.0, %v5768
    %v5770 = vpop.f32.mrb[0].mxu0
    %5771 = vdwg.mxu0
    %5780 = vset.pattern.permute.xlu0 0
    %5781 = vperm.xlu0 %5780, %v4954
    %v5782 = vpop.permute.xlu0 %5781
    %5783 = vset.pattern.permute.xlu0 0
    %5784 = vperm.xlu0 %5783, %v4955
    %v5785 = vpop.permute.xlu0 %5784
    %5786 = vset.pattern.permute.xlu0 0
    %5787 = vperm.xlu0 %5786, %v4956
    %v5788 = vpop.permute.xlu0 %5787
    %5789 = vset.pattern.permute.xlu0 0
    %5790 = vperm.xlu0 %5789, %v4957
    %v5791 = vpop.permute.xlu0 %5790
    %5792 = vset.pattern.permute.xlu0 0
    %5793 = vperm.xlu0 %5792, %v4958
    %v5794 = vpop.permute.xlu0 %5793
    %5795 = vset.pattern.permute.xlu0 0
    %5796 = vperm.xlu0 %5795, %v4959
    %v5797 = vpop.permute.xlu0 %5796
    %5798 = vset.pattern.permute.xlu0 0
    %5799 = vperm.xlu0 %5798, %v4960
    %v5800 = vpop.permute.xlu0 %5799
    %5801 = vset.pattern.permute.xlu0 0
    %5802 = vperm.xlu0 %5801, %v4961
    %v5803 = vpop.permute.xlu0 %5802
    %v5804 = vlaneseq
    %v5805 = vshrl.u32 %v5804, 7
    %v5806 = vsub.s32 %v1687, %v5805
    %v5807 = vrot.slane %v5782, %v5806
    %v5808 = vlaneseq
    %v5809 = vshrl.u32 %v5808, 7
    %v5810 = vsub.s32 %v1692, %v5809
    %v5811 = vrot.slane %v5785, %v5810
    %v5812 = vsel %vm1697, %v5811, %v5807
    %v5813 = vlaneseq
    %v5814 = vshrl.u32 %v5813, 7
    %v5815 = vsub.s32 %v1699, %v5814
    %v5816 = vrot.slane %v5788, %v5815
    %v5817 = vsel %vm1704, %v5816, %v5812
    %v5818 = vlaneseq
    %v5819 = vshrl.u32 %v5818, 7
    %v5820 = vsub.s32 %v1706, %v5819
    %v5821 = vrot.slane %v5791, %v5820
    %v5822 = vsel %vm1711, %v5821, %v5817
    %v5823 = vlaneseq
    %v5824 = vshrl.u32 %v5823, 7
    %v5825 = vsub.s32 %v1713, %v5824
    %v5826 = vrot.slane %v5794, %v5825
    %v5827 = vsel %vm1718, %v5826, %v5822
    %v5828 = vlaneseq
    %v5829 = vshrl.u32 %v5828, 7
    %v5830 = vsub.s32 %v1720, %v5829
    %v5831 = vrot.slane %v5797, %v5830
    %v5832 = vsel %vm1725, %v5831, %v5827
    %v5833 = vlaneseq
    %v5834 = vshrl.u32 %v5833, 7
    %v5835 = vsub.s32 %v1727, %v5834
    %v5836 = vrot.slane %v5800, %v5835
    %v5837 = vsel %vm1732, %v5836, %v5832
    %v5838 = vlaneseq
    %v5839 = vshrl.u32 %v5838, 7
    %v5840 = vsub.s32 %v1734, %v5839
    %v5841 = vrot.slane %v5803, %v5840
    %v5842 = vsel %vm1739, %v5841, %v5837
    %v5843 = vsel %vm104, %v5842, 0
    %5845 = vmatprep.subr.mxu0 0.0
    %5846 = vmatpush1.msra.mxu0 %v5319
    %5847 = vmatprep.subr.mxu0 0.0
    %5848 = vmatpush1.msra.mxu0 %v5324
    %5849 = vmatprep.subr.mxu0 0.0
    %5850 = vmatpush1.msra.mxu0 %v5329
    %5851 = vmatprep.subr.mxu0 0.0
    %5852 = vmatpush1.msra.mxu0 %v5334
    %5853 = vmatprep.subr.mxu0 0.0
    %5854 = vmatpush1.msra.mxu0 %v5339
    %5855 = vmatprep.subr.mxu0 0.0
    %5856 = vmatpush1.msra.mxu0 %v5344
    %5857 = vmatprep.subr.mxu0 0.0
    %5858 = vmatpush1.msra.mxu0 %v5349
    %5859 = vmatprep.subr.mxu0 0.0
    %5860 = vmatpush1.msra.mxu0 %v5354
    %5861 = vmatprep.subr.mxu0 0.0
    %5862 = vmatpush1.msra.mxu0 0.0
    %5863 = vmatprep.subr.mxu0 0.0
    %5864 = vmatpush1.msra.mxu0 0.0
    %5865 = vmatprep.subr.mxu0 0.0
    %5866 = vmatpush1.msra.mxu0 0.0
    %5867 = vmatprep.subr.mxu0 0.0
    %5868 = vmatpush1.msra.mxu0 0.0
    %5869 = vmatprep.subr.mxu0 0.0
    %5870 = vmatpush1.msra.mxu0 0.0
    %5871 = vmatprep.subr.mxu0 0.0
    %5872 = vmatpush1.msra.mxu0 0.0
    %5873 = vmatprep.subr.mxu0 0.0
    %5874 = vmatpush1.msra.mxu0 0.0
    %5875 = vmatprep.subr.mxu0 0.0
    %5876 = vmatpush1.msra.mxu0 0.0
    %5877 = vmatprep.subr.mxu0 0.0
    %5878 = vmatpush1.msra.mxu0 0.0
    %5879 = vmatprep.subr.mxu0 0.0
    %5880 = vmatpush1.msra.mxu0 0.0
    %5881 = vmatprep.subr.mxu0 0.0
    %5882 = vmatpush1.msra.mxu0 0.0
    %5883 = vmatprep.subr.mxu0 0.0
    %5884 = vmatpush1.msra.mxu0 0.0
    %5885 = vmatprep.subr.mxu0 0.0
    %5886 = vmatpush1.msra.mxu0 0.0
    %5887 = vmatprep.subr.mxu0 0.0
    %5888 = vmatpush1.msra.mxu0 0.0
    %5889 = vmatprep.subr.mxu0 0.0
    %5890 = vmatpush1.msra.mxu0 0.0
    %5891 = vmatprep.subr.mxu0 0.0
    %5892 = vmatpush1.msra.mxu0 0.0
    %5893 = vmatprep.subr.mxu0 0.0
    %5894 = vmatpush1.msra.mxu0 0.0
    %5895 = vmatprep.subr.mxu0 0.0
    %5896 = vmatpush1.msra.mxu0 0.0
    %5897 = vmatprep.subr.mxu0 0.0
    %5898 = vmatpush1.msra.mxu0 0.0
    %5899 = vmatprep.subr.mxu0 0.0
    %5900 = vmatpush1.msra.mxu0 0.0
    %5901 = vmatprep.subr.mxu0 0.0
    %5902 = vmatpush1.msra.mxu0 0.0
    %5903 = vmatprep.subr.mxu0 0.0
    %5904 = vmatpush1.msra.mxu0 0.0
    %5905 = vmatprep.subr.mxu0 0.0
    %5906 = vmatpush1.msra.mxu0 0.0
    %5907 = vmatprep.subr.mxu0 0.0
    %5908 = vmatpush1.msra.mxu0 0.0
    %5909 = vmatprep.mubr.f32.mxu0 0.0
    %5910 = vmatmul.mubr.f32.gmra.mrb[0].mxu0 %v5843
    %v5911 = vpop.f32.mrb[0].mxu0
    %v5912 = vadd.f32 0.0, %v5911
    %v5913 = vpop.f32.mrb[0].mxu0
    %5914 = vdwg.mxu0
    %5923 = vset.pattern.permute.xlu0 0
    %5924 = vperm.xlu0 %5923, %v4962
    %v5925 = vpop.permute.xlu0 %5924
    %5926 = vset.pattern.permute.xlu0 0
    %5927 = vperm.xlu0 %5926, %v4963
    %v5928 = vpop.permute.xlu0 %5927
    %5929 = vset.pattern.permute.xlu0 0
    %5930 = vperm.xlu0 %5929, %v4964
    %v5931 = vpop.permute.xlu0 %5930
    %5932 = vset.pattern.permute.xlu0 0
    %5933 = vperm.xlu0 %5932, %v4965
    %v5934 = vpop.permute.xlu0 %5933
    %5935 = vset.pattern.permute.xlu0 0
    %5936 = vperm.xlu0 %5935, %v4966
    %v5937 = vpop.permute.xlu0 %5936
    %5938 = vset.pattern.permute.xlu0 0
    %5939 = vperm.xlu0 %5938, %v4967
    %v5940 = vpop.permute.xlu0 %5939
    %5941 = vset.pattern.permute.xlu0 0
    %5942 = vperm.xlu0 %5941, %v4968
    %v5943 = vpop.permute.xlu0 %5942
    %5944 = vset.pattern.permute.xlu0 0
    %5945 = vperm.xlu0 %5944, %v4969
    %v5946 = vpop.permute.xlu0 %5945
    %v5947 = vlaneseq
    %v5948 = vshrl.u32 %v5947, 7
    %v5949 = vsub.s32 %v1687, %v5948
    %v5950 = vrot.slane %v5925, %v5949
    %v5951 = vlaneseq
    %v5952 = vshrl.u32 %v5951, 7
    %v5953 = vsub.s32 %v1692, %v5952
    %v5954 = vrot.slane %v5928, %v5953
    %v5955 = vsel %vm1697, %v5954, %v5950
    %v5956 = vlaneseq
    %v5957 = vshrl.u32 %v5956, 7
    %v5958 = vsub.s32 %v1699, %v5957
    %v5959 = vrot.slane %v5931, %v5958
    %v5960 = vsel %vm1704, %v5959, %v5955
    %v5961 = vlaneseq
    %v5962 = vshrl.u32 %v5961, 7
    %v5963 = vsub.s32 %v1706, %v5962
    %v5964 = vrot.slane %v5934, %v5963
    %v5965 = vsel %vm1711, %v5964, %v5960
    %v5966 = vlaneseq
    %v5967 = vshrl.u32 %v5966, 7
    %v5968 = vsub.s32 %v1713, %v5967
    %v5969 = vrot.slane %v5937, %v5968
    %v5970 = vsel %vm1718, %v5969, %v5965
    %v5971 = vlaneseq
    %v5972 = vshrl.u32 %v5971, 7
    %v5973 = vsub.s32 %v1720, %v5972
    %v5974 = vrot.slane %v5940, %v5973
    %v5975 = vsel %vm1725, %v5974, %v5970
    %v5976 = vlaneseq
    %v5977 = vshrl.u32 %v5976, 7
    %v5978 = vsub.s32 %v1727, %v5977
    %v5979 = vrot.slane %v5943, %v5978
    %v5980 = vsel %vm1732, %v5979, %v5975
    %v5981 = vlaneseq
    %v5982 = vshrl.u32 %v5981, 7
    %v5983 = vsub.s32 %v1734, %v5982
    %v5984 = vrot.slane %v5946, %v5983
    %v5985 = vsel %vm1739, %v5984, %v5980
    %v5986 = vsel %vm104, %v5985, 0
    %5988 = vmatprep.subr.mxu0 0.0
    %5989 = vmatpush1.msra.mxu0 %v5448
    %5990 = vmatprep.subr.mxu0 0.0
    %5991 = vmatpush1.msra.mxu0 %v5453
    %5992 = vmatprep.subr.mxu0 0.0
    %5993 = vmatpush1.msra.mxu0 %v5458
    %5994 = vmatprep.subr.mxu0 0.0
    %5995 = vmatpush1.msra.mxu0 %v5463
    %5996 = vmatprep.subr.mxu0 0.0
    %5997 = vmatpush1.msra.mxu0 %v5468
    %5998 = vmatprep.subr.mxu0 0.0
    %5999 = vmatpush1.msra.mxu0 %v5473
    %6000 = vmatprep.subr.mxu0 0.0
    %6001 = vmatpush1.msra.mxu0 %v5478
    %6002 = vmatprep.subr.mxu0 0.0
    %6003 = vmatpush1.msra.mxu0 %v5483
    %6004 = vmatprep.subr.mxu0 0.0
    %6005 = vmatpush1.msra.mxu0 0.0
    %6006 = vmatprep.subr.mxu0 0.0
    %6007 = vmatpush1.msra.mxu0 0.0
    %6008 = vmatprep.subr.mxu0 0.0
    %6009 = vmatpush1.msra.mxu0 0.0
    %6010 = vmatprep.subr.mxu0 0.0
    %6011 = vmatpush1.msra.mxu0 0.0
    %6012 = vmatprep.subr.mxu0 0.0
    %6013 = vmatpush1.msra.mxu0 0.0
    %6014 = vmatprep.subr.mxu0 0.0
    %6015 = vmatpush1.msra.mxu0 0.0
    %6016 = vmatprep.subr.mxu0 0.0
    %6017 = vmatpush1.msra.mxu0 0.0
    %6018 = vmatprep.subr.mxu0 0.0
    %6019 = vmatpush1.msra.mxu0 0.0
    %6020 = vmatprep.subr.mxu0 0.0
    %6021 = vmatpush1.msra.mxu0 0.0
    %6022 = vmatprep.subr.mxu0 0.0
    %6023 = vmatpush1.msra.mxu0 0.0
    %6024 = vmatprep.subr.mxu0 0.0
    %6025 = vmatpush1.msra.mxu0 0.0
    %6026 = vmatprep.subr.mxu0 0.0
    %6027 = vmatpush1.msra.mxu0 0.0
    %6028 = vmatprep.subr.mxu0 0.0
    %6029 = vmatpush1.msra.mxu0 0.0
    %6030 = vmatprep.subr.mxu0 0.0
    %6031 = vmatpush1.msra.mxu0 0.0
    %6032 = vmatprep.subr.mxu0 0.0
    %6033 = vmatpush1.msra.mxu0 0.0
    %6034 = vmatprep.subr.mxu0 0.0
    %6035 = vmatpush1.msra.mxu0 0.0
    %6036 = vmatprep.subr.mxu0 0.0
    %6037 = vmatpush1.msra.mxu0 0.0
    %6038 = vmatprep.subr.mxu0 0.0
    %6039 = vmatpush1.msra.mxu0 0.0
    %6040 = vmatprep.subr.mxu0 0.0
    %6041 = vmatpush1.msra.mxu0 0.0
    %6042 = vmatprep.subr.mxu0 0.0
    %6043 = vmatpush1.msra.mxu0 0.0
    %6044 = vmatprep.subr.mxu0 0.0
    %6045 = vmatpush1.msra.mxu0 0.0
    %6046 = vmatprep.subr.mxu0 0.0
    %6047 = vmatpush1.msra.mxu0 0.0
    %6048 = vmatprep.subr.mxu0 0.0
    %6049 = vmatpush1.msra.mxu0 0.0
    %6050 = vmatprep.subr.mxu0 0.0
    %6051 = vmatpush1.msra.mxu0 0.0
    %6052 = vmatprep.mubr.f32.mxu0 0.0
    %6053 = vmatmul.mubr.f32.gmra.mrb[0].mxu0 %v5986
    %v6054 = vpop.f32.mrb[0].mxu0
    %v6055 = vadd.f32 0.0, %v6054
    %v6056 = vpop.f32.mrb[0].mxu0
    %6057 = vdwg.mxu0
    %v6062 = vlaneseq
    %v6063 = vshrl.u32 %v6062, 7
    %v6064 = vsub.s32 0, %v6063
    %v6065 = vrot.slane %v5626, %v6064
    %6067 = vbcast.lane.b32.xlu0 %v6065, 256
    %v6068 = vpop.permute.xlu0 %6067
    %s6070 = sor.u32 256, 8
    %6071 = vbcast.lane.b32.xlu0 %v6065, %s6070
    %v6072 = vpop.permute.xlu0 %6071
    %s6074 = sor.u32 256, 16
    %6075 = vbcast.lane.b32.xlu0 %v6065, %s6074
    %v6076 = vpop.permute.xlu0 %6075
    %s6078 = sor.u32 256, 24
    %6079 = vbcast.lane.b32.xlu0 %v6065, %s6078
    %v6080 = vpop.permute.xlu0 %6079
    %s6082 = sor.u32 256, 32
    %6083 = vbcast.lane.b32.xlu0 %v6065, %s6082
    %v6084 = vpop.permute.xlu0 %6083
    %s6086 = sor.u32 256, 40
    %6087 = vbcast.lane.b32.xlu0 %v6065, %s6086
    %v6088 = vpop.permute.xlu0 %6087
    %s6090 = sor.u32 256, 48
    %6091 = vbcast.lane.b32.xlu0 %v6065, %s6090
    %v6092 = vpop.permute.xlu0 %6091
    %s6094 = sor.u32 256, 56
    %6095 = vbcast.lane.b32.xlu0 %v6065, %s6094
    %v6096 = vpop.permute.xlu0 %6095
    %v6097 = vlaneseq
    %v6098 = vshrl.u32 %v6097, 7
    %v6099 = vsub.s32 0, %v6098
    %v6100 = vrot.slane %v5769, %v6099
    %6102 = vbcast.lane.b32.xlu0 %v6100, 256
    %v6103 = vpop.permute.xlu0 %6102
    %s6105 = sor.u32 256, 8
    %6106 = vbcast.lane.b32.xlu0 %v6100, %s6105
    %v6107 = vpop.permute.xlu0 %6106
    %s6109 = sor.u32 256, 16
    %6110 = vbcast.lane.b32.xlu0 %v6100, %s6109
    %v6111 = vpop.permute.xlu0 %6110
    %s6113 = sor.u32 256, 24
    %6114 = vbcast.lane.b32.xlu0 %v6100, %s6113
    %v6115 = vpop.permute.xlu0 %6114
    %s6117 = sor.u32 256, 32
    %6118 = vbcast.lane.b32.xlu0 %v6100, %s6117
    %v6119 = vpop.permute.xlu0 %6118
    %s6121 = sor.u32 256, 40
    %6122 = vbcast.lane.b32.xlu0 %v6100, %s6121
    %v6123 = vpop.permute.xlu0 %6122
    %s6125 = sor.u32 256, 48
    %6126 = vbcast.lane.b32.xlu0 %v6100, %s6125
    %v6127 = vpop.permute.xlu0 %6126
    %s6129 = sor.u32 256, 56
    %6130 = vbcast.lane.b32.xlu0 %v6100, %s6129
    %v6131 = vpop.permute.xlu0 %6130
    %v6132 = vlaneseq
    %v6133 = vshrl.u32 %v6132, 7
    %v6134 = vsub.s32 0, %v6133
    %v6135 = vrot.slane %v5912, %v6134
    %6137 = vbcast.lane.b32.xlu0 %v6135, 256
    %v6138 = vpop.permute.xlu0 %6137
    %s6140 = sor.u32 256, 8
    %6141 = vbcast.lane.b32.xlu0 %v6135, %s6140
    %v6142 = vpop.permute.xlu0 %6141
    %s6144 = sor.u32 256, 16
    %6145 = vbcast.lane.b32.xlu0 %v6135, %s6144
    %v6146 = vpop.permute.xlu0 %6145
    %s6148 = sor.u32 256, 24
    %6149 = vbcast.lane.b32.xlu0 %v6135, %s6148
    %v6150 = vpop.permute.xlu0 %6149
    %s6152 = sor.u32 256, 32
    %6153 = vbcast.lane.b32.xlu0 %v6135, %s6152
    %v6154 = vpop.permute.xlu0 %6153
    %s6156 = sor.u32 256, 40
    %6157 = vbcast.lane.b32.xlu0 %v6135, %s6156
    %v6158 = vpop.permute.xlu0 %6157
    %s6160 = sor.u32 256, 48
    %6161 = vbcast.lane.b32.xlu0 %v6135, %s6160
    %v6162 = vpop.permute.xlu0 %6161
    %s6164 = sor.u32 256, 56
    %6165 = vbcast.lane.b32.xlu0 %v6135, %s6164
    %v6166 = vpop.permute.xlu0 %6165
    %v6167 = vlaneseq
    %v6168 = vshrl.u32 %v6167, 7
    %v6169 = vsub.s32 0, %v6168
    %v6170 = vrot.slane %v6055, %v6169
    %6172 = vbcast.lane.b32.xlu0 %v6170, 256
    %v6173 = vpop.permute.xlu0 %6172
    %s6175 = sor.u32 256, 8
    %6176 = vbcast.lane.b32.xlu0 %v6170, %s6175
    %v6177 = vpop.permute.xlu0 %6176
    %s6179 = sor.u32 256, 16
    %6180 = vbcast.lane.b32.xlu0 %v6170, %s6179
    %v6181 = vpop.permute.xlu0 %6180
    %s6183 = sor.u32 256, 24
    %6184 = vbcast.lane.b32.xlu0 %v6170, %s6183
    %v6185 = vpop.permute.xlu0 %6184
    %s6187 = sor.u32 256, 32
    %6188 = vbcast.lane.b32.xlu0 %v6170, %s6187
    %v6189 = vpop.permute.xlu0 %6188
    %s6191 = sor.u32 256, 40
    %6192 = vbcast.lane.b32.xlu0 %v6170, %s6191
    %v6193 = vpop.permute.xlu0 %6192
    %s6195 = sor.u32 256, 48
    %6196 = vbcast.lane.b32.xlu0 %v6170, %s6195
    %v6197 = vpop.permute.xlu0 %6196
    %s6199 = sor.u32 256, 56
    %6200 = vbcast.lane.b32.xlu0 %v6170, %s6199
    %v6201 = vpop.permute.xlu0 %6200
    %v6234 = vadd.f32 %v4938, %v6068
    %v6235 = vadd.f32 %v4939, %v6072
    %v6236 = vadd.f32 %v4940, %v6076
    %v6237 = vadd.f32 %v4941, %v6080
    %v6238 = vadd.f32 %v4942, %v6084
    %v6239 = vadd.f32 %v4943, %v6088
    %v6240 = vadd.f32 %v4944, %v6092
    %v6241 = vadd.f32 %v4945, %v6096
    %v6242 = vadd.f32 %v4946, %v6103
    %v6243 = vadd.f32 %v4947, %v6107
    %v6244 = vadd.f32 %v4948, %v6111
    %v6245 = vadd.f32 %v4949, %v6115
    %v6246 = vadd.f32 %v4950, %v6119
    %v6247 = vadd.f32 %v4951, %v6123
    %v6248 = vadd.f32 %v4952, %v6127
    %v6249 = vadd.f32 %v4953, %v6131
    %v6250 = vadd.f32 %v4954, %v6138
    %v6251 = vadd.f32 %v4955, %v6142
    %v6252 = vadd.f32 %v4956, %v6146
    %v6253 = vadd.f32 %v4957, %v6150
    %v6254 = vadd.f32 %v4958, %v6154
    %v6255 = vadd.f32 %v4959, %v6158
    %v6256 = vadd.f32 %v4960, %v6162
    %v6257 = vadd.f32 %v4961, %v6166
    %v6258 = vadd.f32 %v4962, %v6173
    %v6259 = vadd.f32 %v4963, %v6177
    %v6260 = vadd.f32 %v4964, %v6181
    %v6261 = vadd.f32 %v4965, %v6185
    %v6262 = vadd.f32 %v4966, %v6189
    %v6263 = vadd.f32 %v4967, %v6193
    %v6264 = vadd.f32 %v4968, %v6197
    %v6265 = vadd.f32 %v4969, %v6201
    %6274 = vset.pattern.permute.xlu0 0
    %6275 = vperm.xlu0 %6274, %v6234
    %v6276 = vpop.permute.xlu0 %6275
    %6277 = vset.pattern.permute.xlu0 0
    %6278 = vperm.xlu0 %6277, %v6235
    %v6279 = vpop.permute.xlu0 %6278
    %6280 = vset.pattern.permute.xlu0 0
    %6281 = vperm.xlu0 %6280, %v6236
    %v6282 = vpop.permute.xlu0 %6281
    %6283 = vset.pattern.permute.xlu0 0
    %6284 = vperm.xlu0 %6283, %v6237
    %v6285 = vpop.permute.xlu0 %6284
    %6286 = vset.pattern.permute.xlu0 0
    %6287 = vperm.xlu0 %6286, %v6238
    %v6288 = vpop.permute.xlu0 %6287
    %6289 = vset.pattern.permute.xlu0 0
    %6290 = vperm.xlu0 %6289, %v6239
    %v6291 = vpop.permute.xlu0 %6290
    %6292 = vset.pattern.permute.xlu0 0
    %6293 = vperm.xlu0 %6292, %v6240
    %v6294 = vpop.permute.xlu0 %6293
    %6295 = vset.pattern.permute.xlu0 0
    %6296 = vperm.xlu0 %6295, %v6241
    %v6297 = vpop.permute.xlu0 %6296
    %v6298 = vlaneseq
    %v6299 = vshrl.u32 %v6298, 7
    %v6300 = vsub.s32 %v1687, %v6299
    %v6301 = vrot.slane %v6276, %v6300
    %v6302 = vlaneseq
    %v6303 = vshrl.u32 %v6302, 7
    %v6304 = vsub.s32 %v1692, %v6303
    %v6305 = vrot.slane %v6279, %v6304
    %v6306 = vsel %vm1697, %v6305, %v6301
    %v6307 = vlaneseq
    %v6308 = vshrl.u32 %v6307, 7
    %v6309 = vsub.s32 %v1699, %v6308
    %v6310 = vrot.slane %v6282, %v6309
    %v6311 = vsel %vm1704, %v6310, %v6306
    %v6312 = vlaneseq
    %v6313 = vshrl.u32 %v6312, 7
    %v6314 = vsub.s32 %v1706, %v6313
    %v6315 = vrot.slane %v6285, %v6314
    %v6316 = vsel %vm1711, %v6315, %v6311
    %v6317 = vlaneseq
    %v6318 = vshrl.u32 %v6317, 7
    %v6319 = vsub.s32 %v1713, %v6318
    %v6320 = vrot.slane %v6288, %v6319
    %v6321 = vsel %vm1718, %v6320, %v6316
    %v6322 = vlaneseq
    %v6323 = vshrl.u32 %v6322, 7
    %v6324 = vsub.s32 %v1720, %v6323
    %v6325 = vrot.slane %v6291, %v6324
    %v6326 = vsel %vm1725, %v6325, %v6321
    %v6327 = vlaneseq
    %v6328 = vshrl.u32 %v6327, 7
    %v6329 = vsub.s32 %v1727, %v6328
    %v6330 = vrot.slane %v6294, %v6329
    %v6331 = vsel %vm1732, %v6330, %v6326
    %v6332 = vlaneseq
    %v6333 = vshrl.u32 %v6332, 7
    %v6334 = vsub.s32 %v1734, %v6333
    %v6335 = vrot.slane %v6297, %v6334
    %v6336 = vsel %vm1739, %v6335, %v6331
    %v6337 = vsel %vm104, %v6336, 0
    %6339 = vmatprep.subr.mxu0 0.0
    %6340 = vmatpush1.msra.mxu0 %v850
    %6341 = vmatprep.subr.mxu0 0.0
    %6342 = vmatpush1.msra.mxu0 %v851
    %6343 = vmatprep.subr.mxu0 0.0
    %6344 = vmatpush1.msra.mxu0 %v852
    %6345 = vmatprep.subr.mxu0 0.0
    %6346 = vmatpush1.msra.mxu0 %v853
    %6347 = vmatprep.subr.mxu0 0.0
    %6348 = vmatpush1.msra.mxu0 %v854
    %6349 = vmatprep.subr.mxu0 0.0
    %6350 = vmatpush1.msra.mxu0 %v855
    %6351 = vmatprep.subr.mxu0 0.0
    %6352 = vmatpush1.msra.mxu0 %v856
    %6353 = vmatprep.subr.mxu0 0.0
    %6354 = vmatpush1.msra.mxu0 %v857
    %6355 = vmatprep.subr.mxu0 0.0
    %6356 = vmatpush1.msra.mxu0 0.0
    %6357 = vmatprep.subr.mxu0 0.0
    %6358 = vmatpush1.msra.mxu0 0.0
    %6359 = vmatprep.subr.mxu0 0.0
    %6360 = vmatpush1.msra.mxu0 0.0
    %6361 = vmatprep.subr.mxu0 0.0
    %6362 = vmatpush1.msra.mxu0 0.0
    %6363 = vmatprep.subr.mxu0 0.0
    %6364 = vmatpush1.msra.mxu0 0.0
    %6365 = vmatprep.subr.mxu0 0.0
    %6366 = vmatpush1.msra.mxu0 0.0
    %6367 = vmatprep.subr.mxu0 0.0
    %6368 = vmatpush1.msra.mxu0 0.0
    %6369 = vmatprep.subr.mxu0 0.0
    %6370 = vmatpush1.msra.mxu0 0.0
    %6371 = vmatprep.subr.mxu0 0.0
    %6372 = vmatpush1.msra.mxu0 0.0
    %6373 = vmatprep.subr.mxu0 0.0
    %6374 = vmatpush1.msra.mxu0 0.0
    %6375 = vmatprep.subr.mxu0 0.0
    %6376 = vmatpush1.msra.mxu0 0.0
    %6377 = vmatprep.subr.mxu0 0.0
    %6378 = vmatpush1.msra.mxu0 0.0
    %6379 = vmatprep.subr.mxu0 0.0
    %6380 = vmatpush1.msra.mxu0 0.0
    %6381 = vmatprep.subr.mxu0 0.0
    %6382 = vmatpush1.msra.mxu0 0.0
    %6383 = vmatprep.subr.mxu0 0.0
    %6384 = vmatpush1.msra.mxu0 0.0
    %6385 = vmatprep.subr.mxu0 0.0
    %6386 = vmatpush1.msra.mxu0 0.0
    %6387 = vmatprep.subr.mxu0 0.0
    %6388 = vmatpush1.msra.mxu0 0.0
    %6389 = vmatprep.subr.mxu0 0.0
    %6390 = vmatpush1.msra.mxu0 0.0
    %6391 = vmatprep.subr.mxu0 0.0
    %6392 = vmatpush1.msra.mxu0 0.0
    %6393 = vmatprep.subr.mxu0 0.0
    %6394 = vmatpush1.msra.mxu0 0.0
    %6395 = vmatprep.subr.mxu0 0.0
    %6396 = vmatpush1.msra.mxu0 0.0
    %6397 = vmatprep.subr.mxu0 0.0
    %6398 = vmatpush1.msra.mxu0 0.0
    %6399 = vmatprep.subr.mxu0 0.0
    %6400 = vmatpush1.msra.mxu0 0.0
    %6401 = vmatprep.subr.mxu0 0.0
    %6402 = vmatpush1.msra.mxu0 0.0
    %6403 = vmatprep.mubr.f32.mxu0 0.0
    %6404 = vmatmul.mubr.f32.gmra.mrb[0].mxu0 %v6337
    %v6405 = vpop.f32.mrb[0].mxu0
    %v6406 = vadd.f32 0.0, %v6405
    %v6407 = vpop.f32.mrb[0].mxu0
    %6408 = vdwg.mxu0
    %6417 = vset.pattern.permute.xlu0 0
    %6418 = vperm.xlu0 %6417, %v6242
    %v6419 = vpop.permute.xlu0 %6418
    %6420 = vset.pattern.permute.xlu0 0
    %6421 = vperm.xlu0 %6420, %v6243
    %v6422 = vpop.permute.xlu0 %6421
    %6423 = vset.pattern.permute.xlu0 0
    %6424 = vperm.xlu0 %6423, %v6244
    %v6425 = vpop.permute.xlu0 %6424
    %6426 = vset.pattern.permute.xlu0 0
    %6427 = vperm.xlu0 %6426, %v6245
    %v6428 = vpop.permute.xlu0 %6427
    %6429 = vset.pattern.permute.xlu0 0
    %6430 = vperm.xlu0 %6429, %v6246
    %v6431 = vpop.permute.xlu0 %6430
    %6432 = vset.pattern.permute.xlu0 0
    %6433 = vperm.xlu0 %6432, %v6247
    %v6434 = vpop.permute.xlu0 %6433
    %6435 = vset.pattern.permute.xlu0 0
    %6436 = vperm.xlu0 %6435, %v6248
    %v6437 = vpop.permute.xlu0 %6436
    %6438 = vset.pattern.permute.xlu0 0
    %6439 = vperm.xlu0 %6438, %v6249
    %v6440 = vpop.permute.xlu0 %6439
    %v6441 = vlaneseq
    %v6442 = vshrl.u32 %v6441, 7
    %v6443 = vsub.s32 %v1687, %v6442
    %v6444 = vrot.slane %v6419, %v6443
    %v6445 = vlaneseq
    %v6446 = vshrl.u32 %v6445, 7
    %v6447 = vsub.s32 %v1692, %v6446
    %v6448 = vrot.slane %v6422, %v6447
    %v6449 = vsel %vm1697, %v6448, %v6444
    %v6450 = vlaneseq
    %v6451 = vshrl.u32 %v6450, 7
    %v6452 = vsub.s32 %v1699, %v6451
    %v6453 = vrot.slane %v6425, %v6452
    %v6454 = vsel %vm1704, %v6453, %v6449
    %v6455 = vlaneseq
    %v6456 = vshrl.u32 %v6455, 7
    %v6457 = vsub.s32 %v1706, %v6456
    %v6458 = vrot.slane %v6428, %v6457
    %v6459 = vsel %vm1711, %v6458, %v6454
    %v6460 = vlaneseq
    %v6461 = vshrl.u32 %v6460, 7
    %v6462 = vsub.s32 %v1713, %v6461
    %v6463 = vrot.slane %v6431, %v6462
    %v6464 = vsel %vm1718, %v6463, %v6459
    %v6465 = vlaneseq
    %v6466 = vshrl.u32 %v6465, 7
    %v6467 = vsub.s32 %v1720, %v6466
    %v6468 = vrot.slane %v6434, %v6467
    %v6469 = vsel %vm1725, %v6468, %v6464
    %v6470 = vlaneseq
    %v6471 = vshrl.u32 %v6470, 7
    %v6472 = vsub.s32 %v1727, %v6471
    %v6473 = vrot.slane %v6437, %v6472
    %v6474 = vsel %vm1732, %v6473, %v6469
    %v6475 = vlaneseq
    %v6476 = vshrl.u32 %v6475, 7
    %v6477 = vsub.s32 %v1734, %v6476
    %v6478 = vrot.slane %v6440, %v6477
    %v6479 = vsel %vm1739, %v6478, %v6474
    %v6480 = vsel %vm104, %v6479, 0
    %6482 = vmatprep.subr.mxu0 0.0
    %6483 = vmatpush1.msra.mxu0 %v858
    %6484 = vmatprep.subr.mxu0 0.0
    %6485 = vmatpush1.msra.mxu0 %v859
    %6486 = vmatprep.subr.mxu0 0.0
    %6487 = vmatpush1.msra.mxu0 %v860
    %6488 = vmatprep.subr.mxu0 0.0
    %6489 = vmatpush1.msra.mxu0 %v861
    %6490 = vmatprep.subr.mxu0 0.0
    %6491 = vmatpush1.msra.mxu0 %v862
    %6492 = vmatprep.subr.mxu0 0.0
    %6493 = vmatpush1.msra.mxu0 %v863
    %6494 = vmatprep.subr.mxu0 0.0
    %6495 = vmatpush1.msra.mxu0 %v864
    %6496 = vmatprep.subr.mxu0 0.0
    %6497 = vmatpush1.msra.mxu0 %v865
    %6498 = vmatprep.subr.mxu0 0.0
    %6499 = vmatpush1.msra.mxu0 0.0
    %6500 = vmatprep.subr.mxu0 0.0
    %6501 = vmatpush1.msra.mxu0 0.0
    %6502 = vmatprep.subr.mxu0 0.0
    %6503 = vmatpush1.msra.mxu0 0.0
    %6504 = vmatprep.subr.mxu0 0.0
    %6505 = vmatpush1.msra.mxu0 0.0
    %6506 = vmatprep.subr.mxu0 0.0
    %6507 = vmatpush1.msra.mxu0 0.0
    %6508 = vmatprep.subr.mxu0 0.0
    %6509 = vmatpush1.msra.mxu0 0.0
    %6510 = vmatprep.subr.mxu0 0.0
    %6511 = vmatpush1.msra.mxu0 0.0
    %6512 = vmatprep.subr.mxu0 0.0
    %6513 = vmatpush1.msra.mxu0 0.0
    %6514 = vmatprep.subr.mxu0 0.0
    %6515 = vmatpush1.msra.mxu0 0.0
    %6516 = vmatprep.subr.mxu0 0.0
    %6517 = vmatpush1.msra.mxu0 0.0
    %6518 = vmatprep.subr.mxu0 0.0
    %6519 = vmatpush1.msra.mxu0 0.0
    %6520 = vmatprep.subr.mxu0 0.0
    %6521 = vmatpush1.msra.mxu0 0.0
    %6522 = vmatprep.subr.mxu0 0.0
    %6523 = vmatpush1.msra.mxu0 0.0
    %6524 = vmatprep.subr.mxu0 0.0
    %6525 = vmatpush1.msra.mxu0 0.0
    %6526 = vmatprep.subr.mxu0 0.0
    %6527 = vmatpush1.msra.mxu0 0.0
    %6528 = vmatprep.subr.mxu0 0.0
    %6529 = vmatpush1.msra.mxu0 0.0
    %6530 = vmatprep.subr.mxu0 0.0
    %6531 = vmatpush1.msra.mxu0 0.0
    %6532 = vmatprep.subr.mxu0 0.0
    %6533 = vmatpush1.msra.mxu0 0.0
    %6534 = vmatprep.subr.mxu0 0.0
    %6535 = vmatpush1.msra.mxu0 0.0
    %6536 = vmatprep.subr.mxu0 0.0
    %6537 = vmatpush1.msra.mxu0 0.0
    %6538 = vmatprep.subr.mxu0 0.0
    %6539 = vmatpush1.msra.mxu0 0.0
    %6540 = vmatprep.subr.mxu0 0.0
    %6541 = vmatpush1.msra.mxu0 0.0
    %6542 = vmatprep.subr.mxu0 0.0
    %6543 = vmatpush1.msra.mxu0 0.0
    %6544 = vmatprep.subr.mxu0 0.0
    %6545 = vmatpush1.msra.mxu0 0.0
    %6546 = vmatprep.mubr.f32.mxu0 0.0
    %6547 = vmatmul.mubr.f32.gmra.mrb[0].mxu0 %v6480
    %v6548 = vpop.f32.mrb[0].mxu0
    %v6549 = vadd.f32 0.0, %v6548
    %v6550 = vpop.f32.mrb[0].mxu0
    %6551 = vdwg.mxu0
    %6560 = vset.pattern.permute.xlu0 0
    %6561 = vperm.xlu0 %6560, %v6250
    %v6562 = vpop.permute.xlu0 %6561
    %6563 = vset.pattern.permute.xlu0 0
    %6564 = vperm.xlu0 %6563, %v6251
    %v6565 = vpop.permute.xlu0 %6564
    %6566 = vset.pattern.permute.xlu0 0
    %6567 = vperm.xlu0 %6566, %v6252
    %v6568 = vpop.permute.xlu0 %6567
    %6569 = vset.pattern.permute.xlu0 0
    %6570 = vperm.xlu0 %6569, %v6253
    %v6571 = vpop.permute.xlu0 %6570
    %6572 = vset.pattern.permute.xlu0 0
    %6573 = vperm.xlu0 %6572, %v6254
    %v6574 = vpop.permute.xlu0 %6573
    %6575 = vset.pattern.permute.xlu0 0
    %6576 = vperm.xlu0 %6575, %v6255
    %v6577 = vpop.permute.xlu0 %6576
    %6578 = vset.pattern.permute.xlu0 0
    %6579 = vperm.xlu0 %6578, %v6256
    %v6580 = vpop.permute.xlu0 %6579
    %6581 = vset.pattern.permute.xlu0 0
    %6582 = vperm.xlu0 %6581, %v6257
    %v6583 = vpop.permute.xlu0 %6582
    %v6584 = vlaneseq
    %v6585 = vshrl.u32 %v6584, 7
    %v6586 = vsub.s32 %v1687, %v6585
    %v6587 = vrot.slane %v6562, %v6586
    %v6588 = vlaneseq
    %v6589 = vshrl.u32 %v6588, 7
    %v6590 = vsub.s32 %v1692, %v6589
    %v6591 = vrot.slane %v6565, %v6590
    %v6592 = vsel %vm1697, %v6591, %v6587
    %v6593 = vlaneseq
    %v6594 = vshrl.u32 %v6593, 7
    %v6595 = vsub.s32 %v1699, %v6594
    %v6596 = vrot.slane %v6568, %v6595
    %v6597 = vsel %vm1704, %v6596, %v6592
    %v6598 = vlaneseq
    %v6599 = vshrl.u32 %v6598, 7
    %v6600 = vsub.s32 %v1706, %v6599
    %v6601 = vrot.slane %v6571, %v6600
    %v6602 = vsel %vm1711, %v6601, %v6597
    %v6603 = vlaneseq
    %v6604 = vshrl.u32 %v6603, 7
    %v6605 = vsub.s32 %v1713, %v6604
    %v6606 = vrot.slane %v6574, %v6605
    %v6607 = vsel %vm1718, %v6606, %v6602
    %v6608 = vlaneseq
    %v6609 = vshrl.u32 %v6608, 7
    %v6610 = vsub.s32 %v1720, %v6609
    %v6611 = vrot.slane %v6577, %v6610
    %v6612 = vsel %vm1725, %v6611, %v6607
    %v6613 = vlaneseq
    %v6614 = vshrl.u32 %v6613, 7
    %v6615 = vsub.s32 %v1727, %v6614
    %v6616 = vrot.slane %v6580, %v6615
    %v6617 = vsel %vm1732, %v6616, %v6612
    %v6618 = vlaneseq
    %v6619 = vshrl.u32 %v6618, 7
    %v6620 = vsub.s32 %v1734, %v6619
    %v6621 = vrot.slane %v6583, %v6620
    %v6622 = vsel %vm1739, %v6621, %v6617
    %v6623 = vsel %vm104, %v6622, 0
    %6625 = vmatprep.subr.mxu0 0.0
    %6626 = vmatpush1.msra.mxu0 %v866
    %6627 = vmatprep.subr.mxu0 0.0
    %6628 = vmatpush1.msra.mxu0 %v867
    %6629 = vmatprep.subr.mxu0 0.0
    %6630 = vmatpush1.msra.mxu0 %v868
    %6631 = vmatprep.subr.mxu0 0.0
    %6632 = vmatpush1.msra.mxu0 %v869
    %6633 = vmatprep.subr.mxu0 0.0
    %6634 = vmatpush1.msra.mxu0 %v870
    %6635 = vmatprep.subr.mxu0 0.0
    %6636 = vmatpush1.msra.mxu0 %v871
    %6637 = vmatprep.subr.mxu0 0.0
    %6638 = vmatpush1.msra.mxu0 %v872
    %6639 = vmatprep.subr.mxu0 0.0
    %6640 = vmatpush1.msra.mxu0 %v873
    %6641 = vmatprep.subr.mxu0 0.0
    %6642 = vmatpush1.msra.mxu0 0.0
    %6643 = vmatprep.subr.mxu0 0.0
    %6644 = vmatpush1.msra.mxu0 0.0
    %6645 = vmatprep.subr.mxu0 0.0
    %6646 = vmatpush1.msra.mxu0 0.0
    %6647 = vmatprep.subr.mxu0 0.0
    %6648 = vmatpush1.msra.mxu0 0.0
    %6649 = vmatprep.subr.mxu0 0.0
    %6650 = vmatpush1.msra.mxu0 0.0
    %6651 = vmatprep.subr.mxu0 0.0
    %6652 = vmatpush1.msra.mxu0 0.0
    %6653 = vmatprep.subr.mxu0 0.0
    %6654 = vmatpush1.msra.mxu0 0.0
    %6655 = vmatprep.subr.mxu0 0.0
    %6656 = vmatpush1.msra.mxu0 0.0
    %6657 = vmatprep.subr.mxu0 0.0
    %6658 = vmatpush1.msra.mxu0 0.0
    %6659 = vmatprep.subr.mxu0 0.0
    %6660 = vmatpush1.msra.mxu0 0.0
    %6661 = vmatprep.subr.mxu0 0.0
    %6662 = vmatpush1.msra.mxu0 0.0
    %6663 = vmatprep.subr.mxu0 0.0
    %6664 = vmatpush1.msra.mxu0 0.0
    %6665 = vmatprep.subr.mxu0 0.0
    %6666 = vmatpush1.msra.mxu0 0.0
    %6667 = vmatprep.subr.mxu0 0.0
    %6668 = vmatpush1.msra.mxu0 0.0
    %6669 = vmatprep.subr.mxu0 0.0
    %6670 = vmatpush1.msra.mxu0 0.0
    %6671 = vmatprep.subr.mxu0 0.0
    %6672 = vmatpush1.msra.mxu0 0.0
    %6673 = vmatprep.subr.mxu0 0.0
    %6674 = vmatpush1.msra.mxu0 0.0
    %6675 = vmatprep.subr.mxu0 0.0
    %6676 = vmatpush1.msra.mxu0 0.0
    %6677 = vmatprep.subr.mxu0 0.0
    %6678 = vmatpush1.msra.mxu0 0.0
    %6679 = vmatprep.subr.mxu0 0.0
    %6680 = vmatpush1.msra.mxu0 0.0
    %6681 = vmatprep.subr.mxu0 0.0
    %6682 = vmatpush1.msra.mxu0 0.0
    %6683 = vmatprep.subr.mxu0 0.0
    %6684 = vmatpush1.msra.mxu0 0.0
    %6685 = vmatprep.subr.mxu0 0.0
    %6686 = vmatpush1.msra.mxu0 0.0
    %6687 = vmatprep.subr.mxu0 0.0
    %6688 = vmatpush1.msra.mxu0 0.0
    %6689 = vmatprep.mubr.f32.mxu0 0.0
    %6690 = vmatmul.mubr.f32.gmra.mrb[0].mxu0 %v6623
    %v6691 = vpop.f32.mrb[0].mxu0
    %v6692 = vadd.f32 0.0, %v6691
    %v6693 = vpop.f32.mrb[0].mxu0
    %6694 = vdwg.mxu0
    %6703 = vset.pattern.permute.xlu0 0
    %6704 = vperm.xlu0 %6703, %v6258
    %v6705 = vpop.permute.xlu0 %6704
    %6706 = vset.pattern.permute.xlu0 0
    %6707 = vperm.xlu0 %6706, %v6259
    %v6708 = vpop.permute.xlu0 %6707
    %6709 = vset.pattern.permute.xlu0 0
    %6710 = vperm.xlu0 %6709, %v6260
    %v6711 = vpop.permute.xlu0 %6710
    %6712 = vset.pattern.permute.xlu0 0
    %6713 = vperm.xlu0 %6712, %v6261
    %v6714 = vpop.permute.xlu0 %6713
    %6715 = vset.pattern.permute.xlu0 0
    %6716 = vperm.xlu0 %6715, %v6262
    %v6717 = vpop.permute.xlu0 %6716
    %6718 = vset.pattern.permute.xlu0 0
    %6719 = vperm.xlu0 %6718, %v6263
    %v6720 = vpop.permute.xlu0 %6719
    %6721 = vset.pattern.permute.xlu0 0
    %6722 = vperm.xlu0 %6721, %v6264
    %v6723 = vpop.permute.xlu0 %6722
    %6724 = vset.pattern.permute.xlu0 0
    %6725 = vperm.xlu0 %6724, %v6265
    %v6726 = vpop.permute.xlu0 %6725
    %v6727 = vlaneseq
    %v6728 = vshrl.u32 %v6727, 7
    %v6729 = vsub.s32 %v1687, %v6728
    %v6730 = vrot.slane %v6705, %v6729
    %v6731 = vlaneseq
    %v6732 = vshrl.u32 %v6731, 7
    %v6733 = vsub.s32 %v1692, %v6732
    %v6734 = vrot.slane %v6708, %v6733
    %v6735 = vsel %vm1697, %v6734, %v6730
    %v6736 = vlaneseq
    %v6737 = vshrl.u32 %v6736, 7
    %v6738 = vsub.s32 %v1699, %v6737
    %v6739 = vrot.slane %v6711, %v6738
    %v6740 = vsel %vm1704, %v6739, %v6735
    %v6741 = vlaneseq
    %v6742 = vshrl.u32 %v6741, 7
    %v6743 = vsub.s32 %v1706, %v6742
    %v6744 = vrot.slane %v6714, %v6743
    %v6745 = vsel %vm1711, %v6744, %v6740
    %v6746 = vlaneseq
    %v6747 = vshrl.u32 %v6746, 7
    %v6748 = vsub.s32 %v1713, %v6747
    %v6749 = vrot.slane %v6717, %v6748
    %v6750 = vsel %vm1718, %v6749, %v6745
    %v6751 = vlaneseq
    %v6752 = vshrl.u32 %v6751, 7
    %v6753 = vsub.s32 %v1720, %v6752
    %v6754 = vrot.slane %v6720, %v6753
    %v6755 = vsel %vm1725, %v6754, %v6750
    %v6756 = vlaneseq
    %v6757 = vshrl.u32 %v6756, 7
    %v6758 = vsub.s32 %v1727, %v6757
    %v6759 = vrot.slane %v6723, %v6758
    %v6760 = vsel %vm1732, %v6759, %v6755
    %v6761 = vlaneseq
    %v6762 = vshrl.u32 %v6761, 7
    %v6763 = vsub.s32 %v1734, %v6762
    %v6764 = vrot.slane %v6726, %v6763
    %v6765 = vsel %vm1739, %v6764, %v6760
    %v6766 = vsel %vm104, %v6765, 0
    %6768 = vmatprep.subr.mxu0 0.0
    %6769 = vmatpush1.msra.mxu0 %v874
    %6770 = vmatprep.subr.mxu0 0.0
    %6771 = vmatpush1.msra.mxu0 %v875
    %6772 = vmatprep.subr.mxu0 0.0
    %6773 = vmatpush1.msra.mxu0 %v876
    %6774 = vmatprep.subr.mxu0 0.0
    %6775 = vmatpush1.msra.mxu0 %v877
    %6776 = vmatprep.subr.mxu0 0.0
    %6777 = vmatpush1.msra.mxu0 %v878
    %6778 = vmatprep.subr.mxu0 0.0
    %6779 = vmatpush1.msra.mxu0 %v879
    %6780 = vmatprep.subr.mxu0 0.0
    %6781 = vmatpush1.msra.mxu0 %v880
    %6782 = vmatprep.subr.mxu0 0.0
    %6783 = vmatpush1.msra.mxu0 %v881
    %6784 = vmatprep.subr.mxu0 0.0
    %6785 = vmatpush1.msra.mxu0 0.0
    %6786 = vmatprep.subr.mxu0 0.0
    %6787 = vmatpush1.msra.mxu0 0.0
    %6788 = vmatprep.subr.mxu0 0.0
    %6789 = vmatpush1.msra.mxu0 0.0
    %6790 = vmatprep.subr.mxu0 0.0
    %6791 = vmatpush1.msra.mxu0 0.0
    %6792 = vmatprep.subr.mxu0 0.0
    %6793 = vmatpush1.msra.mxu0 0.0
    %6794 = vmatprep.subr.mxu0 0.0
    %6795 = vmatpush1.msra.mxu0 0.0
    %6796 = vmatprep.subr.mxu0 0.0
    %6797 = vmatpush1.msra.mxu0 0.0
    %6798 = vmatprep.subr.mxu0 0.0
    %6799 = vmatpush1.msra.mxu0 0.0
    %6800 = vmatprep.subr.mxu0 0.0
    %6801 = vmatpush1.msra.mxu0 0.0
    %6802 = vmatprep.subr.mxu0 0.0
    %6803 = vmatpush1.msra.mxu0 0.0
    %6804 = vmatprep.subr.mxu0 0.0
    %6805 = vmatpush1.msra.mxu0 0.0
    %6806 = vmatprep.subr.mxu0 0.0
    %6807 = vmatpush1.msra.mxu0 0.0
    %6808 = vmatprep.subr.mxu0 0.0
    %6809 = vmatpush1.msra.mxu0 0.0
    %6810 = vmatprep.subr.mxu0 0.0
    %6811 = vmatpush1.msra.mxu0 0.0
    %6812 = vmatprep.subr.mxu0 0.0
    %6813 = vmatpush1.msra.mxu0 0.0
    %6814 = vmatprep.subr.mxu0 0.0
    %6815 = vmatpush1.msra.mxu0 0.0
    %6816 = vmatprep.subr.mxu0 0.0
    %6817 = vmatpush1.msra.mxu0 0.0
    %6818 = vmatprep.subr.mxu0 0.0
    %6819 = vmatpush1.msra.mxu0 0.0
    %6820 = vmatprep.subr.mxu0 0.0
    %6821 = vmatpush1.msra.mxu0 0.0
    %6822 = vmatprep.subr.mxu0 0.0
    %6823 = vmatpush1.msra.mxu0 0.0
    %6824 = vmatprep.subr.mxu0 0.0
    %6825 = vmatpush1.msra.mxu0 0.0
    %6826 = vmatprep.subr.mxu0 0.0
    %6827 = vmatpush1.msra.mxu0 0.0
    %6828 = vmatprep.subr.mxu0 0.0
    %6829 = vmatpush1.msra.mxu0 0.0
    %6830 = vmatprep.subr.mxu0 0.0
    %6831 = vmatpush1.msra.mxu0 0.0
    %6832 = vmatprep.mubr.f32.mxu0 0.0
    %6833 = vmatmul.mubr.f32.gmra.mrb[0].mxu0 %v6766
    %v6834 = vpop.f32.mrb[0].mxu0
    %v6835 = vadd.f32 0.0, %v6834
    %v6836 = vpop.f32.mrb[0].mxu0
    %6837 = vdwg.mxu0
    %v6838 = vmul.f32 %v6406, 0.5
    %v6839 = vmul.f32 %v6549, 0.5
    %v6840 = vmul.f32 %v6692, 0.5
    %v6841 = vmul.f32 %v6835, 0.5
    %v6846 = vrot.slane %v6839, 7
    %vm6847 = vcmask 1041409
    %v6848 = vsel %vm6847, %v6846, %v6838
    %v6849 = vrot.slane %v6840, 6
    %vm6850 = vcmask 1042434
    %v6851 = vsel %vm6850, %v6849, %v6848
    %v6852 = vrot.slane %v6841, 5
    %vm6853 = vcmask 1043459
    %v6854 = vsel %vm6853, %v6852, %v6851
    %vm6856 = vcmask 1043456
    %v6857 = vsel %vm6856, %v6854, 0.0
    %6858 = vadd.xlane.f32.xlu0 %v6857
    %v6859 = vpop.xlane.xlu0 %6858
    %v6860 = vrcp.pop %v6859
    %v6862 = vrot.slane %v6860, 1
    %v6863 = vrot.slane %v6860, 2
    %v6864 = vrot.slane %v6860, 3
    %v6869 = vmul.f32 %v6838, %v6860
    %v6870 = vmul.f32 %v6839, %v6862
    %v6871 = vmul.f32 %v6840, %v6863
    %v6872 = vmul.f32 %v6841, %v6864
    %v6877 = vrot.slane %v6870, 7
    %v6878 = vsel %vm6847, %v6877, %v6869
    %v6879 = vrot.slane %v6871, 6
    %v6880 = vsel %vm6850, %v6879, %v6878
    %v6881 = vrot.slane %v6872, 5
    %v6882 = vsel %vm6853, %v6881, %v6880
    %6884 = vst [vmem:[#allocation7] sm:$0xf] %v6882
    // Predicated region
    $region18: #{tpu_custom_call.1} parent=1 // pred_check
      _
    $region19: #{tpu_custom_call.1} parent=1 // pred_check_branch
      %6886 = sbr.rel (0) target = $region21
    $region20: #{tpu_custom_call.1} parent=1 // pred_region
      %s6888 = ssub.s32 64, 64
      %6889 = vsyncadd [#allocation4], %s6888
      %s6891 = sshll.u32 [#allocation7], 4
      %s6892 = int_to_ptr.vmem [resolvable:$true] %s6891
      %6894 = dma.vmem_to_hbm [thread:$0]  %s6892, 64, %s2, [#allocation4]
    $region21: #{tpu_custom_call.1} parent=1 // pred_fallthru
      _
    // Predicated region
    $region22: #{tpu_custom_call.1} parent=1 // pred_check
      _
    $region23: #{tpu_custom_call.1} parent=1 // pred_check_branch
      %6896 = sbr.rel (0) target = $region25
    $region24: #{tpu_custom_call.1} parent=1 // pred_region
      %6897 = dma.done [#allocation4], 64
    $region25: #{tpu_custom_call.1} parent=1 // pred_fallthru
      _
    %6898 = vsyncpa [#allocation3], 1
    %6899 = vsyncpa [#allocation6], 1
    %6900 = vsyncpa [#allocation4], 1

</llo_original>
